<compile_context>
chip_gen: v6e
topology: v6e:2x2x1
jax: 0.10.0
libtpu: 0.0.40
codegen_flags: <defaults>
</compile_context>

<pallas_src>
import math
import numpy as np
import jax
import jax.numpy as jnp
from jax.experimental import pallas as pl
from jax.experimental.pallas import tpu as pltpu


def _num_frequencies(in_features, sidelength=None, fn_samples=None, use_nyquist=True):
    """Mirror of PosEncodingNeRF.__init__ frequency-count logic."""
    def nyquist(samples):
        nyquist_rate = 1 / (2 * (2 * 1 / samples))
        return int(math.floor(math.log(nyquist_rate, 2)))

    if in_features == 3:
        return 10
    elif in_features == 2:
        assert sidelength is not None
        if isinstance(sidelength, int):
            sidelength = (sidelength, sidelength)
        nf = 4
        if use_nyquist:
            nf = nyquist(min(sidelength[0], sidelength[1]))
        return nf
    elif in_features == 1:
        assert fn_samples is not None
        nf = 4
        if use_nyquist:
            nf = nyquist(fn_samples)
        return nf
    else:
        raise ValueError("in_features must be 1, 2 or 3")


def _round_up(x, m):
    return (x + m - 1) // m * m


def _make_posenc_kernel(in_features, num_frequencies):
    F = in_features
    # Bake frequency scales as Python constants (no in-loop broadcasts).
    scales = [float((2.0 ** i) * math.pi) for i in range(num_frequencies)]

    def posenc_kernel(coords_ref, out_ref):
        # coords_ref: (F, tn) f32, points on lanes (lane-dense).
        # out_ref:    (out_dim, tn) f32; row order = [coords,
        #             (sin_j, cos_j for j in F) for each frequency i].
        c = coords_ref[...]                                  # (F, tn)
        out_ref[0:F, :] = c                                  # identity channels

        for i, scale in enumerate(scales):                   # unrolled, nf <= 10
            arg = scale * c                                  # scalar * block
            s = jnp.sin(arg)                                 # (F, tn) EUP
            co = jnp.cos(arg)                                # (F, tn) EUP
            # Interleave rows -> [sin_0, cos_0, sin_1, cos_1, ...]
            slab = jnp.stack([s, co], axis=1).reshape(2 * F, c.shape[1])
            base = F + 2 * F * i
            out_ref[base:base + 2 * F, :] = slab             # lane-dense slab store

    return posenc_kernel


def pos_encoding_nerf(coords, in_features, sidelength=None, fn_samples=None,
                      use_nyquist=True, tn_max=2048):
    """Pallas equivalent of PosEncodingNeRF.forward.

    coords: any shape (B, ...) whose trailing elements reshape to
            (B, N, in_features), same as the torch `.view`.
    returns: (B, N, out_dim) float32, out_dim = F + 2*F*num_frequencies.
    """
    num_freq = _num_frequencies(in_features, sidelength, fn_samples, use_nyquist)
    out_dim = in_features + 2 * in_features * num_freq

    B = coords.shape[0]
    coords = coords.reshape(B, -1, in_features).astype(jnp.float32)
    N = coords.shape[1]
    P = B * N

    # Channels-first: (F, P) so points map onto the 128-wide lane axis.
    coords_cf = coords.reshape(P, in_features).T             # (F, P)

    # Tile size: large lane-dense tiles, but keep >= 2 grid steps when the
    # point count allows it (v7x megacore sharding via "parallel").
    tn = min(tn_max, _round_up(P, 128))
    if P > 128 and pl.cdiv(P, tn) < 2:
        tn = max(128, _round_up(pl.cdiv(P, 2), 128))
    P_pad = _round_up(P, tn)                                  # ragged N -> pad tail
    if P_pad != P:
        coords_cf = jnp.pad(coords_cf, ((0, 0), (0, P_pad - P)))

    kernel = _make_posenc_kernel(in_features, num_freq)

    out_cf = pl.pallas_call(
        kernel,
        out_shape=jax.ShapeDtypeStruct((out_dim, P_pad), jnp.float32),
        grid_spec=pltpu.PrefetchScalarGridSpec(
            num_scalar_prefetch=0,
            grid=(P_pad // tn,),
            in_specs=[pl.BlockSpec((in_features, tn), lambda n: (0, n))],
            out_specs=pl.BlockSpec((out_dim, tn), lambda n: (0, n)),
        ),
        compiler_params=pltpu.CompilerParams(
            dimension_semantics=("parallel",)),
    )(coords_cf)

    # Back to the PyTorch layout (B, N, out_dim); drop the padded tail.
    out = out_cf[:, :P].T.reshape(B, N, out_dim)
    return out


def pos_encoding_nerf_ref(coords, in_features, num_freq):
    """Pure-JAX reference matching the torch loop exactly."""
    B = coords.shape[0]
    coords = coords.reshape(B, -1, in_features).astype(jnp.float32)
    parts = [coords]
    for i in range(num_freq):
        for j in range(in_features):
            c = coords[..., j]
            parts.append(jnp.sin((2 ** i) * np.pi * c)[..., None])
            parts.append(jnp.cos((2 ** i) * np.pi * c)[..., None])
    return jnp.concatenate(parts, axis=-1)


if __name__ == "__main__":
    key = jax.random.PRNGKey(0)

    # Case 1: in_features=3 => num_frequencies=10, out_dim = 3 + 2*3*10 = 63
    in_features = 3
    B, N = 2, 256
    k1, k2 = jax.random.split(key)
    coords = jax.random.uniform(k1, (B, N, in_features),
                                dtype=jnp.float32, minval=-1.0, maxval=1.0)

    out = pos_encoding_nerf(coords, in_features=in_features)
    out = jax.block_until_ready(out)

    num_freq = _num_frequencies(in_features)
    ref = pos_encoding_nerf_ref(coords, in_features, num_freq)
    assert out.shape == (B, N, in_features + 2 * in_features * num_freq)
    np.testing.assert_allclose(np.asarray(out), np.asarray(ref),
                               rtol=1e-5, atol=1e-5)

    # Case 2: ragged point count (exercises padding path), in_features=2
    in_features2 = 2
    B2, N2 = 2, 200
    coords2 = jax.random.uniform(k2, (B2, N2, in_features2),
                                 dtype=jnp.float32, minval=-1.0, maxval=1.0)
    out2 = pos_encoding_nerf(coords2, in_features=in_features2, sidelength=64)
    out2 = jax.block_until_ready(out2)
    num_freq2 = _num_frequencies(in_features2, sidelength=64)
    ref2 = pos_encoding_nerf_ref(coords2, in_features2, num_freq2)
    assert out2.shape == (B2, N2, in_features2 + 2 * in_features2 * num_freq2)
    np.testing.assert_allclose(np.asarray(out2), np.asarray(ref2),
                               rtol=1e-5, atol=1e-5)

    print("KERNEL_OK")
</pallas_src>

<mosaic_0001>
module attributes {stable_mosaic.version = 11 : i64} {
  func.func @posenc_kernel(%arg0: i32, %arg1: memref<3x256xf32, #tpu.memory_space<vmem>>, %arg2: memref<63x256xf32, #tpu.memory_space<vmem>>) attributes {dimension_semantics = [#tpu.dimension_semantics<parallel>], iteration_bounds = array<i64: 2>, scalar_prefetch = 0 : i64, scratch_operands = 0 : i64, tpu.core_type = #tpu.core_type<tc>, window_params = [{transform_indices = @transform_0, window_bounds = array<i64: 3, 256>}, {transform_indices = @transform_1, window_bounds = array<i64: 63, 256>}]} {
    %c0 = arith.constant 0 : index
    %c0_0 = arith.constant 0 : index
    %0 = vector.load %arg1[%c0, %c0_0] : memref<3x256xf32, #tpu.memory_space<vmem>>, vector<3x256xf32>
    %c0_1 = arith.constant 0 : index
    %c0_2 = arith.constant 0 : index
    %1 = vector.load %arg2[%c0_1, %c0_2] : memref<63x256xf32, #tpu.memory_space<vmem>>, vector<3x256xf32>
    tpu.vector_store %arg2[%c0_1, %c0_2], %0 {strides = array<i32>} : memref<63x256xf32, #tpu.memory_space<vmem>>, vector<3x256xf32>,
    %cst = arith.constant 3.14159274 : f32
    %2 = vector.broadcast %cst : f32 to vector<3x256xf32>
    %3 = arith.mulf %2, %0 : vector<3x256xf32>
    %4 = math.sin %3 : vector<3x256xf32>
    %5 = math.cos %3 : vector<3x256xf32>
    %6 = vector.shape_cast %4 : vector<3x256xf32> to vector<3x1x256xf32>
    %7 = vector.shape_cast %5 : vector<3x256xf32> to vector<3x1x256xf32>
    %8 = tpu.concatenate %6, %7 in 1 : vector<3x1x256xf32>, vector<3x1x256xf32> -> vector<3x2x256xf32>
    %9 = vector.shape_cast %8 : vector<3x2x256xf32> to vector<6x256xf32>
    %c3 = arith.constant 3 : index
    %c0_3 = arith.constant 0 : index
    %10 = vector.load %arg2[%c3, %c0_3] : memref<63x256xf32, #tpu.memory_space<vmem>>, vector<6x256xf32>
    tpu.vector_store %arg2[%c3, %c0_3], %9 {strides = array<i32>} : memref<63x256xf32, #tpu.memory_space<vmem>>, vector<6x256xf32>,
    %cst_4 = arith.constant 6.28318548 : f32
    %11 = vector.broadcast %cst_4 : f32 to vector<3x256xf32>
    %12 = arith.mulf %11, %0 : vector<3x256xf32>
    %13 = math.sin %12 : vector<3x256xf32>
    %14 = math.cos %12 : vector<3x256xf32>
    %15 = vector.shape_cast %13 : vector<3x256xf32> to vector<3x1x256xf32>
    %16 = vector.shape_cast %14 : vector<3x256xf32> to vector<3x1x256xf32>
    %17 = tpu.concatenate %15, %16 in 1 : vector<3x1x256xf32>, vector<3x1x256xf32> -> vector<3x2x256xf32>
    %18 = vector.shape_cast %17 : vector<3x2x256xf32> to vector<6x256xf32>
    %c9 = arith.constant 9 : index
    %c0_5 = arith.constant 0 : index
    %19 = vector.load %arg2[%c9, %c0_5] : memref<63x256xf32, #tpu.memory_space<vmem>>, vector<6x256xf32>
    tpu.vector_store %arg2[%c9, %c0_5], %18 {strides = array<i32>} : memref<63x256xf32, #tpu.memory_space<vmem>>, vector<6x256xf32>,
    %cst_6 = arith.constant 12.566371 : f32
    %20 = vector.broadcast %cst_6 : f32 to vector<3x256xf32>
    %21 = arith.mulf %20, %0 : vector<3x256xf32>
    %22 = math.sin %21 : vector<3x256xf32>
    %23 = math.cos %21 : vector<3x256xf32>
    %24 = vector.shape_cast %22 : vector<3x256xf32> to vector<3x1x256xf32>
    %25 = vector.shape_cast %23 : vector<3x256xf32> to vector<3x1x256xf32>
    %26 = tpu.concatenate %24, %25 in 1 : vector<3x1x256xf32>, vector<3x1x256xf32> -> vector<3x2x256xf32>
    %27 = vector.shape_cast %26 : vector<3x2x256xf32> to vector<6x256xf32>
    %c15 = arith.constant 15 : index
    %c0_7 = arith.constant 0 : index
    %28 = vector.load %arg2[%c15, %c0_7] : memref<63x256xf32, #tpu.memory_space<vmem>>, vector<6x256xf32>
    tpu.vector_store %arg2[%c15, %c0_7], %27 {strides = array<i32>} : memref<63x256xf32, #tpu.memory_space<vmem>>, vector<6x256xf32>,
    %cst_8 = arith.constant 25.1327419 : f32
    %29 = vector.broadcast %cst_8 : f32 to vector<3x256xf32>
    %30 = arith.mulf %29, %0 : vector<3x256xf32>
    %31 = math.sin %30 : vector<3x256xf32>
    %32 = math.cos %30 : vector<3x256xf32>
    %33 = vector.shape_cast %31 : vector<3x256xf32> to vector<3x1x256xf32>
    %34 = vector.shape_cast %32 : vector<3x256xf32> to vector<3x1x256xf32>
    %35 = tpu.concatenate %33, %34 in 1 : vector<3x1x256xf32>, vector<3x1x256xf32> -> vector<3x2x256xf32>
    %36 = vector.shape_cast %35 : vector<3x2x256xf32> to vector<6x256xf32>
    %c21 = arith.constant 21 : index
    %c0_9 = arith.constant 0 : index
    %37 = vector.load %arg2[%c21, %c0_9] : memref<63x256xf32, #tpu.memory_space<vmem>>, vector<6x256xf32>
    tpu.vector_store %arg2[%c21, %c0_9], %36 {strides = array<i32>} : memref<63x256xf32, #tpu.memory_space<vmem>>, vector<6x256xf32>,
    %cst_10 = arith.constant 50.2654839 : f32
    %38 = vector.broadcast %cst_10 : f32 to vector<3x256xf32>
    %39 = arith.mulf %38, %0 : vector<3x256xf32>
    %40 = math.sin %39 : vector<3x256xf32>
    %41 = math.cos %39 : vector<3x256xf32>
    %42 = vector.shape_cast %40 : vector<3x256xf32> to vector<3x1x256xf32>
    %43 = vector.shape_cast %41 : vector<3x256xf32> to vector<3x1x256xf32>
    %44 = tpu.concatenate %42, %43 in 1 : vector<3x1x256xf32>, vector<3x1x256xf32> -> vector<3x2x256xf32>
    %45 = vector.shape_cast %44 : vector<3x2x256xf32> to vector<6x256xf32>
    %c27 = arith.constant 27 : index
    %c0_11 = arith.constant 0 : index
    %46 = vector.load %arg2[%c27, %c0_11] : memref<63x256xf32, #tpu.memory_space<vmem>>, vector<6x256xf32>
    tpu.vector_store %arg2[%c27, %c0_11], %45 {strides = array<i32>} : memref<63x256xf32, #tpu.memory_space<vmem>>, vector<6x256xf32>,
    %cst_12 = arith.constant 100.530968 : f32
    %47 = vector.broadcast %cst_12 : f32 to vector<3x256xf32>
    %48 = arith.mulf %47, %0 : vector<3x256xf32>
    %49 = math.sin %48 : vector<3x256xf32>
    %50 = math.cos %48 : vector<3x256xf32>
    %51 = vector.shape_cast %49 : vector<3x256xf32> to vector<3x1x256xf32>
    %52 = vector.shape_cast %50 : vector<3x256xf32> to vector<3x1x256xf32>
    %53 = tpu.concatenate %51, %52 in 1 : vector<3x1x256xf32>, vector<3x1x256xf32> -> vector<3x2x256xf32>
    %54 = vector.shape_cast %53 : vector<3x2x256xf32> to vector<6x256xf32>
    %c33 = arith.constant 33 : index
    %c0_13 = arith.constant 0 : index
    %55 = vector.load %arg2[%c33, %c0_13] : memref<63x256xf32, #tpu.memory_space<vmem>>, vector<6x256xf32>
    tpu.vector_store %arg2[%c33, %c0_13], %54 {strides = array<i32>} : memref<63x256xf32, #tpu.memory_space<vmem>>, vector<6x256xf32>,
    %cst_14 = arith.constant 201.061935 : f32
    %56 = vector.broadcast %cst_14 : f32 to vector<3x256xf32>
    %57 = arith.mulf %56, %0 : vector<3x256xf32>
    %58 = math.sin %57 : vector<3x256xf32>
    %59 = math.cos %57 : vector<3x256xf32>
    %60 = vector.shape_cast %58 : vector<3x256xf32> to vector<3x1x256xf32>
    %61 = vector.shape_cast %59 : vector<3x256xf32> to vector<3x1x256xf32>
    %62 = tpu.concatenate %60, %61 in 1 : vector<3x1x256xf32>, vector<3x1x256xf32> -> vector<3x2x256xf32>
    %63 = vector.shape_cast %62 : vector<3x2x256xf32> to vector<6x256xf32>
    %c39 = arith.constant 39 : index
    %c0_15 = arith.constant 0 : index
    %64 = vector.load %arg2[%c39, %c0_15] : memref<63x256xf32, #tpu.memory_space<vmem>>, vector<6x256xf32>
    tpu.vector_store %arg2[%c39, %c0_15], %63 {strides = array<i32>} : memref<63x256xf32, #tpu.memory_space<vmem>>, vector<6x256xf32>,
    %cst_16 = arith.constant 402.123871 : f32
    %65 = vector.broadcast %cst_16 : f32 to vector<3x256xf32>
    %66 = arith.mulf %65, %0 : vector<3x256xf32>
    %67 = math.sin %66 : vector<3x256xf32>
    %68 = math.cos %66 : vector<3x256xf32>
    %69 = vector.shape_cast %67 : vector<3x256xf32> to vector<3x1x256xf32>
    %70 = vector.shape_cast %68 : vector<3x256xf32> to vector<3x1x256xf32>
    %71 = tpu.concatenate %69, %70 in 1 : vector<3x1x256xf32>, vector<3x1x256xf32> -> vector<3x2x256xf32>
    %72 = vector.shape_cast %71 : vector<3x2x256xf32> to vector<6x256xf32>
    %c45 = arith.constant 45 : index
    %c0_17 = arith.constant 0 : index
    %73 = vector.load %arg2[%c45, %c0_17] : memref<63x256xf32, #tpu.memory_space<vmem>>, vector<6x256xf32>
    tpu.vector_store %arg2[%c45, %c0_17], %72 {strides = array<i32>} : memref<63x256xf32, #tpu.memory_space<vmem>>, vector<6x256xf32>,
    %cst_18 = arith.constant 804.247741 : f32
    %74 = vector.broadcast %cst_18 : f32 to vector<3x256xf32>
    %75 = arith.mulf %74, %0 : vector<3x256xf32>
    %76 = math.sin %75 : vector<3x256xf32>
    %77 = math.cos %75 : vector<3x256xf32>
    %78 = vector.shape_cast %76 : vector<3x256xf32> to vector<3x1x256xf32>
    %79 = vector.shape_cast %77 : vector<3x256xf32> to vector<3x1x256xf32>
    %80 = tpu.concatenate %78, %79 in 1 : vector<3x1x256xf32>, vector<3x1x256xf32> -> vector<3x2x256xf32>
    %81 = vector.shape_cast %80 : vector<3x2x256xf32> to vector<6x256xf32>
    %c51 = arith.constant 51 : index
    %c0_19 = arith.constant 0 : index
    %82 = vector.load %arg2[%c51, %c0_19] : memref<63x256xf32, #tpu.memory_space<vmem>>, vector<6x256xf32>
    tpu.vector_store %arg2[%c51, %c0_19], %81 {strides = array<i32>} : memref<63x256xf32, #tpu.memory_space<vmem>>, vector<6x256xf32>,
    %cst_20 = arith.constant 1608.49548 : f32
    %83 = vector.broadcast %cst_20 : f32 to vector<3x256xf32>
    %84 = arith.mulf %83, %0 : vector<3x256xf32>
    %85 = math.sin %84 : vector<3x256xf32>
    %86 = math.cos %84 : vector<3x256xf32>
    %87 = vector.shape_cast %85 : vector<3x256xf32> to vector<3x1x256xf32>
    %88 = vector.shape_cast %86 : vector<3x256xf32> to vector<3x1x256xf32>
    %89 = tpu.concatenate %87, %88 in 1 : vector<3x1x256xf32>, vector<3x1x256xf32> -> vector<3x2x256xf32>
    %90 = vector.shape_cast %89 : vector<3x2x256xf32> to vector<6x256xf32>
    %c57 = arith.constant 57 : index
    %c0_21 = arith.constant 0 : index
    %91 = vector.load %arg2[%c57, %c0_21] : memref<63x256xf32, #tpu.memory_space<vmem>>, vector<6x256xf32>
    tpu.vector_store %arg2[%c57, %c0_21], %90 {strides = array<i32>} : memref<63x256xf32, #tpu.memory_space<vmem>>, vector<6x256xf32>,
    return
  }
  func.func @transform_0(%arg0: i32) -> (i32, i32) {
    %c0_i32 = arith.constant 0 : i32
    %c0_i32_0 = arith.constant 0 : i32
    return %c0_i32, %arg0 : i32, i32
  }
  func.func @transform_1(%arg0: i32) -> (i32, i32) {
    %c0_i32 = arith.constant 0 : i32
    %c0_i32_0 = arith.constant 0 : i32
    return %c0_i32, %arg0 : i32, i32
  }
}

</mosaic_0001>

<llo_original>
// kernel: tpu_custom_call.1
$region0: #{tpu_custom_call.1}
  #allocation0 [shape = 'u32[]', space=smem, size = 0x4, offset = 0x4, fixed_abs, tag = 'smem constant byte address 0x4 - core index']
  #allocation1 [shape = 'u32[144,128]{1,0:T(1,128)}', space=vmem, size = 0x12000, scoped, tag = 'internal scratch']
  %s0 = inlined_call_operand.hbm [shape: f32[3,512], index: 0, kind: input, shape index: {}]
  %s1 = inlined_call_operand.hbm [shape: f32[63,512], index: 1, kind: output, shape index: {}]
  %s2 = sld [smem:[#allocation0]]
  $region41: #{tpu_custom_call.1} parent=0
    _
  %s4 = ssub.s32 1, %s2
  %s5 = scalar_select 0, %s4, %s2
  $region1: #{tpu_custom_call.1} parent=0
    #allocation2 [shape = 'u8[8192]{0}', space=vmem, size = 0x2000, scoped, tag = 'input window, operand 0']
    #allocation3 [shape = 's32[2]{0}', space=sflag, size = 0x8, scoped, tag = 'scoped memory for tpu_custom_call.1']
    #allocation4 [shape = 's32[2]{0}', space=sflag, size = 0x8, scoped, tag = 'scoped memory for tpu_custom_call.1']
    #allocation5 [shape = 'u8[131072]{0}', space=vmem, size = 0x20000, scoped, tag = 'output window, operand 0']
    %6 = vsyncpa [#allocation3], 0
    %s7 = scalar_lea.sflag [#allocation3], 1
    %8 = vsyncpa %s7, 0
    %9 = vsyncpa [#allocation4], 0
    %s10 = scalar_lea.sflag [#allocation4], 1
    %11 = vsyncpa %s10, 0
    loop: start=0, step=1, limit=4
    $region2: #{tpu_custom_call.1} parent=1 // loop_pre_header
      _
    $region3: #{tpu_custom_call.1} parent=1 // loop_header
      %s13 = sphi 0, %s17
      %p14 = scmp.ge.s32.totalorder %s13, 4
      %s23 = sphi 0, %s25
      %s26 = sphi 0, %s23
      %s27 = sphi 0, %s26
      %s43 = sphi 0, %s27
      %s49 = sphi 0, %s51
      %s52 = sphi 0, %s49
      %s53 = sphi 0, %s52
      %s69 = sphi 0, %s53
    $region4: #{tpu_custom_call.1} parent=1 // loop_header_branch
      %16 = sbr.rel (%p14) target = $region8
    $region5: #{tpu_custom_call.1} parent=1 // loop_body
      %s18 = ssub.s32 %s13, 1
      %s19 = ssub.s32 %s13, 2
      %s20 = sadd.s32 %s13, 1
      %s21 = ssub.s32 %s13, %s20
      %p22 = scmp.eq.s32.totalorder %s21, 0
      %s24 = sadd.s32 %s23, 1
      %s25 = scalar_select %p22, %s23, %s24
      %p28 = pneg %p22
      %p29 = scmp.eq.s32.totalorder %s13, 1
      %p30 = por %p28, %p29
      %p31 = scmp.ne.s32.totalorder %s23, %s26
      %p32 = scmp.eq.s32.totalorder %s13, 0
      %p33 = por %p31, %p32
      %p34 = scmp.ne.s32.totalorder %s23, %s26
      %p35 = scmp.eq.s32.totalorder %s18, 1
      %p36 = por %p34, %p35
      %p37 = scmp.ne.s32.totalorder %s26, %s27
      %p38 = scmp.eq.s32.totalorder %s18, 0
      %p39 = por %p37, %p38
      %p40 = scmp.ne.s32.totalorder %s26, %s27
      %p41 = scmp.eq.s32.totalorder %s19, 1
      %p42 = por %p40, %p41
      %p44 = scmp.ne.s32.totalorder %s27, %s43
      %p45 = scmp.eq.s32.totalorder %s19, 0
      %p46 = por %p44, %p45
      %s47 = ssub.s32 %s13, %s20
      %p48 = scmp.eq.s32.totalorder %s47, 0
      %s50 = sadd.s32 %s49, 1
      %s51 = scalar_select %p48, %s49, %s50
      %p54 = pneg %p48
      %p55 = scmp.eq.s32.totalorder %s13, 1
      %p56 = por %p54, %p55
      %p57 = scmp.ne.s32.totalorder %s49, %s52
      %p58 = scmp.eq.s32.totalorder %s13, 0
      %p59 = por %p57, %p58
      %p60 = scmp.ne.s32.totalorder %s49, %s52
      %p61 = scmp.eq.s32.totalorder %s18, 1
      %p62 = por %p60, %p61
      %p63 = scmp.ne.s32.totalorder %s52, %s53
      %p64 = scmp.eq.s32.totalorder %s18, 0
      %p65 = por %p63, %p64
      %p66 = scmp.ne.s32.totalorder %s52, %s53
      %p67 = scmp.eq.s32.totalorder %s19, 1
      %p68 = por %p66, %p67
      %p70 = scmp.ne.s32.totalorder %s53, %s69
      %p71 = scmp.eq.s32.totalorder %s19, 0
      %p72 = por %p70, %p71
      %p73 = scmp.le.s32.totalorder 1, %s13
      %p74 = scmp.lt.s32.totalorder %s13, 3
      %p75 = pnand %p73, %p74
      %p76 = pneg %p75
      // Predicated region
      $region9: #{tpu_custom_call.1} parent=5 // pred_check
        _
      $region10: #{tpu_custom_call.1} parent=5 // pred_check_branch
        %78 = sbr.rel (%p75) target = $region12
      $region11: #{tpu_custom_call.1} parent=5 // pred_region
        %s79 = ssub.s32 %s13, 1
      $region12: #{tpu_custom_call.1} parent=5 // pred_fallthru
        _
      %p80 = scmp.lt.s32.totalorder %s13, 2
      // Predicated region
      $region13: #{tpu_custom_call.1} parent=5 // pred_check
        %p81 = pneg %p80
      $region14: #{tpu_custom_call.1} parent=5 // pred_check_branch
        %83 = sbr.rel (%p81) target = $region16
      $region15: #{tpu_custom_call.1} parent=5 // pred_region
        // Predicated region
        $region17: #{tpu_custom_call.1} parent=15 // pred_check
          %p84 = pneg %p33
        $region18: #{tpu_custom_call.1} parent=15 // pred_check_branch
          %86 = sbr.rel (%p84) target = $region20
        $region19: #{tpu_custom_call.1} parent=15 // pred_region
          %s87 = sand.u32 %s23, 1
          %s88 = scalar_lea.sflag [#allocation3], %s87
          %s89 = sand.u32 %s23, 1
          %s90 = smul.addr %s89, 8
          %s91 = scalar_lea.vmem [#allocation2], %s90
          %s92 = smul.u32 2, %s13
          %s94 = ssub.s32 128, 128
          %95 = vsyncadd %s88, %s94
          %s96 = smul.addr %s92, 64
          %s97 = scalar_lea.hbm %s0, %s96
          %s99 = sshll.u32 %s91, 4
          %s100 = int_to_ptr.vmem [resolvable:$true] %s99
          %102 = dma.hbm_to_vmem [thread:$0]  %s97, 128, %s100, %s88
        $region20: #{tpu_custom_call.1} parent=15 // pred_fallthru
          _
      $region16: #{tpu_custom_call.1} parent=5 // pred_fallthru
        _
      %p103 = scmp.le.s32.totalorder 1, %s13
      %p104 = scmp.lt.s32.totalorder %s13, 3
      %p105 = pnand %p103, %p104
      %p106 = pneg %p105
      // Predicated region
      $region21: #{tpu_custom_call.1} parent=5 // pred_check
        _
      $region22: #{tpu_custom_call.1} parent=5 // pred_check_branch
        %108 = sbr.rel (%p105) target = $region24
      $region23: #{tpu_custom_call.1} parent=5 // pred_region
        %s109 = ssub.s32 %s13, 1
        %s110 = sand.u32 %s26, 1
        %s111 = scalar_lea.sflag [#allocation3], %s110
        %s112 = sand.u32 %s26, 1
        %s113 = smul.addr %s112, 8
        %s114 = scalar_lea.vmem [#allocation2], %s113
        // Predicated region
        $region25: #{tpu_custom_call.1} parent=23 // pred_check
          %p115 = pneg %p39
        $region26: #{tpu_custom_call.1} parent=23 // pred_check_branch
          %117 = sbr.rel (%p115) target = $region28
        $region27: #{tpu_custom_call.1} parent=23 // pred_region
          %118 = dma.done %s111, 128
        $region28: #{tpu_custom_call.1} parent=23 // pred_fallthru
          _
        %s119 = sand.u32 %s26, 1
        %s120 = scalar_lea.sflag [#allocation3], %s119
        %s121 = sand.u32 %s26, 1
        %s122 = smul.addr %s121, 8
        %s123 = scalar_lea.vmem [#allocation2], %s122
        %p124 = pneg %p39
        %p125 = pneg %p36
        %p126 = pneg %p65
        %p127 = pneg %p62
        %s128 = sand.u32 %s52, 1
        %s129 = scalar_lea.sflag [#allocation4], %s128
        %s130 = sand.u32 %s52, 1
        %s131 = smul.addr %s130, 128
        %s132 = scalar_lea.vmem [#allocation5], %s131
        %s133 = smul.u32 2, %s18
        %s134 = smul.u32 2, %s18
        %v135 = vld [vmem:[%s114] sm:$0x77]
        %v137 = vcombine.high %v135, %v135
        %139 = vst [vmem:[%s132] sm:$0x7] %v135
        %140 = vst [vmem:[%s132 + $0x8] sm:$0x7] %v137
        %v141 = vmul.f32 %v135, 3.1415927
        %v142 = vand.u32 2147483647, %v141
        %vm143 = vcmp.le.f32.partialorder %v142, 0.7853982
        %vm144 = vcmp.lt.s32.totalorder %v141, 0
        %v145 = vand.u32 %v141, 2139095040
        %v146 = vshrl.u32 %v145, 23
        %v147 = vsub.s32 %v146, 127
        %v148 = vand.u32 2147483647, %v141
        %v149 = vand.u32 %v148, 8388607
        %v150 = vor.u32 %v149, 8388608
        %v151 = vsub.s32 0, %v150
        %v152 = vadd.s32 %v147, 1
        %vm153 = vcmp.gt.s32.totalorder %v152, 0
        %v154 = vsel %vm153, %v152, 0
        %v155 = vshrl.u32 %v154, 5
        %v156 = vand.u32 %v154, 31
        %v157 = vsub.s32 32, %v156
        %v158 = vshrl.u32 683565275, %v157
        %v159 = vshll.u32 683565275, %v156
        %v160 = vshrl.u32 2475754826, %v157
        %v161 = vor.u32 %v159, %v160
        %v162 = vshll.u32 2475754826, %v156
        %v163 = vshrl.u32 2131351028, %v157
        %v164 = vor.u32 %v162, %v163
        %v165 = vshll.u32 2131351028, %v156
        %v166 = vshrl.u32 2102212464, %v157
        %v167 = vor.u32 %v165, %v166
        %v168 = vshll.u32 2102212464, %v156
        %v169 = vshrl.u32 920167782, %v157
        %v170 = vor.u32 %v168, %v169
        %v171 = vshll.u32 920167782, %v156
        %v172 = vshrl.u32 1326507024, %v157
        %v173 = vor.u32 %v171, %v172
        %vm174 = vcmp.lt.s32.totalorder %v155, 1
        %vm175 = vcmp.lt.s32.totalorder %v155, 2
        %vm176 = vcmp.lt.s32.totalorder %v155, 3
        %vm177 = vcmp.lt.s32.totalorder %v155, 4
        %v178 = vsel %vm174, %v158, %v161
        %v179 = vsel %vm177, %v167, 2102212464
        %v180 = vsel %vm176, %v164, %v179
        %v181 = vsel %vm175, %v178, %v180
        %v182 = vsel %vm174, %v161, %v164
        %v183 = vsel %vm177, %v170, 920167782
        %v184 = vsel %vm176, %v167, %v183
        %v185 = vsel %vm175, %v182, %v184
        %v186 = vsel %vm174, %v164, %v167
        %v187 = vsel %vm177, %v173, 1326507024
        %v188 = vsel %vm176, %v170, %v187
        %v189 = vsel %vm175, %v186, %v188
        %v190 = vshll.u32 %v150, 8
        %v191 = vmul.u32.u64.compose %v190, %v189
        %v192 = vextract.low.u32 %v191
        %v193 = vextract.high.u32 %v191
        %v194 = vmul.u32.u64.compose %v190, %v185
        %v195 = vextract.low.u32 %v194
        %v196 = vextract.high.u32 %v194
        %v197 = vmul.u32 %v190, %v181
        %v198 = vadd.s32 %v193, %v195
        %vm199 = vc.u32 %v193, %v195
        %v200 = vadd.s32 %v196, 1
        %v201 = vsel %vm199, %v200, %v196
        %v202 = vadd.s32 %v197, %v201
        %v203 = vadd.s32 %v202, 536870912
        %v204 = vshrl.u32 %v203, 30
        %v205 = vshll.u32 %v204, 30
        %v206 = vsub.s32 %v202, %v205
        %vm207 = vcmp.lt.s32.totalorder %v206, 0
        %v208 = vsub.s32 0, %v206
        %v209 = vsel %vm207, %v208, %v206
        %v210 = vclz %v209
        %v211 = vsub.s32 %v210, 2
        %vm212 = vcmp.gt.s32.totalorder 0, %v211
        %v213 = vsel %vm212, 0, %v211
        %v214 = vsub.s32 32, %v213
        %v215 = vshll.u32 %v206, %v213
        %v216 = vshrl.u32 %v198, %v214
        %v217 = vor.u32 %v215, %v216
        %v218 = vsub.s32 4294967266, %v213
        %v219 = vadd.s32 %v218, 127
        %v220 = vshll.u32 %v219, 23
        %v221 = vor.u32 4788187, %v220
        %v222 = vand.u32 2147483647, %v221
        %v224 = vcvt.s32.f32 %v217
        %v225 = vmul.f32 %v224, %v222
        %v226 = vxor.u32 %v225, 2147483648
        %v227 = vsel %vm144, %v226, %v225
        %v228 = vsub.s32 4, %v204
        %v229 = vsel %vm144, %v228, %v204
        %v230 = vsel %vm143, %v141, %v227
        %v231 = vsel %vm143, 0, %v229
        %v232 = vcosq.f32.pop %v230
        %v233 = vsinq.f32.pop %v230
        %vm234 = vweird.f32 %v141
        %v235 = vadd.s32 %v231, 3
        %v236 = vand.u32 %v235, 3
        %vm237 = vcmp.lt.s32.totalorder %v236, 2
        %vm238 = vcmp.eq.s32.totalorder %v236, 0
        %v239 = vxor.u32 %v233, 2147483648
        %v240 = vsel %vm238, %v232, %v239
        %vm241 = vcmp.eq.s32.totalorder %v236, 2
        %v242 = vxor.u32 %v232, 2147483648
        %v243 = vsel %vm241, %v242, %v233
        %v244 = vsel %vm237, %v240, %v243
        %v245 = vsel %vm234, nan, %v244
        %v246 = vand.u32 2147483647, %v141
        %vm247 = vcmp.le.f32.partialorder %v246, 0.7853982
        %vm248 = vcmp.lt.s32.totalorder %v141, 0
        %v249 = vand.u32 %v141, 2139095040
        %v250 = vshrl.u32 %v249, 23
        %v251 = vsub.s32 %v250, 127
        %v252 = vand.u32 2147483647, %v141
        %v253 = vand.u32 %v252, 8388607
        %v254 = vor.u32 %v253, 8388608
        %v255 = vsub.s32 0, %v254
        %v256 = vadd.s32 %v251, 1
        %vm257 = vcmp.gt.s32.totalorder %v256, 0
        %v258 = vsel %vm257, %v256, 0
        %v259 = vshrl.u32 %v258, 5
        %v260 = vand.u32 %v258, 31
        %v261 = vsub.s32 32, %v260
        %v262 = vshrl.u32 683565275, %v261
        %v263 = vshll.u32 683565275, %v260
        %v264 = vshrl.u32 2475754826, %v261
        %v265 = vor.u32 %v263, %v264
        %v266 = vshll.u32 2475754826, %v260
        %v267 = vshrl.u32 2131351028, %v261
        %v268 = vor.u32 %v266, %v267
        %v269 = vshll.u32 2131351028, %v260
        %v270 = vshrl.u32 2102212464, %v261
        %v271 = vor.u32 %v269, %v270
        %v272 = vshll.u32 2102212464, %v260
        %v273 = vshrl.u32 920167782, %v261
        %v274 = vor.u32 %v272, %v273
        %v275 = vshll.u32 920167782, %v260
        %v276 = vshrl.u32 1326507024, %v261
        %v277 = vor.u32 %v275, %v276
        %vm278 = vcmp.lt.s32.totalorder %v259, 1
        %vm279 = vcmp.lt.s32.totalorder %v259, 2
        %vm280 = vcmp.lt.s32.totalorder %v259, 3
        %vm281 = vcmp.lt.s32.totalorder %v259, 4
        %v282 = vsel %vm278, %v262, %v265
        %v283 = vsel %vm281, %v271, 2102212464
        %v284 = vsel %vm280, %v268, %v283
        %v285 = vsel %vm279, %v282, %v284
        %v286 = vsel %vm278, %v265, %v268
        %v287 = vsel %vm281, %v274, 920167782
        %v288 = vsel %vm280, %v271, %v287
        %v289 = vsel %vm279, %v286, %v288
        %v290 = vsel %vm278, %v268, %v271
        %v291 = vsel %vm281, %v277, 1326507024
        %v292 = vsel %vm280, %v274, %v291
        %v293 = vsel %vm279, %v290, %v292
        %v294 = vshll.u32 %v254, 8
        %v295 = vmul.u32.u64.compose %v294, %v293
        %v296 = vextract.low.u32 %v295
        %v297 = vextract.high.u32 %v295
        %v298 = vmul.u32.u64.compose %v294, %v289
        %v299 = vextract.low.u32 %v298
        %v300 = vextract.high.u32 %v298
        %v301 = vmul.u32 %v294, %v285
        %v302 = vadd.s32 %v297, %v299
        %vm303 = vc.u32 %v297, %v299
        %v304 = vadd.s32 %v300, 1
        %v305 = vsel %vm303, %v304, %v300
        %v306 = vadd.s32 %v301, %v305
        %v307 = vadd.s32 %v306, 536870912
        %v308 = vshrl.u32 %v307, 30
        %v309 = vshll.u32 %v308, 30
        %v310 = vsub.s32 %v306, %v309
        %vm311 = vcmp.lt.s32.totalorder %v310, 0
        %v312 = vsub.s32 0, %v310
        %v313 = vsel %vm311, %v312, %v310
        %v314 = vclz %v313
        %v315 = vsub.s32 %v314, 2
        %vm316 = vcmp.gt.s32.totalorder 0, %v315
        %v317 = vsel %vm316, 0, %v315
        %v318 = vsub.s32 32, %v317
        %v319 = vshll.u32 %v310, %v317
        %v320 = vshrl.u32 %v302, %v318
        %v321 = vor.u32 %v319, %v320
        %v322 = vsub.s32 4294967266, %v317
        %v323 = vadd.s32 %v322, 127
        %v324 = vshll.u32 %v323, 23
        %v325 = vor.u32 4788187, %v324
        %v326 = vand.u32 2147483647, %v325
        %v328 = vcvt.s32.f32 %v321
        %v329 = vmul.f32 %v328, %v326
        %v330 = vxor.u32 %v329, 2147483648
        %v331 = vsel %vm248, %v330, %v329
        %v332 = vsub.s32 4, %v308
        %v333 = vsel %vm248, %v332, %v308
        %v334 = vsel %vm247, %v141, %v331
        %v335 = vsel %vm247, 0, %v333
        %v336 = vcosq.f32.pop %v334
        %v337 = vsinq.f32.pop %v334
        %vm338 = vweird.f32 %v141
        %v339 = vand.u32 %v335, 3
        %vm340 = vcmp.lt.s32.totalorder %v339, 2
        %vm341 = vcmp.eq.s32.totalorder %v339, 0
        %v342 = vxor.u32 %v337, 2147483648
        %v343 = vsel %vm341, %v336, %v342
        %vm344 = vcmp.eq.s32.totalorder %v339, 2
        %v345 = vxor.u32 %v336, 2147483648
        %v346 = vsel %vm344, %v345, %v337
        %v347 = vsel %vm340, %v343, %v346
        %v348 = vsel %vm338, nan, %v347
        %v351 = vunpack.c.l.s4 1966171168
        %v352 = vunpack.c.0.s8 %v351
        %v353 = vlaneseq
        %v354 = vshrl.u32 %v353, 7
        %v355 = vsub.s32 %v352, %v354
        %v356 = vrot.slane %v245, %v355
        %v357 = vcombine.high %v356, %v356
        %v359 = vunpack.c.l.s4 1966171168
        %v360 = vunpack.c.0.s8 %v359
        %v361 = vlaneseq
        %v362 = vshrl.u32 %v361, 7
        %v363 = vsub.s32 %v360, %v362
        %v364 = vrot.slane %v356, %v363
        %v366 = vunpack.c.l.s4 1966171168
        %v367 = vunpack.c.0.s8 %v366
        %v368 = vlaneseq
        %v369 = vshrl.u32 %v368, 7
        %v370 = vsub.s32 %v367, %v369
        %v371 = vrot.slane %v357, %v370
        %v372 = vcombine.high %v364, %v364
        %v375 = vunpack.c.l.s4 1966171168
        %v376 = vunpack.c.0.s8 %v375
        %v377 = vlaneseq
        %v378 = vshrl.u32 %v377, 7
        %v379 = vsub.s32 %v376, %v378
        %v380 = vrot.slane %v348, %v379
        %v381 = vcombine.high %v380, %v380
        %v383 = vunpack.c.l.s4 1966171168
        %v384 = vunpack.c.0.s8 %v383
        %v385 = vlaneseq
        %v386 = vshrl.u32 %v385, 7
        %v387 = vsub.s32 %v384, %v386
        %v388 = vrot.slane %v380, %v387
        %v390 = vunpack.c.l.s4 1966171168
        %v391 = vunpack.c.0.s8 %v390
        %v392 = vlaneseq
        %v393 = vshrl.u32 %v392, 7
        %v394 = vsub.s32 %v391, %v393
        %v395 = vrot.slane %v381, %v394
        %v396 = vcombine.high %v388, %v388
        %v397 = vlaneseq
        %v398 = vshrl.u32 %v397, 7
        %v399 = vsub.s32 0, %v398
        %v400 = vrot.slane %v364, %v399
        %v401 = vlaneseq
        %v402 = vshrl.u32 %v401, 7
        %v403 = vsub.s32 1, %v402
        %v404 = vrot.slane %v364, %v403
        %v405 = vlaneseq
        %v406 = vshrl.u32 %v405, 7
        %v407 = vsub.s32 0, %v406
        %v408 = vrot.slane %v371, %v407
        %v409 = vlaneseq
        %v410 = vshrl.u32 %v409, 7
        %v411 = vsub.s32 1, %v410
        %v412 = vrot.slane %v371, %v411
        %v413 = vlaneseq
        %v414 = vshrl.u32 %v413, 7
        %v415 = vsub.s32 0, %v414
        %v416 = vrot.slane %v372, %v415
        %v417 = vlaneseq
        %v418 = vshrl.u32 %v417, 7
        %v419 = vsub.s32 1, %v418
        %v420 = vrot.slane %v372, %v419
        %v427 = vlaneseq
        %v428 = vshrl.u32 %v427, 7
        %v429 = vsub.s32 0, %v428
        %v430 = vrot.slane %v388, %v429
        %v431 = vlaneseq
        %v432 = vshrl.u32 %v431, 7
        %v433 = vsub.s32 1, %v432
        %v434 = vrot.slane %v388, %v433
        %v435 = vlaneseq
        %v436 = vshrl.u32 %v435, 7
        %v437 = vsub.s32 0, %v436
        %v438 = vrot.slane %v395, %v437
        %v439 = vlaneseq
        %v440 = vshrl.u32 %v439, 7
        %v441 = vsub.s32 1, %v440
        %v442 = vrot.slane %v395, %v441
        %v443 = vlaneseq
        %v444 = vshrl.u32 %v443, 7
        %v445 = vsub.s32 0, %v444
        %v446 = vrot.slane %v396, %v445
        %v447 = vlaneseq
        %v448 = vshrl.u32 %v447, 7
        %v449 = vsub.s32 1, %v448
        %v450 = vrot.slane %v396, %v449
        %vm457 = vcmask 1040384
        %v458 = vsel %vm457, %v400, %v430
        %v459 = vsel %vm457, %v404, %v434
        %v460 = vsel %vm457, %v408, %v438
        %v461 = vsel %vm457, %v412, %v442
        %v462 = vsel %vm457, %v416, %v446
        %v463 = vsel %vm457, %v420, %v450
        %v470 = vcombine.low %v458, %v459
        %v472 = vunpack.c.l.s4 1983009808
        %v473 = vunpack.c.0.s8 %v472
        %v474 = vlaneseq
        %v475 = vshrl.u32 %v474, 7
        %v476 = vsub.s32 %v473, %v475
        %v477 = vrot.slane %v470, %v476
        %v478 = vcombine.low %v460, %v461
        %v480 = vunpack.c.l.s4 1983009808
        %v481 = vunpack.c.0.s8 %v480
        %v482 = vlaneseq
        %v483 = vshrl.u32 %v482, 7
        %v484 = vsub.s32 %v481, %v483
        %v485 = vrot.slane %v478, %v484
        %v486 = vcombine.low %v462, %v463
        %v488 = vunpack.c.l.s4 1983009808
        %v489 = vunpack.c.0.s8 %v488
        %v490 = vlaneseq
        %v491 = vshrl.u32 %v490, 7
        %v492 = vsub.s32 %v489, %v491
        %v493 = vrot.slane %v486, %v492
        %v494 = vcombine.low %v477, %v485
        %v496 = vunpack.c.l.s4 1983009808
        %v497 = vunpack.c.0.s8 %v496
        %v498 = vlaneseq
        %v499 = vshrl.u32 %v498, 7
        %v500 = vsub.s32 %v497, %v499
        %v501 = vrot.slane %v494, %v500
        %v503 = vunpack.c.l.s4 1983009808
        %v504 = vunpack.c.0.s8 %v503
        %v505 = vlaneseq
        %v506 = vshrl.u32 %v505, 7
        %v507 = vsub.s32 %v504, %v506
        %v508 = vrot.slane %v493, %v507
        %v509 = vcombine.low %v501, %v508
        %v510 = vcombine.high %v501, %v508
        %v511 = vrot.slane %v509, 5
        %v512 = vrot.slane %v510, 5
        %515 = vst [vmem:[%s132] sm:$0xf8] %v511
        %516 = vst [vmem:[%s132 + $0x8] sm:$0xf8] %v512
        %517 = vst [vmem:[%s132 + $0x10] sm:$0x1] %v511
        %518 = vst [vmem:[%s132 + $0x18] sm:$0x1] %v512
        %v519 = vmul.f32 %v135, 6.2831855
        %v520 = vand.u32 2147483647, %v519
        %vm521 = vcmp.le.f32.partialorder %v520, 0.7853982
        %vm522 = vcmp.lt.s32.totalorder %v519, 0
        %v523 = vand.u32 %v519, 2139095040
        %v524 = vshrl.u32 %v523, 23
        %v525 = vsub.s32 %v524, 127
        %v526 = vand.u32 2147483647, %v519
        %v527 = vand.u32 %v526, 8388607
        %v528 = vor.u32 %v527, 8388608
        %v529 = vsub.s32 0, %v528
        %v530 = vadd.s32 %v525, 1
        %vm531 = vcmp.gt.s32.totalorder %v530, 0
        %v532 = vsel %vm531, %v530, 0
        %v533 = vshrl.u32 %v532, 5
        %v534 = vand.u32 %v532, 31
        %v535 = vsub.s32 32, %v534
        %v536 = vshrl.u32 683565275, %v535
        %v537 = vshll.u32 683565275, %v534
        %v538 = vshrl.u32 2475754826, %v535
        %v539 = vor.u32 %v537, %v538
        %v540 = vshll.u32 2475754826, %v534
        %v541 = vshrl.u32 2131351028, %v535
        %v542 = vor.u32 %v540, %v541
        %v543 = vshll.u32 2131351028, %v534
        %v544 = vshrl.u32 2102212464, %v535
        %v545 = vor.u32 %v543, %v544
        %v546 = vshll.u32 2102212464, %v534
        %v547 = vshrl.u32 920167782, %v535
        %v548 = vor.u32 %v546, %v547
        %v549 = vshll.u32 920167782, %v534
        %v550 = vshrl.u32 1326507024, %v535
        %v551 = vor.u32 %v549, %v550
        %vm552 = vcmp.lt.s32.totalorder %v533, 1
        %vm553 = vcmp.lt.s32.totalorder %v533, 2
        %vm554 = vcmp.lt.s32.totalorder %v533, 3
        %vm555 = vcmp.lt.s32.totalorder %v533, 4
        %v556 = vsel %vm552, %v536, %v539
        %v557 = vsel %vm555, %v545, 2102212464
        %v558 = vsel %vm554, %v542, %v557
        %v559 = vsel %vm553, %v556, %v558
        %v560 = vsel %vm552, %v539, %v542
        %v561 = vsel %vm555, %v548, 920167782
        %v562 = vsel %vm554, %v545, %v561
        %v563 = vsel %vm553, %v560, %v562
        %v564 = vsel %vm552, %v542, %v545
        %v565 = vsel %vm555, %v551, 1326507024
        %v566 = vsel %vm554, %v548, %v565
        %v567 = vsel %vm553, %v564, %v566
        %v568 = vshll.u32 %v528, 8
        %v569 = vmul.u32.u64.compose %v568, %v567
        %v570 = vextract.low.u32 %v569
        %v571 = vextract.high.u32 %v569
        %v572 = vmul.u32.u64.compose %v568, %v563
        %v573 = vextract.low.u32 %v572
        %v574 = vextract.high.u32 %v572
        %v575 = vmul.u32 %v568, %v559
        %v576 = vadd.s32 %v571, %v573
        %vm577 = vc.u32 %v571, %v573
        %v578 = vadd.s32 %v574, 1
        %v579 = vsel %vm577, %v578, %v574
        %v580 = vadd.s32 %v575, %v579
        %v581 = vadd.s32 %v580, 536870912
        %v582 = vshrl.u32 %v581, 30
        %v583 = vshll.u32 %v582, 30
        %v584 = vsub.s32 %v580, %v583
        %vm585 = vcmp.lt.s32.totalorder %v584, 0
        %v586 = vsub.s32 0, %v584
        %v587 = vsel %vm585, %v586, %v584
        %v588 = vclz %v587
        %v589 = vsub.s32 %v588, 2
        %vm590 = vcmp.gt.s32.totalorder 0, %v589
        %v591 = vsel %vm590, 0, %v589
        %v592 = vsub.s32 32, %v591
        %v593 = vshll.u32 %v584, %v591
        %v594 = vshrl.u32 %v576, %v592
        %v595 = vor.u32 %v593, %v594
        %v596 = vsub.s32 4294967266, %v591
        %v597 = vadd.s32 %v596, 127
        %v598 = vshll.u32 %v597, 23
        %v599 = vor.u32 4788187, %v598
        %v600 = vand.u32 2147483647, %v599
        %v602 = vcvt.s32.f32 %v595
        %v603 = vmul.f32 %v602, %v600
        %v604 = vxor.u32 %v603, 2147483648
        %v605 = vsel %vm522, %v604, %v603
        %v606 = vsub.s32 4, %v582
        %v607 = vsel %vm522, %v606, %v582
        %v608 = vsel %vm521, %v519, %v605
        %v609 = vsel %vm521, 0, %v607
        %v610 = vcosq.f32.pop %v608
        %v611 = vsinq.f32.pop %v608
        %vm612 = vweird.f32 %v519
        %v613 = vadd.s32 %v609, 3
        %v614 = vand.u32 %v613, 3
        %vm615 = vcmp.lt.s32.totalorder %v614, 2
        %vm616 = vcmp.eq.s32.totalorder %v614, 0
        %v617 = vxor.u32 %v611, 2147483648
        %v618 = vsel %vm616, %v610, %v617
        %vm619 = vcmp.eq.s32.totalorder %v614, 2
        %v620 = vxor.u32 %v610, 2147483648
        %v621 = vsel %vm619, %v620, %v611
        %v622 = vsel %vm615, %v618, %v621
        %v623 = vsel %vm612, nan, %v622
        %v624 = vand.u32 2147483647, %v519
        %vm625 = vcmp.le.f32.partialorder %v624, 0.7853982
        %vm626 = vcmp.lt.s32.totalorder %v519, 0
        %v627 = vand.u32 %v519, 2139095040
        %v628 = vshrl.u32 %v627, 23
        %v629 = vsub.s32 %v628, 127
        %v630 = vand.u32 2147483647, %v519
        %v631 = vand.u32 %v630, 8388607
        %v632 = vor.u32 %v631, 8388608
        %v633 = vsub.s32 0, %v632
        %v634 = vadd.s32 %v629, 1
        %vm635 = vcmp.gt.s32.totalorder %v634, 0
        %v636 = vsel %vm635, %v634, 0
        %v637 = vshrl.u32 %v636, 5
        %v638 = vand.u32 %v636, 31
        %v639 = vsub.s32 32, %v638
        %v640 = vshrl.u32 683565275, %v639
        %v641 = vshll.u32 683565275, %v638
        %v642 = vshrl.u32 2475754826, %v639
        %v643 = vor.u32 %v641, %v642
        %v644 = vshll.u32 2475754826, %v638
        %v645 = vshrl.u32 2131351028, %v639
        %v646 = vor.u32 %v644, %v645
        %v647 = vshll.u32 2131351028, %v638
        %v648 = vshrl.u32 2102212464, %v639
        %v649 = vor.u32 %v647, %v648
        %v650 = vshll.u32 2102212464, %v638
        %v651 = vshrl.u32 920167782, %v639
        %v652 = vor.u32 %v650, %v651
        %v653 = vshll.u32 920167782, %v638
        %v654 = vshrl.u32 1326507024, %v639
        %v655 = vor.u32 %v653, %v654
        %vm656 = vcmp.lt.s32.totalorder %v637, 1
        %vm657 = vcmp.lt.s32.totalorder %v637, 2
        %vm658 = vcmp.lt.s32.totalorder %v637, 3
        %vm659 = vcmp.lt.s32.totalorder %v637, 4
        %v660 = vsel %vm656, %v640, %v643
        %v661 = vsel %vm659, %v649, 2102212464
        %v662 = vsel %vm658, %v646, %v661
        %v663 = vsel %vm657, %v660, %v662
        %v664 = vsel %vm656, %v643, %v646
        %v665 = vsel %vm659, %v652, 920167782
        %v666 = vsel %vm658, %v649, %v665
        %v667 = vsel %vm657, %v664, %v666
        %v668 = vsel %vm656, %v646, %v649
        %v669 = vsel %vm659, %v655, 1326507024
        %v670 = vsel %vm658, %v652, %v669
        %v671 = vsel %vm657, %v668, %v670
        %v672 = vshll.u32 %v632, 8
        %v673 = vmul.u32.u64.compose %v672, %v671
        %v674 = vextract.low.u32 %v673
        %v675 = vextract.high.u32 %v673
        %v676 = vmul.u32.u64.compose %v672, %v667
        %v677 = vextract.low.u32 %v676
        %v678 = vextract.high.u32 %v676
        %v679 = vmul.u32 %v672, %v663
        %v680 = vadd.s32 %v675, %v677
        %vm681 = vc.u32 %v675, %v677
        %v682 = vadd.s32 %v678, 1
        %v683 = vsel %vm681, %v682, %v678
        %v684 = vadd.s32 %v679, %v683
        %v685 = vadd.s32 %v684, 536870912
        %v686 = vshrl.u32 %v685, 30
        %v687 = vshll.u32 %v686, 30
        %v688 = vsub.s32 %v684, %v687
        %vm689 = vcmp.lt.s32.totalorder %v688, 0
        %v690 = vsub.s32 0, %v688
        %v691 = vsel %vm689, %v690, %v688
        %v692 = vclz %v691
        %v693 = vsub.s32 %v692, 2
        %vm694 = vcmp.gt.s32.totalorder 0, %v693
        %v695 = vsel %vm694, 0, %v693
        %v696 = vsub.s32 32, %v695
        %v697 = vshll.u32 %v688, %v695
        %v698 = vshrl.u32 %v680, %v696
        %v699 = vor.u32 %v697, %v698
        %v700 = vsub.s32 4294967266, %v695
        %v701 = vadd.s32 %v700, 127
        %v702 = vshll.u32 %v701, 23
        %v703 = vor.u32 4788187, %v702
        %v704 = vand.u32 2147483647, %v703
        %v706 = vcvt.s32.f32 %v699
        %v707 = vmul.f32 %v706, %v704
        %v708 = vxor.u32 %v707, 2147483648
        %v709 = vsel %vm626, %v708, %v707
        %v710 = vsub.s32 4, %v686
        %v711 = vsel %vm626, %v710, %v686
        %v712 = vsel %vm625, %v519, %v709
        %v713 = vsel %vm625, 0, %v711
        %v714 = vcosq.f32.pop %v712
        %v715 = vsinq.f32.pop %v712
        %vm716 = vweird.f32 %v519
        %v717 = vand.u32 %v713, 3
        %vm718 = vcmp.lt.s32.totalorder %v717, 2
        %vm719 = vcmp.eq.s32.totalorder %v717, 0
        %v720 = vxor.u32 %v715, 2147483648
        %v721 = vsel %vm719, %v714, %v720
        %vm722 = vcmp.eq.s32.totalorder %v717, 2
        %v723 = vxor.u32 %v714, 2147483648
        %v724 = vsel %vm722, %v723, %v715
        %v725 = vsel %vm718, %v721, %v724
        %v726 = vsel %vm716, nan, %v725
        %v729 = vunpack.c.l.s4 1966171168
        %v730 = vunpack.c.0.s8 %v729
        %v731 = vlaneseq
        %v732 = vshrl.u32 %v731, 7
        %v733 = vsub.s32 %v730, %v732
        %v734 = vrot.slane %v623, %v733
        %v735 = vcombine.high %v734, %v734
        %v737 = vunpack.c.l.s4 1966171168
        %v738 = vunpack.c.0.s8 %v737
        %v739 = vlaneseq
        %v740 = vshrl.u32 %v739, 7
        %v741 = vsub.s32 %v738, %v740
        %v742 = vrot.slane %v734, %v741
        %v744 = vunpack.c.l.s4 1966171168
        %v745 = vunpack.c.0.s8 %v744
        %v746 = vlaneseq
        %v747 = vshrl.u32 %v746, 7
        %v748 = vsub.s32 %v745, %v747
        %v749 = vrot.slane %v735, %v748
        %v750 = vcombine.high %v742, %v742
        %v753 = vunpack.c.l.s4 1966171168
        %v754 = vunpack.c.0.s8 %v753
        %v755 = vlaneseq
        %v756 = vshrl.u32 %v755, 7
        %v757 = vsub.s32 %v754, %v756
        %v758 = vrot.slane %v726, %v757
        %v759 = vcombine.high %v758, %v758
        %v761 = vunpack.c.l.s4 1966171168
        %v762 = vunpack.c.0.s8 %v761
        %v763 = vlaneseq
        %v764 = vshrl.u32 %v763, 7
        %v765 = vsub.s32 %v762, %v764
        %v766 = vrot.slane %v758, %v765
        %v768 = vunpack.c.l.s4 1966171168
        %v769 = vunpack.c.0.s8 %v768
        %v770 = vlaneseq
        %v771 = vshrl.u32 %v770, 7
        %v772 = vsub.s32 %v769, %v771
        %v773 = vrot.slane %v759, %v772
        %v774 = vcombine.high %v766, %v766
        %v775 = vlaneseq
        %v776 = vshrl.u32 %v775, 7
        %v777 = vsub.s32 0, %v776
        %v778 = vrot.slane %v742, %v777
        %v779 = vlaneseq
        %v780 = vshrl.u32 %v779, 7
        %v781 = vsub.s32 1, %v780
        %v782 = vrot.slane %v742, %v781
        %v783 = vlaneseq
        %v784 = vshrl.u32 %v783, 7
        %v785 = vsub.s32 0, %v784
        %v786 = vrot.slane %v749, %v785
        %v787 = vlaneseq
        %v788 = vshrl.u32 %v787, 7
        %v789 = vsub.s32 1, %v788
        %v790 = vrot.slane %v749, %v789
        %v791 = vlaneseq
        %v792 = vshrl.u32 %v791, 7
        %v793 = vsub.s32 0, %v792
        %v794 = vrot.slane %v750, %v793
        %v795 = vlaneseq
        %v796 = vshrl.u32 %v795, 7
        %v797 = vsub.s32 1, %v796
        %v798 = vrot.slane %v750, %v797
        %v805 = vlaneseq
        %v806 = vshrl.u32 %v805, 7
        %v807 = vsub.s32 0, %v806
        %v808 = vrot.slane %v766, %v807
        %v809 = vlaneseq
        %v810 = vshrl.u32 %v809, 7
        %v811 = vsub.s32 1, %v810
        %v812 = vrot.slane %v766, %v811
        %v813 = vlaneseq
        %v814 = vshrl.u32 %v813, 7
        %v815 = vsub.s32 0, %v814
        %v816 = vrot.slane %v773, %v815
        %v817 = vlaneseq
        %v818 = vshrl.u32 %v817, 7
        %v819 = vsub.s32 1, %v818
        %v820 = vrot.slane %v773, %v819
        %v821 = vlaneseq
        %v822 = vshrl.u32 %v821, 7
        %v823 = vsub.s32 0, %v822
        %v824 = vrot.slane %v774, %v823
        %v825 = vlaneseq
        %v826 = vshrl.u32 %v825, 7
        %v827 = vsub.s32 1, %v826
        %v828 = vrot.slane %v774, %v827
        %v835 = vsel %vm457, %v778, %v808
        %v836 = vsel %vm457, %v782, %v812
        %v837 = vsel %vm457, %v786, %v816
        %v838 = vsel %vm457, %v790, %v820
        %v839 = vsel %vm457, %v794, %v824
        %v840 = vsel %vm457, %v798, %v828
        %v847 = vcombine.low %v835, %v836
        %v849 = vunpack.c.l.s4 1983009808
        %v850 = vunpack.c.0.s8 %v849
        %v851 = vlaneseq
        %v852 = vshrl.u32 %v851, 7
        %v853 = vsub.s32 %v850, %v852
        %v854 = vrot.slane %v847, %v853
        %v855 = vcombine.low %v837, %v838
        %v857 = vunpack.c.l.s4 1983009808
        %v858 = vunpack.c.0.s8 %v857
        %v859 = vlaneseq
        %v860 = vshrl.u32 %v859, 7
        %v861 = vsub.s32 %v858, %v860
        %v862 = vrot.slane %v855, %v861
        %v863 = vcombine.low %v839, %v840
        %v865 = vunpack.c.l.s4 1983009808
        %v866 = vunpack.c.0.s8 %v865
        %v867 = vlaneseq
        %v868 = vshrl.u32 %v867, 7
        %v869 = vsub.s32 %v866, %v868
        %v870 = vrot.slane %v863, %v869
        %v871 = vcombine.low %v854, %v862
        %v873 = vunpack.c.l.s4 1983009808
        %v874 = vunpack.c.0.s8 %v873
        %v875 = vlaneseq
        %v876 = vshrl.u32 %v875, 7
        %v877 = vsub.s32 %v874, %v876
        %v878 = vrot.slane %v871, %v877
        %v880 = vunpack.c.l.s4 1983009808
        %v881 = vunpack.c.0.s8 %v880
        %v882 = vlaneseq
        %v883 = vshrl.u32 %v882, 7
        %v884 = vsub.s32 %v881, %v883
        %v885 = vrot.slane %v870, %v884
        %v886 = vcombine.low %v878, %v885
        %v887 = vcombine.high %v878, %v885
        %v888 = vrot.slane %v886, 7
        %v889 = vrot.slane %v887, 7
        %892 = vst [vmem:[%s132 + $0x10] sm:$0x7e] %v888
        %893 = vst [vmem:[%s132 + $0x18] sm:$0x7e] %v889
        %v894 = vmul.f32 %v135, 12.566371
        %v895 = vand.u32 2147483647, %v894
        %vm896 = vcmp.le.f32.partialorder %v895, 0.7853982
        %vm897 = vcmp.lt.s32.totalorder %v894, 0
        %v898 = vand.u32 %v894, 2139095040
        %v899 = vshrl.u32 %v898, 23
        %v900 = vsub.s32 %v899, 127
        %v901 = vand.u32 2147483647, %v894
        %v902 = vand.u32 %v901, 8388607
        %v903 = vor.u32 %v902, 8388608
        %v904 = vsub.s32 0, %v903
        %v905 = vadd.s32 %v900, 1
        %vm906 = vcmp.gt.s32.totalorder %v905, 0
        %v907 = vsel %vm906, %v905, 0
        %v908 = vshrl.u32 %v907, 5
        %v909 = vand.u32 %v907, 31
        %v910 = vsub.s32 32, %v909
        %v911 = vshrl.u32 683565275, %v910
        %v912 = vshll.u32 683565275, %v909
        %v913 = vshrl.u32 2475754826, %v910
        %v914 = vor.u32 %v912, %v913
        %v915 = vshll.u32 2475754826, %v909
        %v916 = vshrl.u32 2131351028, %v910
        %v917 = vor.u32 %v915, %v916
        %v918 = vshll.u32 2131351028, %v909
        %v919 = vshrl.u32 2102212464, %v910
        %v920 = vor.u32 %v918, %v919
        %v921 = vshll.u32 2102212464, %v909
        %v922 = vshrl.u32 920167782, %v910
        %v923 = vor.u32 %v921, %v922
        %v924 = vshll.u32 920167782, %v909
        %v925 = vshrl.u32 1326507024, %v910
        %v926 = vor.u32 %v924, %v925
        %vm927 = vcmp.lt.s32.totalorder %v908, 1
        %vm928 = vcmp.lt.s32.totalorder %v908, 2
        %vm929 = vcmp.lt.s32.totalorder %v908, 3
        %vm930 = vcmp.lt.s32.totalorder %v908, 4
        %v931 = vsel %vm927, %v911, %v914
        %v932 = vsel %vm930, %v920, 2102212464
        %v933 = vsel %vm929, %v917, %v932
        %v934 = vsel %vm928, %v931, %v933
        %v935 = vsel %vm927, %v914, %v917
        %v936 = vsel %vm930, %v923, 920167782
        %v937 = vsel %vm929, %v920, %v936
        %v938 = vsel %vm928, %v935, %v937
        %v939 = vsel %vm927, %v917, %v920
        %v940 = vsel %vm930, %v926, 1326507024
        %v941 = vsel %vm929, %v923, %v940
        %v942 = vsel %vm928, %v939, %v941
        %v943 = vshll.u32 %v903, 8
        %v944 = vmul.u32.u64.compose %v943, %v942
        %v945 = vextract.low.u32 %v944
        %v946 = vextract.high.u32 %v944
        %v947 = vmul.u32.u64.compose %v943, %v938
        %v948 = vextract.low.u32 %v947
        %v949 = vextract.high.u32 %v947
        %v950 = vmul.u32 %v943, %v934
        %v951 = vadd.s32 %v946, %v948
        %vm952 = vc.u32 %v946, %v948
        %v953 = vadd.s32 %v949, 1
        %v954 = vsel %vm952, %v953, %v949
        %v955 = vadd.s32 %v950, %v954
        %v956 = vadd.s32 %v955, 536870912
        %v957 = vshrl.u32 %v956, 30
        %v958 = vshll.u32 %v957, 30
        %v959 = vsub.s32 %v955, %v958
        %vm960 = vcmp.lt.s32.totalorder %v959, 0
        %v961 = vsub.s32 0, %v959
        %v962 = vsel %vm960, %v961, %v959
        %v963 = vclz %v962
        %v964 = vsub.s32 %v963, 2
        %vm965 = vcmp.gt.s32.totalorder 0, %v964
        %v966 = vsel %vm965, 0, %v964
        %v967 = vsub.s32 32, %v966
        %v968 = vshll.u32 %v959, %v966
        %v969 = vshrl.u32 %v951, %v967
        %v970 = vor.u32 %v968, %v969
        %v971 = vsub.s32 4294967266, %v966
        %v972 = vadd.s32 %v971, 127
        %v973 = vshll.u32 %v972, 23
        %v974 = vor.u32 4788187, %v973
        %v975 = vand.u32 2147483647, %v974
        %v977 = vcvt.s32.f32 %v970
        %v978 = vmul.f32 %v977, %v975
        %v979 = vxor.u32 %v978, 2147483648
        %v980 = vsel %vm897, %v979, %v978
        %v981 = vsub.s32 4, %v957
        %v982 = vsel %vm897, %v981, %v957
        %v983 = vsel %vm896, %v894, %v980
        %v984 = vsel %vm896, 0, %v982
        %v985 = vcosq.f32.pop %v983
        %v986 = vsinq.f32.pop %v983
        %vm987 = vweird.f32 %v894
        %v988 = vadd.s32 %v984, 3
        %v989 = vand.u32 %v988, 3
        %vm990 = vcmp.lt.s32.totalorder %v989, 2
        %vm991 = vcmp.eq.s32.totalorder %v989, 0
        %v992 = vxor.u32 %v986, 2147483648
        %v993 = vsel %vm991, %v985, %v992
        %vm994 = vcmp.eq.s32.totalorder %v989, 2
        %v995 = vxor.u32 %v985, 2147483648
        %v996 = vsel %vm994, %v995, %v986
        %v997 = vsel %vm990, %v993, %v996
        %v998 = vsel %vm987, nan, %v997
        %v999 = vand.u32 2147483647, %v894
        %vm1000 = vcmp.le.f32.partialorder %v999, 0.7853982
        %vm1001 = vcmp.lt.s32.totalorder %v894, 0
        %v1002 = vand.u32 %v894, 2139095040
        %v1003 = vshrl.u32 %v1002, 23
        %v1004 = vsub.s32 %v1003, 127
        %v1005 = vand.u32 2147483647, %v894
        %v1006 = vand.u32 %v1005, 8388607
        %v1007 = vor.u32 %v1006, 8388608
        %v1008 = vsub.s32 0, %v1007
        %v1009 = vadd.s32 %v1004, 1
        %vm1010 = vcmp.gt.s32.totalorder %v1009, 0
        %v1011 = vsel %vm1010, %v1009, 0
        %v1012 = vshrl.u32 %v1011, 5
        %v1013 = vand.u32 %v1011, 31
        %v1014 = vsub.s32 32, %v1013
        %v1015 = vshrl.u32 683565275, %v1014
        %v1016 = vshll.u32 683565275, %v1013
        %v1017 = vshrl.u32 2475754826, %v1014
        %v1018 = vor.u32 %v1016, %v1017
        %v1019 = vshll.u32 2475754826, %v1013
        %v1020 = vshrl.u32 2131351028, %v1014
        %v1021 = vor.u32 %v1019, %v1020
        %v1022 = vshll.u32 2131351028, %v1013
        %v1023 = vshrl.u32 2102212464, %v1014
        %v1024 = vor.u32 %v1022, %v1023
        %v1025 = vshll.u32 2102212464, %v1013
        %v1026 = vshrl.u32 920167782, %v1014
        %v1027 = vor.u32 %v1025, %v1026
        %v1028 = vshll.u32 920167782, %v1013
        %v1029 = vshrl.u32 1326507024, %v1014
        %v1030 = vor.u32 %v1028, %v1029
        %vm1031 = vcmp.lt.s32.totalorder %v1012, 1
        %vm1032 = vcmp.lt.s32.totalorder %v1012, 2
        %vm1033 = vcmp.lt.s32.totalorder %v1012, 3
        %vm1034 = vcmp.lt.s32.totalorder %v1012, 4
        %v1035 = vsel %vm1031, %v1015, %v1018
        %v1036 = vsel %vm1034, %v1024, 2102212464
        %v1037 = vsel %vm1033, %v1021, %v1036
        %v1038 = vsel %vm1032, %v1035, %v1037
        %v1039 = vsel %vm1031, %v1018, %v1021
        %v1040 = vsel %vm1034, %v1027, 920167782
        %v1041 = vsel %vm1033, %v1024, %v1040
        %v1042 = vsel %vm1032, %v1039, %v1041
        %v1043 = vsel %vm1031, %v1021, %v1024
        %v1044 = vsel %vm1034, %v1030, 1326507024
        %v1045 = vsel %vm1033, %v1027, %v1044
        %v1046 = vsel %vm1032, %v1043, %v1045
        %v1047 = vshll.u32 %v1007, 8
        %v1048 = vmul.u32.u64.compose %v1047, %v1046
        %v1049 = vextract.low.u32 %v1048
        %v1050 = vextract.high.u32 %v1048
        %v1051 = vmul.u32.u64.compose %v1047, %v1042
        %v1052 = vextract.low.u32 %v1051
        %v1053 = vextract.high.u32 %v1051
        %v1054 = vmul.u32 %v1047, %v1038
        %v1055 = vadd.s32 %v1050, %v1052
        %vm1056 = vc.u32 %v1050, %v1052
        %v1057 = vadd.s32 %v1053, 1
        %v1058 = vsel %vm1056, %v1057, %v1053
        %v1059 = vadd.s32 %v1054, %v1058
        %v1060 = vadd.s32 %v1059, 536870912
        %v1061 = vshrl.u32 %v1060, 30
        %v1062 = vshll.u32 %v1061, 30
        %v1063 = vsub.s32 %v1059, %v1062
        %vm1064 = vcmp.lt.s32.totalorder %v1063, 0
        %v1065 = vsub.s32 0, %v1063
        %v1066 = vsel %vm1064, %v1065, %v1063
        %v1067 = vclz %v1066
        %v1068 = vsub.s32 %v1067, 2
        %vm1069 = vcmp.gt.s32.totalorder 0, %v1068
        %v1070 = vsel %vm1069, 0, %v1068
        %v1071 = vsub.s32 32, %v1070
        %v1072 = vshll.u32 %v1063, %v1070
        %v1073 = vshrl.u32 %v1055, %v1071
        %v1074 = vor.u32 %v1072, %v1073
        %v1075 = vsub.s32 4294967266, %v1070
        %v1076 = vadd.s32 %v1075, 127
        %v1077 = vshll.u32 %v1076, 23
        %v1078 = vor.u32 4788187, %v1077
        %v1079 = vand.u32 2147483647, %v1078
        %v1081 = vcvt.s32.f32 %v1074
        %v1082 = vmul.f32 %v1081, %v1079
        %v1083 = vxor.u32 %v1082, 2147483648
        %v1084 = vsel %vm1001, %v1083, %v1082
        %v1085 = vsub.s32 4, %v1061
        %v1086 = vsel %vm1001, %v1085, %v1061
        %v1087 = vsel %vm1000, %v894, %v1084
        %v1088 = vsel %vm1000, 0, %v1086
        %v1089 = vcosq.f32.pop %v1087
        %v1090 = vsinq.f32.pop %v1087
        %vm1091 = vweird.f32 %v894
        %v1092 = vand.u32 %v1088, 3
        %vm1093 = vcmp.lt.s32.totalorder %v1092, 2
        %vm1094 = vcmp.eq.s32.totalorder %v1092, 0
        %v1095 = vxor.u32 %v1090, 2147483648
        %v1096 = vsel %vm1094, %v1089, %v1095
        %vm1097 = vcmp.eq.s32.totalorder %v1092, 2
        %v1098 = vxor.u32 %v1089, 2147483648
        %v1099 = vsel %vm1097, %v1098, %v1090
        %v1100 = vsel %vm1093, %v1096, %v1099
        %v1101 = vsel %vm1091, nan, %v1100
        %v1104 = vunpack.c.l.s4 1966171168
        %v1105 = vunpack.c.0.s8 %v1104
        %v1106 = vlaneseq
        %v1107 = vshrl.u32 %v1106, 7
        %v1108 = vsub.s32 %v1105, %v1107
        %v1109 = vrot.slane %v998, %v1108
        %v1110 = vcombine.high %v1109, %v1109
        %v1112 = vunpack.c.l.s4 1966171168
        %v1113 = vunpack.c.0.s8 %v1112
        %v1114 = vlaneseq
        %v1115 = vshrl.u32 %v1114, 7
        %v1116 = vsub.s32 %v1113, %v1115
        %v1117 = vrot.slane %v1109, %v1116
        %v1119 = vunpack.c.l.s4 1966171168
        %v1120 = vunpack.c.0.s8 %v1119
        %v1121 = vlaneseq
        %v1122 = vshrl.u32 %v1121, 7
        %v1123 = vsub.s32 %v1120, %v1122
        %v1124 = vrot.slane %v1110, %v1123
        %v1125 = vcombine.high %v1117, %v1117
        %v1128 = vunpack.c.l.s4 1966171168
        %v1129 = vunpack.c.0.s8 %v1128
        %v1130 = vlaneseq
        %v1131 = vshrl.u32 %v1130, 7
        %v1132 = vsub.s32 %v1129, %v1131
        %v1133 = vrot.slane %v1101, %v1132
        %v1134 = vcombine.high %v1133, %v1133
        %v1136 = vunpack.c.l.s4 1966171168
        %v1137 = vunpack.c.0.s8 %v1136
        %v1138 = vlaneseq
        %v1139 = vshrl.u32 %v1138, 7
        %v1140 = vsub.s32 %v1137, %v1139
        %v1141 = vrot.slane %v1133, %v1140
        %v1143 = vunpack.c.l.s4 1966171168
        %v1144 = vunpack.c.0.s8 %v1143
        %v1145 = vlaneseq
        %v1146 = vshrl.u32 %v1145, 7
        %v1147 = vsub.s32 %v1144, %v1146
        %v1148 = vrot.slane %v1134, %v1147
        %v1149 = vcombine.high %v1141, %v1141
        %v1150 = vlaneseq
        %v1151 = vshrl.u32 %v1150, 7
        %v1152 = vsub.s32 0, %v1151
        %v1153 = vrot.slane %v1117, %v1152
        %v1154 = vlaneseq
        %v1155 = vshrl.u32 %v1154, 7
        %v1156 = vsub.s32 1, %v1155
        %v1157 = vrot.slane %v1117, %v1156
        %v1158 = vlaneseq
        %v1159 = vshrl.u32 %v1158, 7
        %v1160 = vsub.s32 0, %v1159
        %v1161 = vrot.slane %v1124, %v1160
        %v1162 = vlaneseq
        %v1163 = vshrl.u32 %v1162, 7
        %v1164 = vsub.s32 1, %v1163
        %v1165 = vrot.slane %v1124, %v1164
        %v1166 = vlaneseq
        %v1167 = vshrl.u32 %v1166, 7
        %v1168 = vsub.s32 0, %v1167
        %v1169 = vrot.slane %v1125, %v1168
        %v1170 = vlaneseq
        %v1171 = vshrl.u32 %v1170, 7
        %v1172 = vsub.s32 1, %v1171
        %v1173 = vrot.slane %v1125, %v1172
        %v1180 = vlaneseq
        %v1181 = vshrl.u32 %v1180, 7
        %v1182 = vsub.s32 0, %v1181
        %v1183 = vrot.slane %v1141, %v1182
        %v1184 = vlaneseq
        %v1185 = vshrl.u32 %v1184, 7
        %v1186 = vsub.s32 1, %v1185
        %v1187 = vrot.slane %v1141, %v1186
        %v1188 = vlaneseq
        %v1189 = vshrl.u32 %v1188, 7
        %v1190 = vsub.s32 0, %v1189
        %v1191 = vrot.slane %v1148, %v1190
        %v1192 = vlaneseq
        %v1193 = vshrl.u32 %v1192, 7
        %v1194 = vsub.s32 1, %v1193
        %v1195 = vrot.slane %v1148, %v1194
        %v1196 = vlaneseq
        %v1197 = vshrl.u32 %v1196, 7
        %v1198 = vsub.s32 0, %v1197
        %v1199 = vrot.slane %v1149, %v1198
        %v1200 = vlaneseq
        %v1201 = vshrl.u32 %v1200, 7
        %v1202 = vsub.s32 1, %v1201
        %v1203 = vrot.slane %v1149, %v1202
        %v1210 = vsel %vm457, %v1153, %v1183
        %v1211 = vsel %vm457, %v1157, %v1187
        %v1212 = vsel %vm457, %v1161, %v1191
        %v1213 = vsel %vm457, %v1165, %v1195
        %v1214 = vsel %vm457, %v1169, %v1199
        %v1215 = vsel %vm457, %v1173, %v1203
        %v1222 = vcombine.low %v1210, %v1211
        %v1224 = vunpack.c.l.s4 1983009808
        %v1225 = vunpack.c.0.s8 %v1224
        %v1226 = vlaneseq
        %v1227 = vshrl.u32 %v1226, 7
        %v1228 = vsub.s32 %v1225, %v1227
        %v1229 = vrot.slane %v1222, %v1228
        %v1230 = vcombine.low %v1212, %v1213
        %v1232 = vunpack.c.l.s4 1983009808
        %v1233 = vunpack.c.0.s8 %v1232
        %v1234 = vlaneseq
        %v1235 = vshrl.u32 %v1234, 7
        %v1236 = vsub.s32 %v1233, %v1235
        %v1237 = vrot.slane %v1230, %v1236
        %v1238 = vcombine.low %v1214, %v1215
        %v1240 = vunpack.c.l.s4 1983009808
        %v1241 = vunpack.c.0.s8 %v1240
        %v1242 = vlaneseq
        %v1243 = vshrl.u32 %v1242, 7
        %v1244 = vsub.s32 %v1241, %v1243
        %v1245 = vrot.slane %v1238, %v1244
        %v1246 = vcombine.low %v1229, %v1237
        %v1248 = vunpack.c.l.s4 1983009808
        %v1249 = vunpack.c.0.s8 %v1248
        %v1250 = vlaneseq
        %v1251 = vshrl.u32 %v1250, 7
        %v1252 = vsub.s32 %v1249, %v1251
        %v1253 = vrot.slane %v1246, %v1252
        %v1255 = vunpack.c.l.s4 1983009808
        %v1256 = vunpack.c.0.s8 %v1255
        %v1257 = vlaneseq
        %v1258 = vshrl.u32 %v1257, 7
        %v1259 = vsub.s32 %v1256, %v1258
        %v1260 = vrot.slane %v1245, %v1259
        %v1261 = vcombine.low %v1253, %v1260
        %v1262 = vcombine.high %v1253, %v1260
        %v1263 = vrot.slane %v1261, 1
        %v1264 = vrot.slane %v1262, 1
        %1267 = vst [vmem:[%s132 + $0x10] sm:$0x80] %v1263
        %1268 = vst [vmem:[%s132 + $0x18] sm:$0x80] %v1264
        %1269 = vst [vmem:[%s132 + $0x20] sm:$0x1f] %v1263
        %1270 = vst [vmem:[%s132 + $0x28] sm:$0x1f] %v1264
        %v1271 = vmul.f32 %v135, 25.132742
        %v1272 = vand.u32 2147483647, %v1271
        %vm1273 = vcmp.le.f32.partialorder %v1272, 0.7853982
        %vm1274 = vcmp.lt.s32.totalorder %v1271, 0
        %v1275 = vand.u32 %v1271, 2139095040
        %v1276 = vshrl.u32 %v1275, 23
        %v1277 = vsub.s32 %v1276, 127
        %v1278 = vand.u32 2147483647, %v1271
        %v1279 = vand.u32 %v1278, 8388607
        %v1280 = vor.u32 %v1279, 8388608
        %v1281 = vsub.s32 0, %v1280
        %v1282 = vadd.s32 %v1277, 1
        %vm1283 = vcmp.gt.s32.totalorder %v1282, 0
        %v1284 = vsel %vm1283, %v1282, 0
        %v1285 = vshrl.u32 %v1284, 5
        %v1286 = vand.u32 %v1284, 31
        %v1287 = vsub.s32 32, %v1286
        %v1288 = vshrl.u32 683565275, %v1287
        %v1289 = vshll.u32 683565275, %v1286
        %v1290 = vshrl.u32 2475754826, %v1287
        %v1291 = vor.u32 %v1289, %v1290
        %v1292 = vshll.u32 2475754826, %v1286
        %v1293 = vshrl.u32 2131351028, %v1287
        %v1294 = vor.u32 %v1292, %v1293
        %v1295 = vshll.u32 2131351028, %v1286
        %v1296 = vshrl.u32 2102212464, %v1287
        %v1297 = vor.u32 %v1295, %v1296
        %v1298 = vshll.u32 2102212464, %v1286
        %v1299 = vshrl.u32 920167782, %v1287
        %v1300 = vor.u32 %v1298, %v1299
        %v1301 = vshll.u32 920167782, %v1286
        %v1302 = vshrl.u32 1326507024, %v1287
        %v1303 = vor.u32 %v1301, %v1302
        %vm1304 = vcmp.lt.s32.totalorder %v1285, 1
        %vm1305 = vcmp.lt.s32.totalorder %v1285, 2
        %vm1306 = vcmp.lt.s32.totalorder %v1285, 3
        %vm1307 = vcmp.lt.s32.totalorder %v1285, 4
        %v1308 = vsel %vm1304, %v1288, %v1291
        %v1309 = vsel %vm1307, %v1297, 2102212464
        %v1310 = vsel %vm1306, %v1294, %v1309
        %v1311 = vsel %vm1305, %v1308, %v1310
        %v1312 = vsel %vm1304, %v1291, %v1294
        %v1313 = vsel %vm1307, %v1300, 920167782
        %v1314 = vsel %vm1306, %v1297, %v1313
        %v1315 = vsel %vm1305, %v1312, %v1314
        %v1316 = vsel %vm1304, %v1294, %v1297
        %v1317 = vsel %vm1307, %v1303, 1326507024
        %v1318 = vsel %vm1306, %v1300, %v1317
        %v1319 = vsel %vm1305, %v1316, %v1318
        %v1320 = vshll.u32 %v1280, 8
        %v1321 = vmul.u32.u64.compose %v1320, %v1319
        %v1322 = vextract.low.u32 %v1321
        %v1323 = vextract.high.u32 %v1321
        %v1324 = vmul.u32.u64.compose %v1320, %v1315
        %v1325 = vextract.low.u32 %v1324
        %v1326 = vextract.high.u32 %v1324
        %v1327 = vmul.u32 %v1320, %v1311
        %v1328 = vadd.s32 %v1323, %v1325
        %vm1329 = vc.u32 %v1323, %v1325
        %v1330 = vadd.s32 %v1326, 1
        %v1331 = vsel %vm1329, %v1330, %v1326
        %v1332 = vadd.s32 %v1327, %v1331
        %v1333 = vadd.s32 %v1332, 536870912
        %v1334 = vshrl.u32 %v1333, 30
        %v1335 = vshll.u32 %v1334, 30
        %v1336 = vsub.s32 %v1332, %v1335
        %vm1337 = vcmp.lt.s32.totalorder %v1336, 0
        %v1338 = vsub.s32 0, %v1336
        %v1339 = vsel %vm1337, %v1338, %v1336
        %v1340 = vclz %v1339
        %v1341 = vsub.s32 %v1340, 2
        %vm1342 = vcmp.gt.s32.totalorder 0, %v1341
        %v1343 = vsel %vm1342, 0, %v1341
        %v1344 = vsub.s32 32, %v1343
        %v1345 = vshll.u32 %v1336, %v1343
        %v1346 = vshrl.u32 %v1328, %v1344
        %v1347 = vor.u32 %v1345, %v1346
        %v1348 = vsub.s32 4294967266, %v1343
        %v1349 = vadd.s32 %v1348, 127
        %v1350 = vshll.u32 %v1349, 23
        %v1351 = vor.u32 4788187, %v1350
        %v1352 = vand.u32 2147483647, %v1351
        %v1354 = vcvt.s32.f32 %v1347
        %v1355 = vmul.f32 %v1354, %v1352
        %v1356 = vxor.u32 %v1355, 2147483648
        %v1357 = vsel %vm1274, %v1356, %v1355
        %v1358 = vsub.s32 4, %v1334
        %v1359 = vsel %vm1274, %v1358, %v1334
        %v1360 = vsel %vm1273, %v1271, %v1357
        %v1361 = vsel %vm1273, 0, %v1359
        %v1362 = vcosq.f32.pop %v1360
        %v1363 = vsinq.f32.pop %v1360
        %vm1364 = vweird.f32 %v1271
        %v1365 = vadd.s32 %v1361, 3
        %v1366 = vand.u32 %v1365, 3
        %vm1367 = vcmp.lt.s32.totalorder %v1366, 2
        %vm1368 = vcmp.eq.s32.totalorder %v1366, 0
        %v1369 = vxor.u32 %v1363, 2147483648
        %v1370 = vsel %vm1368, %v1362, %v1369
        %vm1371 = vcmp.eq.s32.totalorder %v1366, 2
        %v1372 = vxor.u32 %v1362, 2147483648
        %v1373 = vsel %vm1371, %v1372, %v1363
        %v1374 = vsel %vm1367, %v1370, %v1373
        %v1375 = vsel %vm1364, nan, %v1374
        %v1376 = vand.u32 2147483647, %v1271
        %vm1377 = vcmp.le.f32.partialorder %v1376, 0.7853982
        %vm1378 = vcmp.lt.s32.totalorder %v1271, 0
        %v1379 = vand.u32 %v1271, 2139095040
        %v1380 = vshrl.u32 %v1379, 23
        %v1381 = vsub.s32 %v1380, 127
        %v1382 = vand.u32 2147483647, %v1271
        %v1383 = vand.u32 %v1382, 8388607
        %v1384 = vor.u32 %v1383, 8388608
        %v1385 = vsub.s32 0, %v1384
        %v1386 = vadd.s32 %v1381, 1
        %vm1387 = vcmp.gt.s32.totalorder %v1386, 0
        %v1388 = vsel %vm1387, %v1386, 0
        %v1389 = vshrl.u32 %v1388, 5
        %v1390 = vand.u32 %v1388, 31
        %v1391 = vsub.s32 32, %v1390
        %v1392 = vshrl.u32 683565275, %v1391
        %v1393 = vshll.u32 683565275, %v1390
        %v1394 = vshrl.u32 2475754826, %v1391
        %v1395 = vor.u32 %v1393, %v1394
        %v1396 = vshll.u32 2475754826, %v1390
        %v1397 = vshrl.u32 2131351028, %v1391
        %v1398 = vor.u32 %v1396, %v1397
        %v1399 = vshll.u32 2131351028, %v1390
        %v1400 = vshrl.u32 2102212464, %v1391
        %v1401 = vor.u32 %v1399, %v1400
        %v1402 = vshll.u32 2102212464, %v1390
        %v1403 = vshrl.u32 920167782, %v1391
        %v1404 = vor.u32 %v1402, %v1403
        %v1405 = vshll.u32 920167782, %v1390
        %v1406 = vshrl.u32 1326507024, %v1391
        %v1407 = vor.u32 %v1405, %v1406
        %vm1408 = vcmp.lt.s32.totalorder %v1389, 1
        %vm1409 = vcmp.lt.s32.totalorder %v1389, 2
        %vm1410 = vcmp.lt.s32.totalorder %v1389, 3
        %vm1411 = vcmp.lt.s32.totalorder %v1389, 4
        %v1412 = vsel %vm1408, %v1392, %v1395
        %v1413 = vsel %vm1411, %v1401, 2102212464
        %v1414 = vsel %vm1410, %v1398, %v1413
        %v1415 = vsel %vm1409, %v1412, %v1414
        %v1416 = vsel %vm1408, %v1395, %v1398
        %v1417 = vsel %vm1411, %v1404, 920167782
        %v1418 = vsel %vm1410, %v1401, %v1417
        %v1419 = vsel %vm1409, %v1416, %v1418
        %v1420 = vsel %vm1408, %v1398, %v1401
        %v1421 = vsel %vm1411, %v1407, 1326507024
        %v1422 = vsel %vm1410, %v1404, %v1421
        %v1423 = vsel %vm1409, %v1420, %v1422
        %v1424 = vshll.u32 %v1384, 8
        %v1425 = vmul.u32.u64.compose %v1424, %v1423
        %v1426 = vextract.low.u32 %v1425
        %v1427 = vextract.high.u32 %v1425
        %v1428 = vmul.u32.u64.compose %v1424, %v1419
        %v1429 = vextract.low.u32 %v1428
        %v1430 = vextract.high.u32 %v1428
        %v1431 = vmul.u32 %v1424, %v1415
        %v1432 = vadd.s32 %v1427, %v1429
        %vm1433 = vc.u32 %v1427, %v1429
        %v1434 = vadd.s32 %v1430, 1
        %v1435 = vsel %vm1433, %v1434, %v1430
        %v1436 = vadd.s32 %v1431, %v1435
        %v1437 = vadd.s32 %v1436, 536870912
        %v1438 = vshrl.u32 %v1437, 30
        %v1439 = vshll.u32 %v1438, 30
        %v1440 = vsub.s32 %v1436, %v1439
        %vm1441 = vcmp.lt.s32.totalorder %v1440, 0
        %v1442 = vsub.s32 0, %v1440
        %v1443 = vsel %vm1441, %v1442, %v1440
        %v1444 = vclz %v1443
        %v1445 = vsub.s32 %v1444, 2
        %vm1446 = vcmp.gt.s32.totalorder 0, %v1445
        %v1447 = vsel %vm1446, 0, %v1445
        %v1448 = vsub.s32 32, %v1447
        %v1449 = vshll.u32 %v1440, %v1447
        %v1450 = vshrl.u32 %v1432, %v1448
        %v1451 = vor.u32 %v1449, %v1450
        %v1452 = vsub.s32 4294967266, %v1447
        %v1453 = vadd.s32 %v1452, 127
        %v1454 = vshll.u32 %v1453, 23
        %v1455 = vor.u32 4788187, %v1454
        %v1456 = vand.u32 2147483647, %v1455
        %v1458 = vcvt.s32.f32 %v1451
        %v1459 = vmul.f32 %v1458, %v1456
        %v1460 = vxor.u32 %v1459, 2147483648
        %v1461 = vsel %vm1378, %v1460, %v1459
        %v1462 = vsub.s32 4, %v1438
        %v1463 = vsel %vm1378, %v1462, %v1438
        %v1464 = vsel %vm1377, %v1271, %v1461
        %v1465 = vsel %vm1377, 0, %v1463
        %v1466 = vcosq.f32.pop %v1464
        %v1467 = vsinq.f32.pop %v1464
        %vm1468 = vweird.f32 %v1271
        %v1469 = vand.u32 %v1465, 3
        %vm1470 = vcmp.lt.s32.totalorder %v1469, 2
        %vm1471 = vcmp.eq.s32.totalorder %v1469, 0
        %v1472 = vxor.u32 %v1467, 2147483648
        %v1473 = vsel %vm1471, %v1466, %v1472
        %vm1474 = vcmp.eq.s32.totalorder %v1469, 2
        %v1475 = vxor.u32 %v1466, 2147483648
        %v1476 = vsel %vm1474, %v1475, %v1467
        %v1477 = vsel %vm1470, %v1473, %v1476
        %v1478 = vsel %vm1468, nan, %v1477
        %v1481 = vunpack.c.l.s4 1966171168
        %v1482 = vunpack.c.0.s8 %v1481
        %v1483 = vlaneseq
        %v1484 = vshrl.u32 %v1483, 7
        %v1485 = vsub.s32 %v1482, %v1484
        %v1486 = vrot.slane %v1375, %v1485
        %v1487 = vcombine.high %v1486, %v1486
        %v1489 = vunpack.c.l.s4 1966171168
        %v1490 = vunpack.c.0.s8 %v1489
        %v1491 = vlaneseq
        %v1492 = vshrl.u32 %v1491, 7
        %v1493 = vsub.s32 %v1490, %v1492
        %v1494 = vrot.slane %v1486, %v1493
        %v1496 = vunpack.c.l.s4 1966171168
        %v1497 = vunpack.c.0.s8 %v1496
        %v1498 = vlaneseq
        %v1499 = vshrl.u32 %v1498, 7
        %v1500 = vsub.s32 %v1497, %v1499
        %v1501 = vrot.slane %v1487, %v1500
        %v1502 = vcombine.high %v1494, %v1494
        %v1505 = vunpack.c.l.s4 1966171168
        %v1506 = vunpack.c.0.s8 %v1505
        %v1507 = vlaneseq
        %v1508 = vshrl.u32 %v1507, 7
        %v1509 = vsub.s32 %v1506, %v1508
        %v1510 = vrot.slane %v1478, %v1509
        %v1511 = vcombine.high %v1510, %v1510
        %v1513 = vunpack.c.l.s4 1966171168
        %v1514 = vunpack.c.0.s8 %v1513
        %v1515 = vlaneseq
        %v1516 = vshrl.u32 %v1515, 7
        %v1517 = vsub.s32 %v1514, %v1516
        %v1518 = vrot.slane %v1510, %v1517
        %v1520 = vunpack.c.l.s4 1966171168
        %v1521 = vunpack.c.0.s8 %v1520
        %v1522 = vlaneseq
        %v1523 = vshrl.u32 %v1522, 7
        %v1524 = vsub.s32 %v1521, %v1523
        %v1525 = vrot.slane %v1511, %v1524
        %v1526 = vcombine.high %v1518, %v1518
        %v1527 = vlaneseq
        %v1528 = vshrl.u32 %v1527, 7
        %v1529 = vsub.s32 0, %v1528
        %v1530 = vrot.slane %v1494, %v1529
        %v1531 = vlaneseq
        %v1532 = vshrl.u32 %v1531, 7
        %v1533 = vsub.s32 1, %v1532
        %v1534 = vrot.slane %v1494, %v1533
        %v1535 = vlaneseq
        %v1536 = vshrl.u32 %v1535, 7
        %v1537 = vsub.s32 0, %v1536
        %v1538 = vrot.slane %v1501, %v1537
        %v1539 = vlaneseq
        %v1540 = vshrl.u32 %v1539, 7
        %v1541 = vsub.s32 1, %v1540
        %v1542 = vrot.slane %v1501, %v1541
        %v1543 = vlaneseq
        %v1544 = vshrl.u32 %v1543, 7
        %v1545 = vsub.s32 0, %v1544
        %v1546 = vrot.slane %v1502, %v1545
        %v1547 = vlaneseq
        %v1548 = vshrl.u32 %v1547, 7
        %v1549 = vsub.s32 1, %v1548
        %v1550 = vrot.slane %v1502, %v1549
        %v1557 = vlaneseq
        %v1558 = vshrl.u32 %v1557, 7
        %v1559 = vsub.s32 0, %v1558
        %v1560 = vrot.slane %v1518, %v1559
        %v1561 = vlaneseq
        %v1562 = vshrl.u32 %v1561, 7
        %v1563 = vsub.s32 1, %v1562
        %v1564 = vrot.slane %v1518, %v1563
        %v1565 = vlaneseq
        %v1566 = vshrl.u32 %v1565, 7
        %v1567 = vsub.s32 0, %v1566
        %v1568 = vrot.slane %v1525, %v1567
        %v1569 = vlaneseq
        %v1570 = vshrl.u32 %v1569, 7
        %v1571 = vsub.s32 1, %v1570
        %v1572 = vrot.slane %v1525, %v1571
        %v1573 = vlaneseq
        %v1574 = vshrl.u32 %v1573, 7
        %v1575 = vsub.s32 0, %v1574
        %v1576 = vrot.slane %v1526, %v1575
        %v1577 = vlaneseq
        %v1578 = vshrl.u32 %v1577, 7
        %v1579 = vsub.s32 1, %v1578
        %v1580 = vrot.slane %v1526, %v1579
        %v1587 = vsel %vm457, %v1530, %v1560
        %v1588 = vsel %vm457, %v1534, %v1564
        %v1589 = vsel %vm457, %v1538, %v1568
        %v1590 = vsel %vm457, %v1542, %v1572
        %v1591 = vsel %vm457, %v1546, %v1576
        %v1592 = vsel %vm457, %v1550, %v1580
        %v1599 = vcombine.low %v1587, %v1588
        %v1601 = vunpack.c.l.s4 1983009808
        %v1602 = vunpack.c.0.s8 %v1601
        %v1603 = vlaneseq
        %v1604 = vshrl.u32 %v1603, 7
        %v1605 = vsub.s32 %v1602, %v1604
        %v1606 = vrot.slane %v1599, %v1605
        %v1607 = vcombine.low %v1589, %v1590
        %v1609 = vunpack.c.l.s4 1983009808
        %v1610 = vunpack.c.0.s8 %v1609
        %v1611 = vlaneseq
        %v1612 = vshrl.u32 %v1611, 7
        %v1613 = vsub.s32 %v1610, %v1612
        %v1614 = vrot.slane %v1607, %v1613
        %v1615 = vcombine.low %v1591, %v1592
        %v1617 = vunpack.c.l.s4 1983009808
        %v1618 = vunpack.c.0.s8 %v1617
        %v1619 = vlaneseq
        %v1620 = vshrl.u32 %v1619, 7
        %v1621 = vsub.s32 %v1618, %v1620
        %v1622 = vrot.slane %v1615, %v1621
        %v1623 = vcombine.low %v1606, %v1614
        %v1625 = vunpack.c.l.s4 1983009808
        %v1626 = vunpack.c.0.s8 %v1625
        %v1627 = vlaneseq
        %v1628 = vshrl.u32 %v1627, 7
        %v1629 = vsub.s32 %v1626, %v1628
        %v1630 = vrot.slane %v1623, %v1629
        %v1632 = vunpack.c.l.s4 1983009808
        %v1633 = vunpack.c.0.s8 %v1632
        %v1634 = vlaneseq
        %v1635 = vshrl.u32 %v1634, 7
        %v1636 = vsub.s32 %v1633, %v1635
        %v1637 = vrot.slane %v1622, %v1636
        %v1638 = vcombine.low %v1630, %v1637
        %v1639 = vcombine.high %v1630, %v1637
        %v1640 = vrot.slane %v1638, 3
        %v1641 = vrot.slane %v1639, 3
        %1644 = vst [vmem:[%s132 + $0x20] sm:$0xe0] %v1640
        %1645 = vst [vmem:[%s132 + $0x28] sm:$0xe0] %v1641
        %1646 = vst [vmem:[%s132 + $0x30] sm:$0x7] %v1640
        %1647 = vst [vmem:[%s132 + $0x38] sm:$0x7] %v1641
        %v1648 = vmul.f32 %v135, 50.265484
        %v1649 = vand.u32 2147483647, %v1648
        %vm1650 = vcmp.le.f32.partialorder %v1649, 0.7853982
        %vm1651 = vcmp.lt.s32.totalorder %v1648, 0
        %v1652 = vand.u32 %v1648, 2139095040
        %v1653 = vshrl.u32 %v1652, 23
        %v1654 = vsub.s32 %v1653, 127
        %v1655 = vand.u32 2147483647, %v1648
        %v1656 = vand.u32 %v1655, 8388607
        %v1657 = vor.u32 %v1656, 8388608
        %v1658 = vsub.s32 0, %v1657
        %v1659 = vadd.s32 %v1654, 1
        %vm1660 = vcmp.gt.s32.totalorder %v1659, 0
        %v1661 = vsel %vm1660, %v1659, 0
        %v1662 = vshrl.u32 %v1661, 5
        %v1663 = vand.u32 %v1661, 31
        %v1664 = vsub.s32 32, %v1663
        %v1665 = vshrl.u32 683565275, %v1664
        %v1666 = vshll.u32 683565275, %v1663
        %v1667 = vshrl.u32 2475754826, %v1664
        %v1668 = vor.u32 %v1666, %v1667
        %v1669 = vshll.u32 2475754826, %v1663
        %v1670 = vshrl.u32 2131351028, %v1664
        %v1671 = vor.u32 %v1669, %v1670
        %v1672 = vshll.u32 2131351028, %v1663
        %v1673 = vshrl.u32 2102212464, %v1664
        %v1674 = vor.u32 %v1672, %v1673
        %v1675 = vshll.u32 2102212464, %v1663
        %v1676 = vshrl.u32 920167782, %v1664
        %v1677 = vor.u32 %v1675, %v1676
        %v1678 = vshll.u32 920167782, %v1663
        %v1679 = vshrl.u32 1326507024, %v1664
        %v1680 = vor.u32 %v1678, %v1679
        %vm1681 = vcmp.lt.s32.totalorder %v1662, 1
        %vm1682 = vcmp.lt.s32.totalorder %v1662, 2
        %vm1683 = vcmp.lt.s32.totalorder %v1662, 3
        %vm1684 = vcmp.lt.s32.totalorder %v1662, 4
        %v1685 = vsel %vm1681, %v1665, %v1668
        %v1686 = vsel %vm1684, %v1674, 2102212464
        %v1687 = vsel %vm1683, %v1671, %v1686
        %v1688 = vsel %vm1682, %v1685, %v1687
        %v1689 = vsel %vm1681, %v1668, %v1671
        %v1690 = vsel %vm1684, %v1677, 920167782
        %v1691 = vsel %vm1683, %v1674, %v1690
        %v1692 = vsel %vm1682, %v1689, %v1691
        %v1693 = vsel %vm1681, %v1671, %v1674
        %v1694 = vsel %vm1684, %v1680, 1326507024
        %v1695 = vsel %vm1683, %v1677, %v1694
        %v1696 = vsel %vm1682, %v1693, %v1695
        %v1697 = vshll.u32 %v1657, 8
        %v1698 = vmul.u32.u64.compose %v1697, %v1696
        %v1699 = vextract.low.u32 %v1698
        %v1700 = vextract.high.u32 %v1698
        %v1701 = vmul.u32.u64.compose %v1697, %v1692
        %v1702 = vextract.low.u32 %v1701
        %v1703 = vextract.high.u32 %v1701
        %v1704 = vmul.u32 %v1697, %v1688
        %v1705 = vadd.s32 %v1700, %v1702
        %vm1706 = vc.u32 %v1700, %v1702
        %v1707 = vadd.s32 %v1703, 1
        %v1708 = vsel %vm1706, %v1707, %v1703
        %v1709 = vadd.s32 %v1704, %v1708
        %v1710 = vadd.s32 %v1709, 536870912
        %v1711 = vshrl.u32 %v1710, 30
        %v1712 = vshll.u32 %v1711, 30
        %v1713 = vsub.s32 %v1709, %v1712
        %vm1714 = vcmp.lt.s32.totalorder %v1713, 0
        %v1715 = vsub.s32 0, %v1713
        %v1716 = vsel %vm1714, %v1715, %v1713
        %v1717 = vclz %v1716
        %v1718 = vsub.s32 %v1717, 2
        %vm1719 = vcmp.gt.s32.totalorder 0, %v1718
        %v1720 = vsel %vm1719, 0, %v1718
        %v1721 = vsub.s32 32, %v1720
        %v1722 = vshll.u32 %v1713, %v1720
        %v1723 = vshrl.u32 %v1705, %v1721
        %v1724 = vor.u32 %v1722, %v1723
        %v1725 = vsub.s32 4294967266, %v1720
        %v1726 = vadd.s32 %v1725, 127
        %v1727 = vshll.u32 %v1726, 23
        %v1728 = vor.u32 4788187, %v1727
        %v1729 = vand.u32 2147483647, %v1728
        %v1731 = vcvt.s32.f32 %v1724
        %v1732 = vmul.f32 %v1731, %v1729
        %v1733 = vxor.u32 %v1732, 2147483648
        %v1734 = vsel %vm1651, %v1733, %v1732
        %v1735 = vsub.s32 4, %v1711
        %v1736 = vsel %vm1651, %v1735, %v1711
        %v1737 = vsel %vm1650, %v1648, %v1734
        %v1738 = vsel %vm1650, 0, %v1736
        %v1739 = vcosq.f32.pop %v1737
        %v1740 = vsinq.f32.pop %v1737
        %vm1741 = vweird.f32 %v1648
        %v1742 = vadd.s32 %v1738, 3
        %v1743 = vand.u32 %v1742, 3
        %vm1744 = vcmp.lt.s32.totalorder %v1743, 2
        %vm1745 = vcmp.eq.s32.totalorder %v1743, 0
        %v1746 = vxor.u32 %v1740, 2147483648
        %v1747 = vsel %vm1745, %v1739, %v1746
        %vm1748 = vcmp.eq.s32.totalorder %v1743, 2
        %v1749 = vxor.u32 %v1739, 2147483648
        %v1750 = vsel %vm1748, %v1749, %v1740
        %v1751 = vsel %vm1744, %v1747, %v1750
        %v1752 = vsel %vm1741, nan, %v1751
        %v1753 = vand.u32 2147483647, %v1648
        %vm1754 = vcmp.le.f32.partialorder %v1753, 0.7853982
        %vm1755 = vcmp.lt.s32.totalorder %v1648, 0
        %v1756 = vand.u32 %v1648, 2139095040
        %v1757 = vshrl.u32 %v1756, 23
        %v1758 = vsub.s32 %v1757, 127
        %v1759 = vand.u32 2147483647, %v1648
        %v1760 = vand.u32 %v1759, 8388607
        %v1761 = vor.u32 %v1760, 8388608
        %v1762 = vsub.s32 0, %v1761
        %v1763 = vadd.s32 %v1758, 1
        %vm1764 = vcmp.gt.s32.totalorder %v1763, 0
        %v1765 = vsel %vm1764, %v1763, 0
        %v1766 = vshrl.u32 %v1765, 5
        %v1767 = vand.u32 %v1765, 31
        %v1768 = vsub.s32 32, %v1767
        %v1769 = vshrl.u32 683565275, %v1768
        %v1770 = vshll.u32 683565275, %v1767
        %v1771 = vshrl.u32 2475754826, %v1768
        %v1772 = vor.u32 %v1770, %v1771
        %v1773 = vshll.u32 2475754826, %v1767
        %v1774 = vshrl.u32 2131351028, %v1768
        %v1775 = vor.u32 %v1773, %v1774
        %v1776 = vshll.u32 2131351028, %v1767
        %v1777 = vshrl.u32 2102212464, %v1768
        %v1778 = vor.u32 %v1776, %v1777
        %v1779 = vshll.u32 2102212464, %v1767
        %v1780 = vshrl.u32 920167782, %v1768
        %v1781 = vor.u32 %v1779, %v1780
        %v1782 = vshll.u32 920167782, %v1767
        %v1783 = vshrl.u32 1326507024, %v1768
        %v1784 = vor.u32 %v1782, %v1783
        %vm1785 = vcmp.lt.s32.totalorder %v1766, 1
        %vm1786 = vcmp.lt.s32.totalorder %v1766, 2
        %vm1787 = vcmp.lt.s32.totalorder %v1766, 3
        %vm1788 = vcmp.lt.s32.totalorder %v1766, 4
        %v1789 = vsel %vm1785, %v1769, %v1772
        %v1790 = vsel %vm1788, %v1778, 2102212464
        %v1791 = vsel %vm1787, %v1775, %v1790
        %v1792 = vsel %vm1786, %v1789, %v1791
        %v1793 = vsel %vm1785, %v1772, %v1775
        %v1794 = vsel %vm1788, %v1781, 920167782
        %v1795 = vsel %vm1787, %v1778, %v1794
        %v1796 = vsel %vm1786, %v1793, %v1795
        %v1797 = vsel %vm1785, %v1775, %v1778
        %v1798 = vsel %vm1788, %v1784, 1326507024
        %v1799 = vsel %vm1787, %v1781, %v1798
        %v1800 = vsel %vm1786, %v1797, %v1799
        %v1801 = vshll.u32 %v1761, 8
        %v1802 = vmul.u32.u64.compose %v1801, %v1800
        %v1803 = vextract.low.u32 %v1802
        %v1804 = vextract.high.u32 %v1802
        %v1805 = vmul.u32.u64.compose %v1801, %v1796
        %v1806 = vextract.low.u32 %v1805
        %v1807 = vextract.high.u32 %v1805
        %v1808 = vmul.u32 %v1801, %v1792
        %v1809 = vadd.s32 %v1804, %v1806
        %vm1810 = vc.u32 %v1804, %v1806
        %v1811 = vadd.s32 %v1807, 1
        %v1812 = vsel %vm1810, %v1811, %v1807
        %v1813 = vadd.s32 %v1808, %v1812
        %v1814 = vadd.s32 %v1813, 536870912
        %v1815 = vshrl.u32 %v1814, 30
        %v1816 = vshll.u32 %v1815, 30
        %v1817 = vsub.s32 %v1813, %v1816
        %vm1818 = vcmp.lt.s32.totalorder %v1817, 0
        %v1819 = vsub.s32 0, %v1817
        %v1820 = vsel %vm1818, %v1819, %v1817
        %v1821 = vclz %v1820
        %v1822 = vsub.s32 %v1821, 2
        %vm1823 = vcmp.gt.s32.totalorder 0, %v1822
        %v1824 = vsel %vm1823, 0, %v1822
        %v1825 = vsub.s32 32, %v1824
        %v1826 = vshll.u32 %v1817, %v1824
        %v1827 = vshrl.u32 %v1809, %v1825
        %v1828 = vor.u32 %v1826, %v1827
        %v1829 = vsub.s32 4294967266, %v1824
        %v1830 = vadd.s32 %v1829, 127
        %v1831 = vshll.u32 %v1830, 23
        %v1832 = vor.u32 4788187, %v1831
        %v1833 = vand.u32 2147483647, %v1832
        %v1835 = vcvt.s32.f32 %v1828
        %v1836 = vmul.f32 %v1835, %v1833
        %v1837 = vxor.u32 %v1836, 2147483648
        %v1838 = vsel %vm1755, %v1837, %v1836
        %v1839 = vsub.s32 4, %v1815
        %v1840 = vsel %vm1755, %v1839, %v1815
        %v1841 = vsel %vm1754, %v1648, %v1838
        %v1842 = vsel %vm1754, 0, %v1840
        %v1843 = vcosq.f32.pop %v1841
        %v1844 = vsinq.f32.pop %v1841
        %vm1845 = vweird.f32 %v1648
        %v1846 = vand.u32 %v1842, 3
        %vm1847 = vcmp.lt.s32.totalorder %v1846, 2
        %vm1848 = vcmp.eq.s32.totalorder %v1846, 0
        %v1849 = vxor.u32 %v1844, 2147483648
        %v1850 = vsel %vm1848, %v1843, %v1849
        %vm1851 = vcmp.eq.s32.totalorder %v1846, 2
        %v1852 = vxor.u32 %v1843, 2147483648
        %v1853 = vsel %vm1851, %v1852, %v1844
        %v1854 = vsel %vm1847, %v1850, %v1853
        %v1855 = vsel %vm1845, nan, %v1854
        %v1858 = vunpack.c.l.s4 1966171168
        %v1859 = vunpack.c.0.s8 %v1858
        %v1860 = vlaneseq
        %v1861 = vshrl.u32 %v1860, 7
        %v1862 = vsub.s32 %v1859, %v1861
        %v1863 = vrot.slane %v1752, %v1862
        %v1864 = vcombine.high %v1863, %v1863
        %v1866 = vunpack.c.l.s4 1966171168
        %v1867 = vunpack.c.0.s8 %v1866
        %v1868 = vlaneseq
        %v1869 = vshrl.u32 %v1868, 7
        %v1870 = vsub.s32 %v1867, %v1869
        %v1871 = vrot.slane %v1863, %v1870
        %v1873 = vunpack.c.l.s4 1966171168
        %v1874 = vunpack.c.0.s8 %v1873
        %v1875 = vlaneseq
        %v1876 = vshrl.u32 %v1875, 7
        %v1877 = vsub.s32 %v1874, %v1876
        %v1878 = vrot.slane %v1864, %v1877
        %v1879 = vcombine.high %v1871, %v1871
        %v1882 = vunpack.c.l.s4 1966171168
        %v1883 = vunpack.c.0.s8 %v1882
        %v1884 = vlaneseq
        %v1885 = vshrl.u32 %v1884, 7
        %v1886 = vsub.s32 %v1883, %v1885
        %v1887 = vrot.slane %v1855, %v1886
        %v1888 = vcombine.high %v1887, %v1887
        %v1890 = vunpack.c.l.s4 1966171168
        %v1891 = vunpack.c.0.s8 %v1890
        %v1892 = vlaneseq
        %v1893 = vshrl.u32 %v1892, 7
        %v1894 = vsub.s32 %v1891, %v1893
        %v1895 = vrot.slane %v1887, %v1894
        %v1897 = vunpack.c.l.s4 1966171168
        %v1898 = vunpack.c.0.s8 %v1897
        %v1899 = vlaneseq
        %v1900 = vshrl.u32 %v1899, 7
        %v1901 = vsub.s32 %v1898, %v1900
        %v1902 = vrot.slane %v1888, %v1901
        %v1903 = vcombine.high %v1895, %v1895
        %v1904 = vlaneseq
        %v1905 = vshrl.u32 %v1904, 7
        %v1906 = vsub.s32 0, %v1905
        %v1907 = vrot.slane %v1871, %v1906
        %v1908 = vlaneseq
        %v1909 = vshrl.u32 %v1908, 7
        %v1910 = vsub.s32 1, %v1909
        %v1911 = vrot.slane %v1871, %v1910
        %v1912 = vlaneseq
        %v1913 = vshrl.u32 %v1912, 7
        %v1914 = vsub.s32 0, %v1913
        %v1915 = vrot.slane %v1878, %v1914
        %v1916 = vlaneseq
        %v1917 = vshrl.u32 %v1916, 7
        %v1918 = vsub.s32 1, %v1917
        %v1919 = vrot.slane %v1878, %v1918
        %v1920 = vlaneseq
        %v1921 = vshrl.u32 %v1920, 7
        %v1922 = vsub.s32 0, %v1921
        %v1923 = vrot.slane %v1879, %v1922
        %v1924 = vlaneseq
        %v1925 = vshrl.u32 %v1924, 7
        %v1926 = vsub.s32 1, %v1925
        %v1927 = vrot.slane %v1879, %v1926
        %v1934 = vlaneseq
        %v1935 = vshrl.u32 %v1934, 7
        %v1936 = vsub.s32 0, %v1935
        %v1937 = vrot.slane %v1895, %v1936
        %v1938 = vlaneseq
        %v1939 = vshrl.u32 %v1938, 7
        %v1940 = vsub.s32 1, %v1939
        %v1941 = vrot.slane %v1895, %v1940
        %v1942 = vlaneseq
        %v1943 = vshrl.u32 %v1942, 7
        %v1944 = vsub.s32 0, %v1943
        %v1945 = vrot.slane %v1902, %v1944
        %v1946 = vlaneseq
        %v1947 = vshrl.u32 %v1946, 7
        %v1948 = vsub.s32 1, %v1947
        %v1949 = vrot.slane %v1902, %v1948
        %v1950 = vlaneseq
        %v1951 = vshrl.u32 %v1950, 7
        %v1952 = vsub.s32 0, %v1951
        %v1953 = vrot.slane %v1903, %v1952
        %v1954 = vlaneseq
        %v1955 = vshrl.u32 %v1954, 7
        %v1956 = vsub.s32 1, %v1955
        %v1957 = vrot.slane %v1903, %v1956
        %v1964 = vsel %vm457, %v1907, %v1937
        %v1965 = vsel %vm457, %v1911, %v1941
        %v1966 = vsel %vm457, %v1915, %v1945
        %v1967 = vsel %vm457, %v1919, %v1949
        %v1968 = vsel %vm457, %v1923, %v1953
        %v1969 = vsel %vm457, %v1927, %v1957
        %v1976 = vcombine.low %v1964, %v1965
        %v1978 = vunpack.c.l.s4 1983009808
        %v1979 = vunpack.c.0.s8 %v1978
        %v1980 = vlaneseq
        %v1981 = vshrl.u32 %v1980, 7
        %v1982 = vsub.s32 %v1979, %v1981
        %v1983 = vrot.slane %v1976, %v1982
        %v1984 = vcombine.low %v1966, %v1967
        %v1986 = vunpack.c.l.s4 1983009808
        %v1987 = vunpack.c.0.s8 %v1986
        %v1988 = vlaneseq
        %v1989 = vshrl.u32 %v1988, 7
        %v1990 = vsub.s32 %v1987, %v1989
        %v1991 = vrot.slane %v1984, %v1990
        %v1992 = vcombine.low %v1968, %v1969
        %v1994 = vunpack.c.l.s4 1983009808
        %v1995 = vunpack.c.0.s8 %v1994
        %v1996 = vlaneseq
        %v1997 = vshrl.u32 %v1996, 7
        %v1998 = vsub.s32 %v1995, %v1997
        %v1999 = vrot.slane %v1992, %v1998
        %v2000 = vcombine.low %v1983, %v1991
        %v2002 = vunpack.c.l.s4 1983009808
        %v2003 = vunpack.c.0.s8 %v2002
        %v2004 = vlaneseq
        %v2005 = vshrl.u32 %v2004, 7
        %v2006 = vsub.s32 %v2003, %v2005
        %v2007 = vrot.slane %v2000, %v2006
        %v2009 = vunpack.c.l.s4 1983009808
        %v2010 = vunpack.c.0.s8 %v2009
        %v2011 = vlaneseq
        %v2012 = vshrl.u32 %v2011, 7
        %v2013 = vsub.s32 %v2010, %v2012
        %v2014 = vrot.slane %v1999, %v2013
        %v2015 = vcombine.low %v2007, %v2014
        %v2016 = vcombine.high %v2007, %v2014
        %v2017 = vrot.slane %v2015, 5
        %v2018 = vrot.slane %v2016, 5
        %2021 = vst [vmem:[%s132 + $0x30] sm:$0xf8] %v2017
        %2022 = vst [vmem:[%s132 + $0x38] sm:$0xf8] %v2018
        %2023 = vst [vmem:[%s132 + $0x40] sm:$0x1] %v2017
        %2024 = vst [vmem:[%s132 + $0x48] sm:$0x1] %v2018
        %v2025 = vmul.f32 %v135, 100.53097
        %v2026 = vand.u32 2147483647, %v2025
        %vm2027 = vcmp.le.f32.partialorder %v2026, 0.7853982
        %vm2028 = vcmp.lt.s32.totalorder %v2025, 0
        %v2029 = vand.u32 %v2025, 2139095040
        %v2030 = vshrl.u32 %v2029, 23
        %v2031 = vsub.s32 %v2030, 127
        %v2032 = vand.u32 2147483647, %v2025
        %v2033 = vand.u32 %v2032, 8388607
        %v2034 = vor.u32 %v2033, 8388608
        %v2035 = vsub.s32 0, %v2034
        %v2036 = vadd.s32 %v2031, 1
        %vm2037 = vcmp.gt.s32.totalorder %v2036, 0
        %v2038 = vsel %vm2037, %v2036, 0
        %v2039 = vshrl.u32 %v2038, 5
        %v2040 = vand.u32 %v2038, 31
        %v2041 = vsub.s32 32, %v2040
        %v2042 = vshrl.u32 683565275, %v2041
        %v2043 = vshll.u32 683565275, %v2040
        %v2044 = vshrl.u32 2475754826, %v2041
        %v2045 = vor.u32 %v2043, %v2044
        %v2046 = vshll.u32 2475754826, %v2040
        %v2047 = vshrl.u32 2131351028, %v2041
        %v2048 = vor.u32 %v2046, %v2047
        %v2049 = vshll.u32 2131351028, %v2040
        %v2050 = vshrl.u32 2102212464, %v2041
        %v2051 = vor.u32 %v2049, %v2050
        %v2052 = vshll.u32 2102212464, %v2040
        %v2053 = vshrl.u32 920167782, %v2041
        %v2054 = vor.u32 %v2052, %v2053
        %v2055 = vshll.u32 920167782, %v2040
        %v2056 = vshrl.u32 1326507024, %v2041
        %v2057 = vor.u32 %v2055, %v2056
        %vm2058 = vcmp.lt.s32.totalorder %v2039, 1
        %vm2059 = vcmp.lt.s32.totalorder %v2039, 2
        %vm2060 = vcmp.lt.s32.totalorder %v2039, 3
        %vm2061 = vcmp.lt.s32.totalorder %v2039, 4
        %v2062 = vsel %vm2058, %v2042, %v2045
        %v2063 = vsel %vm2061, %v2051, 2102212464
        %v2064 = vsel %vm2060, %v2048, %v2063
        %v2065 = vsel %vm2059, %v2062, %v2064
        %v2066 = vsel %vm2058, %v2045, %v2048
        %v2067 = vsel %vm2061, %v2054, 920167782
        %v2068 = vsel %vm2060, %v2051, %v2067
        %v2069 = vsel %vm2059, %v2066, %v2068
        %v2070 = vsel %vm2058, %v2048, %v2051
        %v2071 = vsel %vm2061, %v2057, 1326507024
        %v2072 = vsel %vm2060, %v2054, %v2071
        %v2073 = vsel %vm2059, %v2070, %v2072
        %v2074 = vshll.u32 %v2034, 8
        %v2075 = vmul.u32.u64.compose %v2074, %v2073
        %v2076 = vextract.low.u32 %v2075
        %v2077 = vextract.high.u32 %v2075
        %v2078 = vmul.u32.u64.compose %v2074, %v2069
        %v2079 = vextract.low.u32 %v2078
        %v2080 = vextract.high.u32 %v2078
        %v2081 = vmul.u32 %v2074, %v2065
        %v2082 = vadd.s32 %v2077, %v2079
        %vm2083 = vc.u32 %v2077, %v2079
        %v2084 = vadd.s32 %v2080, 1
        %v2085 = vsel %vm2083, %v2084, %v2080
        %v2086 = vadd.s32 %v2081, %v2085
        %v2087 = vadd.s32 %v2086, 536870912
        %v2088 = vshrl.u32 %v2087, 30
        %v2089 = vshll.u32 %v2088, 30
        %v2090 = vsub.s32 %v2086, %v2089
        %vm2091 = vcmp.lt.s32.totalorder %v2090, 0
        %v2092 = vsub.s32 0, %v2090
        %v2093 = vsel %vm2091, %v2092, %v2090
        %v2094 = vclz %v2093
        %v2095 = vsub.s32 %v2094, 2
        %vm2096 = vcmp.gt.s32.totalorder 0, %v2095
        %v2097 = vsel %vm2096, 0, %v2095
        %v2098 = vsub.s32 32, %v2097
        %v2099 = vshll.u32 %v2090, %v2097
        %v2100 = vshrl.u32 %v2082, %v2098
        %v2101 = vor.u32 %v2099, %v2100
        %v2102 = vsub.s32 4294967266, %v2097
        %v2103 = vadd.s32 %v2102, 127
        %v2104 = vshll.u32 %v2103, 23
        %v2105 = vor.u32 4788187, %v2104
        %v2106 = vand.u32 2147483647, %v2105
        %v2108 = vcvt.s32.f32 %v2101
        %v2109 = vmul.f32 %v2108, %v2106
        %v2110 = vxor.u32 %v2109, 2147483648
        %v2111 = vsel %vm2028, %v2110, %v2109
        %v2112 = vsub.s32 4, %v2088
        %v2113 = vsel %vm2028, %v2112, %v2088
        %v2114 = vsel %vm2027, %v2025, %v2111
        %v2115 = vsel %vm2027, 0, %v2113
        %v2116 = vcosq.f32.pop %v2114
        %v2117 = vsinq.f32.pop %v2114
        %vm2118 = vweird.f32 %v2025
        %v2119 = vadd.s32 %v2115, 3
        %v2120 = vand.u32 %v2119, 3
        %vm2121 = vcmp.lt.s32.totalorder %v2120, 2
        %vm2122 = vcmp.eq.s32.totalorder %v2120, 0
        %v2123 = vxor.u32 %v2117, 2147483648
        %v2124 = vsel %vm2122, %v2116, %v2123
        %vm2125 = vcmp.eq.s32.totalorder %v2120, 2
        %v2126 = vxor.u32 %v2116, 2147483648
        %v2127 = vsel %vm2125, %v2126, %v2117
        %v2128 = vsel %vm2121, %v2124, %v2127
        %v2129 = vsel %vm2118, nan, %v2128
        %v2130 = vand.u32 2147483647, %v2025
        %vm2131 = vcmp.le.f32.partialorder %v2130, 0.7853982
        %vm2132 = vcmp.lt.s32.totalorder %v2025, 0
        %v2133 = vand.u32 %v2025, 2139095040
        %v2134 = vshrl.u32 %v2133, 23
        %v2135 = vsub.s32 %v2134, 127
        %v2136 = vand.u32 2147483647, %v2025
        %v2137 = vand.u32 %v2136, 8388607
        %v2138 = vor.u32 %v2137, 8388608
        %v2139 = vsub.s32 0, %v2138
        %v2140 = vadd.s32 %v2135, 1
        %vm2141 = vcmp.gt.s32.totalorder %v2140, 0
        %v2142 = vsel %vm2141, %v2140, 0
        %v2143 = vshrl.u32 %v2142, 5
        %v2144 = vand.u32 %v2142, 31
        %v2145 = vsub.s32 32, %v2144
        %v2146 = vshrl.u32 683565275, %v2145
        %v2147 = vshll.u32 683565275, %v2144
        %v2148 = vshrl.u32 2475754826, %v2145
        %v2149 = vor.u32 %v2147, %v2148
        %v2150 = vshll.u32 2475754826, %v2144
        %v2151 = vshrl.u32 2131351028, %v2145
        %v2152 = vor.u32 %v2150, %v2151
        %v2153 = vshll.u32 2131351028, %v2144
        %v2154 = vshrl.u32 2102212464, %v2145
        %v2155 = vor.u32 %v2153, %v2154
        %v2156 = vshll.u32 2102212464, %v2144
        %v2157 = vshrl.u32 920167782, %v2145
        %v2158 = vor.u32 %v2156, %v2157
        %v2159 = vshll.u32 920167782, %v2144
        %v2160 = vshrl.u32 1326507024, %v2145
        %v2161 = vor.u32 %v2159, %v2160
        %vm2162 = vcmp.lt.s32.totalorder %v2143, 1
        %vm2163 = vcmp.lt.s32.totalorder %v2143, 2
        %vm2164 = vcmp.lt.s32.totalorder %v2143, 3
        %vm2165 = vcmp.lt.s32.totalorder %v2143, 4
        %v2166 = vsel %vm2162, %v2146, %v2149
        %v2167 = vsel %vm2165, %v2155, 2102212464
        %v2168 = vsel %vm2164, %v2152, %v2167
        %v2169 = vsel %vm2163, %v2166, %v2168
        %v2170 = vsel %vm2162, %v2149, %v2152
        %v2171 = vsel %vm2165, %v2158, 920167782
        %v2172 = vsel %vm2164, %v2155, %v2171
        %v2173 = vsel %vm2163, %v2170, %v2172
        %v2174 = vsel %vm2162, %v2152, %v2155
        %v2175 = vsel %vm2165, %v2161, 1326507024
        %v2176 = vsel %vm2164, %v2158, %v2175
        %v2177 = vsel %vm2163, %v2174, %v2176
        %v2178 = vshll.u32 %v2138, 8
        %v2179 = vmul.u32.u64.compose %v2178, %v2177
        %v2180 = vextract.low.u32 %v2179
        %v2181 = vextract.high.u32 %v2179
        %v2182 = vmul.u32.u64.compose %v2178, %v2173
        %v2183 = vextract.low.u32 %v2182
        %v2184 = vextract.high.u32 %v2182
        %v2185 = vmul.u32 %v2178, %v2169
        %v2186 = vadd.s32 %v2181, %v2183
        %vm2187 = vc.u32 %v2181, %v2183
        %v2188 = vadd.s32 %v2184, 1
        %v2189 = vsel %vm2187, %v2188, %v2184
        %v2190 = vadd.s32 %v2185, %v2189
        %v2191 = vadd.s32 %v2190, 536870912
        %v2192 = vshrl.u32 %v2191, 30
        %v2193 = vshll.u32 %v2192, 30
        %v2194 = vsub.s32 %v2190, %v2193
        %vm2195 = vcmp.lt.s32.totalorder %v2194, 0
        %v2196 = vsub.s32 0, %v2194
        %v2197 = vsel %vm2195, %v2196, %v2194
        %v2198 = vclz %v2197
        %v2199 = vsub.s32 %v2198, 2
        %vm2200 = vcmp.gt.s32.totalorder 0, %v2199
        %v2201 = vsel %vm2200, 0, %v2199
        %v2202 = vsub.s32 32, %v2201
        %v2203 = vshll.u32 %v2194, %v2201
        %v2204 = vshrl.u32 %v2186, %v2202
        %v2205 = vor.u32 %v2203, %v2204
        %v2206 = vsub.s32 4294967266, %v2201
        %v2207 = vadd.s32 %v2206, 127
        %v2208 = vshll.u32 %v2207, 23
        %v2209 = vor.u32 4788187, %v2208
        %v2210 = vand.u32 2147483647, %v2209
        %v2212 = vcvt.s32.f32 %v2205
        %v2213 = vmul.f32 %v2212, %v2210
        %v2214 = vxor.u32 %v2213, 2147483648
        %v2215 = vsel %vm2132, %v2214, %v2213
        %v2216 = vsub.s32 4, %v2192
        %v2217 = vsel %vm2132, %v2216, %v2192
        %v2218 = vsel %vm2131, %v2025, %v2215
        %v2219 = vsel %vm2131, 0, %v2217
        %v2220 = vcosq.f32.pop %v2218
        %v2221 = vsinq.f32.pop %v2218
        %vm2222 = vweird.f32 %v2025
        %v2223 = vand.u32 %v2219, 3
        %vm2224 = vcmp.lt.s32.totalorder %v2223, 2
        %vm2225 = vcmp.eq.s32.totalorder %v2223, 0
        %v2226 = vxor.u32 %v2221, 2147483648
        %v2227 = vsel %vm2225, %v2220, %v2226
        %vm2228 = vcmp.eq.s32.totalorder %v2223, 2
        %v2229 = vxor.u32 %v2220, 2147483648
        %v2230 = vsel %vm2228, %v2229, %v2221
        %v2231 = vsel %vm2224, %v2227, %v2230
        %v2232 = vsel %vm2222, nan, %v2231
        %v2235 = vunpack.c.l.s4 1966171168
        %v2236 = vunpack.c.0.s8 %v2235
        %v2237 = vlaneseq
        %v2238 = vshrl.u32 %v2237, 7
        %v2239 = vsub.s32 %v2236, %v2238
        %v2240 = vrot.slane %v2129, %v2239
        %v2241 = vcombine.high %v2240, %v2240
        %v2243 = vunpack.c.l.s4 1966171168
        %v2244 = vunpack.c.0.s8 %v2243
        %v2245 = vlaneseq
        %v2246 = vshrl.u32 %v2245, 7
        %v2247 = vsub.s32 %v2244, %v2246
        %v2248 = vrot.slane %v2240, %v2247
        %v2250 = vunpack.c.l.s4 1966171168
        %v2251 = vunpack.c.0.s8 %v2250
        %v2252 = vlaneseq
        %v2253 = vshrl.u32 %v2252, 7
        %v2254 = vsub.s32 %v2251, %v2253
        %v2255 = vrot.slane %v2241, %v2254
        %v2256 = vcombine.high %v2248, %v2248
        %v2259 = vunpack.c.l.s4 1966171168
        %v2260 = vunpack.c.0.s8 %v2259
        %v2261 = vlaneseq
        %v2262 = vshrl.u32 %v2261, 7
        %v2263 = vsub.s32 %v2260, %v2262
        %v2264 = vrot.slane %v2232, %v2263
        %v2265 = vcombine.high %v2264, %v2264
        %v2267 = vunpack.c.l.s4 1966171168
        %v2268 = vunpack.c.0.s8 %v2267
        %v2269 = vlaneseq
        %v2270 = vshrl.u32 %v2269, 7
        %v2271 = vsub.s32 %v2268, %v2270
        %v2272 = vrot.slane %v2264, %v2271
        %v2274 = vunpack.c.l.s4 1966171168
        %v2275 = vunpack.c.0.s8 %v2274
        %v2276 = vlaneseq
        %v2277 = vshrl.u32 %v2276, 7
        %v2278 = vsub.s32 %v2275, %v2277
        %v2279 = vrot.slane %v2265, %v2278
        %v2280 = vcombine.high %v2272, %v2272
        %v2281 = vlaneseq
        %v2282 = vshrl.u32 %v2281, 7
        %v2283 = vsub.s32 0, %v2282
        %v2284 = vrot.slane %v2248, %v2283
        %v2285 = vlaneseq
        %v2286 = vshrl.u32 %v2285, 7
        %v2287 = vsub.s32 1, %v2286
        %v2288 = vrot.slane %v2248, %v2287
        %v2289 = vlaneseq
        %v2290 = vshrl.u32 %v2289, 7
        %v2291 = vsub.s32 0, %v2290
        %v2292 = vrot.slane %v2255, %v2291
        %v2293 = vlaneseq
        %v2294 = vshrl.u32 %v2293, 7
        %v2295 = vsub.s32 1, %v2294
        %v2296 = vrot.slane %v2255, %v2295
        %v2297 = vlaneseq
        %v2298 = vshrl.u32 %v2297, 7
        %v2299 = vsub.s32 0, %v2298
        %v2300 = vrot.slane %v2256, %v2299
        %v2301 = vlaneseq
        %v2302 = vshrl.u32 %v2301, 7
        %v2303 = vsub.s32 1, %v2302
        %v2304 = vrot.slane %v2256, %v2303
        %v2311 = vlaneseq
        %v2312 = vshrl.u32 %v2311, 7
        %v2313 = vsub.s32 0, %v2312
        %v2314 = vrot.slane %v2272, %v2313
        %v2315 = vlaneseq
        %v2316 = vshrl.u32 %v2315, 7
        %v2317 = vsub.s32 1, %v2316
        %v2318 = vrot.slane %v2272, %v2317
        %v2319 = vlaneseq
        %v2320 = vshrl.u32 %v2319, 7
        %v2321 = vsub.s32 0, %v2320
        %v2322 = vrot.slane %v2279, %v2321
        %v2323 = vlaneseq
        %v2324 = vshrl.u32 %v2323, 7
        %v2325 = vsub.s32 1, %v2324
        %v2326 = vrot.slane %v2279, %v2325
        %v2327 = vlaneseq
        %v2328 = vshrl.u32 %v2327, 7
        %v2329 = vsub.s32 0, %v2328
        %v2330 = vrot.slane %v2280, %v2329
        %v2331 = vlaneseq
        %v2332 = vshrl.u32 %v2331, 7
        %v2333 = vsub.s32 1, %v2332
        %v2334 = vrot.slane %v2280, %v2333
        %v2341 = vsel %vm457, %v2284, %v2314
        %v2342 = vsel %vm457, %v2288, %v2318
        %v2343 = vsel %vm457, %v2292, %v2322
        %v2344 = vsel %vm457, %v2296, %v2326
        %v2345 = vsel %vm457, %v2300, %v2330
        %v2346 = vsel %vm457, %v2304, %v2334
        %v2353 = vcombine.low %v2341, %v2342
        %v2355 = vunpack.c.l.s4 1983009808
        %v2356 = vunpack.c.0.s8 %v2355
        %v2357 = vlaneseq
        %v2358 = vshrl.u32 %v2357, 7
        %v2359 = vsub.s32 %v2356, %v2358
        %v2360 = vrot.slane %v2353, %v2359
        %v2361 = vcombine.low %v2343, %v2344
        %v2363 = vunpack.c.l.s4 1983009808
        %v2364 = vunpack.c.0.s8 %v2363
        %v2365 = vlaneseq
        %v2366 = vshrl.u32 %v2365, 7
        %v2367 = vsub.s32 %v2364, %v2366
        %v2368 = vrot.slane %v2361, %v2367
        %v2369 = vcombine.low %v2345, %v2346
        %v2371 = vunpack.c.l.s4 1983009808
        %v2372 = vunpack.c.0.s8 %v2371
        %v2373 = vlaneseq
        %v2374 = vshrl.u32 %v2373, 7
        %v2375 = vsub.s32 %v2372, %v2374
        %v2376 = vrot.slane %v2369, %v2375
        %v2377 = vcombine.low %v2360, %v2368
        %v2379 = vunpack.c.l.s4 1983009808
        %v2380 = vunpack.c.0.s8 %v2379
        %v2381 = vlaneseq
        %v2382 = vshrl.u32 %v2381, 7
        %v2383 = vsub.s32 %v2380, %v2382
        %v2384 = vrot.slane %v2377, %v2383
        %v2386 = vunpack.c.l.s4 1983009808
        %v2387 = vunpack.c.0.s8 %v2386
        %v2388 = vlaneseq
        %v2389 = vshrl.u32 %v2388, 7
        %v2390 = vsub.s32 %v2387, %v2389
        %v2391 = vrot.slane %v2376, %v2390
        %v2392 = vcombine.low %v2384, %v2391
        %v2393 = vcombine.high %v2384, %v2391
        %v2394 = vrot.slane %v2392, 7
        %v2395 = vrot.slane %v2393, 7
        %2398 = vst [vmem:[%s132 + $0x40] sm:$0x7e] %v2394
        %2399 = vst [vmem:[%s132 + $0x48] sm:$0x7e] %v2395
        %v2400 = vmul.f32 %v135, 201.06194
        %v2401 = vand.u32 2147483647, %v2400
        %vm2402 = vcmp.le.f32.partialorder %v2401, 0.7853982
        %vm2403 = vcmp.lt.s32.totalorder %v2400, 0
        %v2404 = vand.u32 %v2400, 2139095040
        %v2405 = vshrl.u32 %v2404, 23
        %v2406 = vsub.s32 %v2405, 127
        %v2407 = vand.u32 2147483647, %v2400
        %v2408 = vand.u32 %v2407, 8388607
        %v2409 = vor.u32 %v2408, 8388608
        %v2410 = vsub.s32 0, %v2409
        %v2411 = vadd.s32 %v2406, 1
        %vm2412 = vcmp.gt.s32.totalorder %v2411, 0
        %v2413 = vsel %vm2412, %v2411, 0
        %v2414 = vshrl.u32 %v2413, 5
        %v2415 = vand.u32 %v2413, 31
        %v2416 = vsub.s32 32, %v2415
        %v2417 = vshrl.u32 683565275, %v2416
        %v2418 = vshll.u32 683565275, %v2415
        %v2419 = vshrl.u32 2475754826, %v2416
        %v2420 = vor.u32 %v2418, %v2419
        %v2421 = vshll.u32 2475754826, %v2415
        %v2422 = vshrl.u32 2131351028, %v2416
        %v2423 = vor.u32 %v2421, %v2422
        %v2424 = vshll.u32 2131351028, %v2415
        %v2425 = vshrl.u32 2102212464, %v2416
        %v2426 = vor.u32 %v2424, %v2425
        %v2427 = vshll.u32 2102212464, %v2415
        %v2428 = vshrl.u32 920167782, %v2416
        %v2429 = vor.u32 %v2427, %v2428
        %v2430 = vshll.u32 920167782, %v2415
        %v2431 = vshrl.u32 1326507024, %v2416
        %v2432 = vor.u32 %v2430, %v2431
        %vm2433 = vcmp.lt.s32.totalorder %v2414, 1
        %vm2434 = vcmp.lt.s32.totalorder %v2414, 2
        %vm2435 = vcmp.lt.s32.totalorder %v2414, 3
        %vm2436 = vcmp.lt.s32.totalorder %v2414, 4
        %v2437 = vsel %vm2433, %v2417, %v2420
        %v2438 = vsel %vm2436, %v2426, 2102212464
        %v2439 = vsel %vm2435, %v2423, %v2438
        %v2440 = vsel %vm2434, %v2437, %v2439
        %v2441 = vsel %vm2433, %v2420, %v2423
        %v2442 = vsel %vm2436, %v2429, 920167782
        %v2443 = vsel %vm2435, %v2426, %v2442
        %v2444 = vsel %vm2434, %v2441, %v2443
        %v2445 = vsel %vm2433, %v2423, %v2426
        %v2446 = vsel %vm2436, %v2432, 1326507024
        %v2447 = vsel %vm2435, %v2429, %v2446
        %v2448 = vsel %vm2434, %v2445, %v2447
        %v2449 = vshll.u32 %v2409, 8
        %v2450 = vmul.u32.u64.compose %v2449, %v2448
        %v2451 = vextract.low.u32 %v2450
        %v2452 = vextract.high.u32 %v2450
        %v2453 = vmul.u32.u64.compose %v2449, %v2444
        %v2454 = vextract.low.u32 %v2453
        %v2455 = vextract.high.u32 %v2453
        %v2456 = vmul.u32 %v2449, %v2440
        %v2457 = vadd.s32 %v2452, %v2454
        %vm2458 = vc.u32 %v2452, %v2454
        %v2459 = vadd.s32 %v2455, 1
        %v2460 = vsel %vm2458, %v2459, %v2455
        %v2461 = vadd.s32 %v2456, %v2460
        %v2462 = vadd.s32 %v2461, 536870912
        %v2463 = vshrl.u32 %v2462, 30
        %v2464 = vshll.u32 %v2463, 30
        %v2465 = vsub.s32 %v2461, %v2464
        %vm2466 = vcmp.lt.s32.totalorder %v2465, 0
        %v2467 = vsub.s32 0, %v2465
        %v2468 = vsel %vm2466, %v2467, %v2465
        %v2469 = vclz %v2468
        %v2470 = vsub.s32 %v2469, 2
        %vm2471 = vcmp.gt.s32.totalorder 0, %v2470
        %v2472 = vsel %vm2471, 0, %v2470
        %v2473 = vsub.s32 32, %v2472
        %v2474 = vshll.u32 %v2465, %v2472
        %v2475 = vshrl.u32 %v2457, %v2473
        %v2476 = vor.u32 %v2474, %v2475
        %v2477 = vsub.s32 4294967266, %v2472
        %v2478 = vadd.s32 %v2477, 127
        %v2479 = vshll.u32 %v2478, 23
        %v2480 = vor.u32 4788187, %v2479
        %v2481 = vand.u32 2147483647, %v2480
        %v2483 = vcvt.s32.f32 %v2476
        %v2484 = vmul.f32 %v2483, %v2481
        %v2485 = vxor.u32 %v2484, 2147483648
        %v2486 = vsel %vm2403, %v2485, %v2484
        %v2487 = vsub.s32 4, %v2463
        %v2488 = vsel %vm2403, %v2487, %v2463
        %v2489 = vsel %vm2402, %v2400, %v2486
        %v2490 = vsel %vm2402, 0, %v2488
        %v2491 = vcosq.f32.pop %v2489
        %v2492 = vsinq.f32.pop %v2489
        %vm2493 = vweird.f32 %v2400
        %v2494 = vadd.s32 %v2490, 3
        %v2495 = vand.u32 %v2494, 3
        %vm2496 = vcmp.lt.s32.totalorder %v2495, 2
        %vm2497 = vcmp.eq.s32.totalorder %v2495, 0
        %v2498 = vxor.u32 %v2492, 2147483648
        %v2499 = vsel %vm2497, %v2491, %v2498
        %vm2500 = vcmp.eq.s32.totalorder %v2495, 2
        %v2501 = vxor.u32 %v2491, 2147483648
        %v2502 = vsel %vm2500, %v2501, %v2492
        %v2503 = vsel %vm2496, %v2499, %v2502
        %v2504 = vsel %vm2493, nan, %v2503
        %v2505 = vand.u32 2147483647, %v2400
        %vm2506 = vcmp.le.f32.partialorder %v2505, 0.7853982
        %vm2507 = vcmp.lt.s32.totalorder %v2400, 0
        %v2508 = vand.u32 %v2400, 2139095040
        %v2509 = vshrl.u32 %v2508, 23
        %v2510 = vsub.s32 %v2509, 127
        %v2511 = vand.u32 2147483647, %v2400
        %v2512 = vand.u32 %v2511, 8388607
        %v2513 = vor.u32 %v2512, 8388608
        %v2514 = vsub.s32 0, %v2513
        %v2515 = vadd.s32 %v2510, 1
        %vm2516 = vcmp.gt.s32.totalorder %v2515, 0
        %v2517 = vsel %vm2516, %v2515, 0
        %v2518 = vshrl.u32 %v2517, 5
        %v2519 = vand.u32 %v2517, 31
        %v2520 = vsub.s32 32, %v2519
        %v2521 = vshrl.u32 683565275, %v2520
        %v2522 = vshll.u32 683565275, %v2519
        %v2523 = vshrl.u32 2475754826, %v2520
        %v2524 = vor.u32 %v2522, %v2523
        %v2525 = vshll.u32 2475754826, %v2519
        %v2526 = vshrl.u32 2131351028, %v2520
        %v2527 = vor.u32 %v2525, %v2526
        %v2528 = vshll.u32 2131351028, %v2519
        %v2529 = vshrl.u32 2102212464, %v2520
        %v2530 = vor.u32 %v2528, %v2529
        %v2531 = vshll.u32 2102212464, %v2519
        %v2532 = vshrl.u32 920167782, %v2520
        %v2533 = vor.u32 %v2531, %v2532
        %v2534 = vshll.u32 920167782, %v2519
        %v2535 = vshrl.u32 1326507024, %v2520
        %v2536 = vor.u32 %v2534, %v2535
        %vm2537 = vcmp.lt.s32.totalorder %v2518, 1
        %vm2538 = vcmp.lt.s32.totalorder %v2518, 2
        %vm2539 = vcmp.lt.s32.totalorder %v2518, 3
        %vm2540 = vcmp.lt.s32.totalorder %v2518, 4
        %v2541 = vsel %vm2537, %v2521, %v2524
        %v2542 = vsel %vm2540, %v2530, 2102212464
        %v2543 = vsel %vm2539, %v2527, %v2542
        %v2544 = vsel %vm2538, %v2541, %v2543
        %v2545 = vsel %vm2537, %v2524, %v2527
        %v2546 = vsel %vm2540, %v2533, 920167782
        %v2547 = vsel %vm2539, %v2530, %v2546
        %v2548 = vsel %vm2538, %v2545, %v2547
        %v2549 = vsel %vm2537, %v2527, %v2530
        %v2550 = vsel %vm2540, %v2536, 1326507024
        %v2551 = vsel %vm2539, %v2533, %v2550
        %v2552 = vsel %vm2538, %v2549, %v2551
        %v2553 = vshll.u32 %v2513, 8
        %v2554 = vmul.u32.u64.compose %v2553, %v2552
        %v2555 = vextract.low.u32 %v2554
        %v2556 = vextract.high.u32 %v2554
        %v2557 = vmul.u32.u64.compose %v2553, %v2548
        %v2558 = vextract.low.u32 %v2557
        %v2559 = vextract.high.u32 %v2557
        %v2560 = vmul.u32 %v2553, %v2544
        %v2561 = vadd.s32 %v2556, %v2558
        %vm2562 = vc.u32 %v2556, %v2558
        %v2563 = vadd.s32 %v2559, 1
        %v2564 = vsel %vm2562, %v2563, %v2559
        %v2565 = vadd.s32 %v2560, %v2564
        %v2566 = vadd.s32 %v2565, 536870912
        %v2567 = vshrl.u32 %v2566, 30
        %v2568 = vshll.u32 %v2567, 30
        %v2569 = vsub.s32 %v2565, %v2568
        %vm2570 = vcmp.lt.s32.totalorder %v2569, 0
        %v2571 = vsub.s32 0, %v2569
        %v2572 = vsel %vm2570, %v2571, %v2569
        %v2573 = vclz %v2572
        %v2574 = vsub.s32 %v2573, 2
        %vm2575 = vcmp.gt.s32.totalorder 0, %v2574
        %v2576 = vsel %vm2575, 0, %v2574
        %v2577 = vsub.s32 32, %v2576
        %v2578 = vshll.u32 %v2569, %v2576
        %v2579 = vshrl.u32 %v2561, %v2577
        %v2580 = vor.u32 %v2578, %v2579
        %v2581 = vsub.s32 4294967266, %v2576
        %v2582 = vadd.s32 %v2581, 127
        %v2583 = vshll.u32 %v2582, 23
        %v2584 = vor.u32 4788187, %v2583
        %v2585 = vand.u32 2147483647, %v2584
        %v2587 = vcvt.s32.f32 %v2580
        %v2588 = vmul.f32 %v2587, %v2585
        %v2589 = vxor.u32 %v2588, 2147483648
        %v2590 = vsel %vm2507, %v2589, %v2588
        %v2591 = vsub.s32 4, %v2567
        %v2592 = vsel %vm2507, %v2591, %v2567
        %v2593 = vsel %vm2506, %v2400, %v2590
        %v2594 = vsel %vm2506, 0, %v2592
        %v2595 = vcosq.f32.pop %v2593
        %v2596 = vsinq.f32.pop %v2593
        %vm2597 = vweird.f32 %v2400
        %v2598 = vand.u32 %v2594, 3
        %vm2599 = vcmp.lt.s32.totalorder %v2598, 2
        %vm2600 = vcmp.eq.s32.totalorder %v2598, 0
        %v2601 = vxor.u32 %v2596, 2147483648
        %v2602 = vsel %vm2600, %v2595, %v2601
        %vm2603 = vcmp.eq.s32.totalorder %v2598, 2
        %v2604 = vxor.u32 %v2595, 2147483648
        %v2605 = vsel %vm2603, %v2604, %v2596
        %v2606 = vsel %vm2599, %v2602, %v2605
        %v2607 = vsel %vm2597, nan, %v2606
        %v2610 = vunpack.c.l.s4 1966171168
        %v2611 = vunpack.c.0.s8 %v2610
        %v2612 = vlaneseq
        %v2613 = vshrl.u32 %v2612, 7
        %v2614 = vsub.s32 %v2611, %v2613
        %v2615 = vrot.slane %v2504, %v2614
        %v2616 = vcombine.high %v2615, %v2615
        %v2618 = vunpack.c.l.s4 1966171168
        %v2619 = vunpack.c.0.s8 %v2618
        %v2620 = vlaneseq
        %v2621 = vshrl.u32 %v2620, 7
        %v2622 = vsub.s32 %v2619, %v2621
        %v2623 = vrot.slane %v2615, %v2622
        %v2625 = vunpack.c.l.s4 1966171168
        %v2626 = vunpack.c.0.s8 %v2625
        %v2627 = vlaneseq
        %v2628 = vshrl.u32 %v2627, 7
        %v2629 = vsub.s32 %v2626, %v2628
        %v2630 = vrot.slane %v2616, %v2629
        %v2631 = vcombine.high %v2623, %v2623
        %v2634 = vunpack.c.l.s4 1966171168
        %v2635 = vunpack.c.0.s8 %v2634
        %v2636 = vlaneseq
        %v2637 = vshrl.u32 %v2636, 7
        %v2638 = vsub.s32 %v2635, %v2637
        %v2639 = vrot.slane %v2607, %v2638
        %v2640 = vcombine.high %v2639, %v2639
        %v2642 = vunpack.c.l.s4 1966171168
        %v2643 = vunpack.c.0.s8 %v2642
        %v2644 = vlaneseq
        %v2645 = vshrl.u32 %v2644, 7
        %v2646 = vsub.s32 %v2643, %v2645
        %v2647 = vrot.slane %v2639, %v2646
        %v2649 = vunpack.c.l.s4 1966171168
        %v2650 = vunpack.c.0.s8 %v2649
        %v2651 = vlaneseq
        %v2652 = vshrl.u32 %v2651, 7
        %v2653 = vsub.s32 %v2650, %v2652
        %v2654 = vrot.slane %v2640, %v2653
        %v2655 = vcombine.high %v2647, %v2647
        %v2656 = vlaneseq
        %v2657 = vshrl.u32 %v2656, 7
        %v2658 = vsub.s32 0, %v2657
        %v2659 = vrot.slane %v2623, %v2658
        %v2660 = vlaneseq
        %v2661 = vshrl.u32 %v2660, 7
        %v2662 = vsub.s32 1, %v2661
        %v2663 = vrot.slane %v2623, %v2662
        %v2664 = vlaneseq
        %v2665 = vshrl.u32 %v2664, 7
        %v2666 = vsub.s32 0, %v2665
        %v2667 = vrot.slane %v2630, %v2666
        %v2668 = vlaneseq
        %v2669 = vshrl.u32 %v2668, 7
        %v2670 = vsub.s32 1, %v2669
        %v2671 = vrot.slane %v2630, %v2670
        %v2672 = vlaneseq
        %v2673 = vshrl.u32 %v2672, 7
        %v2674 = vsub.s32 0, %v2673
        %v2675 = vrot.slane %v2631, %v2674
        %v2676 = vlaneseq
        %v2677 = vshrl.u32 %v2676, 7
        %v2678 = vsub.s32 1, %v2677
        %v2679 = vrot.slane %v2631, %v2678
        %v2686 = vlaneseq
        %v2687 = vshrl.u32 %v2686, 7
        %v2688 = vsub.s32 0, %v2687
        %v2689 = vrot.slane %v2647, %v2688
        %v2690 = vlaneseq
        %v2691 = vshrl.u32 %v2690, 7
        %v2692 = vsub.s32 1, %v2691
        %v2693 = vrot.slane %v2647, %v2692
        %v2694 = vlaneseq
        %v2695 = vshrl.u32 %v2694, 7
        %v2696 = vsub.s32 0, %v2695
        %v2697 = vrot.slane %v2654, %v2696
        %v2698 = vlaneseq
        %v2699 = vshrl.u32 %v2698, 7
        %v2700 = vsub.s32 1, %v2699
        %v2701 = vrot.slane %v2654, %v2700
        %v2702 = vlaneseq
        %v2703 = vshrl.u32 %v2702, 7
        %v2704 = vsub.s32 0, %v2703
        %v2705 = vrot.slane %v2655, %v2704
        %v2706 = vlaneseq
        %v2707 = vshrl.u32 %v2706, 7
        %v2708 = vsub.s32 1, %v2707
        %v2709 = vrot.slane %v2655, %v2708
        %v2716 = vsel %vm457, %v2659, %v2689
        %v2717 = vsel %vm457, %v2663, %v2693
        %v2718 = vsel %vm457, %v2667, %v2697
        %v2719 = vsel %vm457, %v2671, %v2701
        %v2720 = vsel %vm457, %v2675, %v2705
        %v2721 = vsel %vm457, %v2679, %v2709
        %v2728 = vcombine.low %v2716, %v2717
        %v2730 = vunpack.c.l.s4 1983009808
        %v2731 = vunpack.c.0.s8 %v2730
        %v2732 = vlaneseq
        %v2733 = vshrl.u32 %v2732, 7
        %v2734 = vsub.s32 %v2731, %v2733
        %v2735 = vrot.slane %v2728, %v2734
        %v2736 = vcombine.low %v2718, %v2719
        %v2738 = vunpack.c.l.s4 1983009808
        %v2739 = vunpack.c.0.s8 %v2738
        %v2740 = vlaneseq
        %v2741 = vshrl.u32 %v2740, 7
        %v2742 = vsub.s32 %v2739, %v2741
        %v2743 = vrot.slane %v2736, %v2742
        %v2744 = vcombine.low %v2720, %v2721
        %v2746 = vunpack.c.l.s4 1983009808
        %v2747 = vunpack.c.0.s8 %v2746
        %v2748 = vlaneseq
        %v2749 = vshrl.u32 %v2748, 7
        %v2750 = vsub.s32 %v2747, %v2749
        %v2751 = vrot.slane %v2744, %v2750
        %v2752 = vcombine.low %v2735, %v2743
        %v2754 = vunpack.c.l.s4 1983009808
        %v2755 = vunpack.c.0.s8 %v2754
        %v2756 = vlaneseq
        %v2757 = vshrl.u32 %v2756, 7
        %v2758 = vsub.s32 %v2755, %v2757
        %v2759 = vrot.slane %v2752, %v2758
        %v2761 = vunpack.c.l.s4 1983009808
        %v2762 = vunpack.c.0.s8 %v2761
        %v2763 = vlaneseq
        %v2764 = vshrl.u32 %v2763, 7
        %v2765 = vsub.s32 %v2762, %v2764
        %v2766 = vrot.slane %v2751, %v2765
        %v2767 = vcombine.low %v2759, %v2766
        %v2768 = vcombine.high %v2759, %v2766
        %v2769 = vrot.slane %v2767, 1
        %v2770 = vrot.slane %v2768, 1
        %2773 = vst [vmem:[%s132 + $0x40] sm:$0x80] %v2769
        %2774 = vst [vmem:[%s132 + $0x48] sm:$0x80] %v2770
        %2775 = vst [vmem:[%s132 + $0x50] sm:$0x1f] %v2769
        %2776 = vst [vmem:[%s132 + $0x58] sm:$0x1f] %v2770
        %v2777 = vmul.f32 %v135, 402.12387
        %v2778 = vand.u32 2147483647, %v2777
        %vm2779 = vcmp.le.f32.partialorder %v2778, 0.7853982
        %vm2780 = vcmp.lt.s32.totalorder %v2777, 0
        %v2781 = vand.u32 %v2777, 2139095040
        %v2782 = vshrl.u32 %v2781, 23
        %v2783 = vsub.s32 %v2782, 127
        %v2784 = vand.u32 2147483647, %v2777
        %v2785 = vand.u32 %v2784, 8388607
        %v2786 = vor.u32 %v2785, 8388608
        %v2787 = vsub.s32 0, %v2786
        %v2788 = vadd.s32 %v2783, 1
        %vm2789 = vcmp.gt.s32.totalorder %v2788, 0
        %v2790 = vsel %vm2789, %v2788, 0
        %v2791 = vshrl.u32 %v2790, 5
        %v2792 = vand.u32 %v2790, 31
        %v2793 = vsub.s32 32, %v2792
        %v2794 = vshrl.u32 683565275, %v2793
        %v2795 = vshll.u32 683565275, %v2792
        %v2796 = vshrl.u32 2475754826, %v2793
        %v2797 = vor.u32 %v2795, %v2796
        %v2798 = vshll.u32 2475754826, %v2792
        %v2799 = vshrl.u32 2131351028, %v2793
        %v2800 = vor.u32 %v2798, %v2799
        %v2801 = vshll.u32 2131351028, %v2792
        %v2802 = vshrl.u32 2102212464, %v2793
        %v2803 = vor.u32 %v2801, %v2802
        %v2804 = vshll.u32 2102212464, %v2792
        %v2805 = vshrl.u32 920167782, %v2793
        %v2806 = vor.u32 %v2804, %v2805
        %v2807 = vshll.u32 920167782, %v2792
        %v2808 = vshrl.u32 1326507024, %v2793
        %v2809 = vor.u32 %v2807, %v2808
        %vm2810 = vcmp.lt.s32.totalorder %v2791, 1
        %vm2811 = vcmp.lt.s32.totalorder %v2791, 2
        %vm2812 = vcmp.lt.s32.totalorder %v2791, 3
        %vm2813 = vcmp.lt.s32.totalorder %v2791, 4
        %v2814 = vsel %vm2810, %v2794, %v2797
        %v2815 = vsel %vm2813, %v2803, 2102212464
        %v2816 = vsel %vm2812, %v2800, %v2815
        %v2817 = vsel %vm2811, %v2814, %v2816
        %v2818 = vsel %vm2810, %v2797, %v2800
        %v2819 = vsel %vm2813, %v2806, 920167782
        %v2820 = vsel %vm2812, %v2803, %v2819
        %v2821 = vsel %vm2811, %v2818, %v2820
        %v2822 = vsel %vm2810, %v2800, %v2803
        %v2823 = vsel %vm2813, %v2809, 1326507024
        %v2824 = vsel %vm2812, %v2806, %v2823
        %v2825 = vsel %vm2811, %v2822, %v2824
        %v2826 = vshll.u32 %v2786, 8
        %v2827 = vmul.u32.u64.compose %v2826, %v2825
        %v2828 = vextract.low.u32 %v2827
        %v2829 = vextract.high.u32 %v2827
        %v2830 = vmul.u32.u64.compose %v2826, %v2821
        %v2831 = vextract.low.u32 %v2830
        %v2832 = vextract.high.u32 %v2830
        %v2833 = vmul.u32 %v2826, %v2817
        %v2834 = vadd.s32 %v2829, %v2831
        %vm2835 = vc.u32 %v2829, %v2831
        %v2836 = vadd.s32 %v2832, 1
        %v2837 = vsel %vm2835, %v2836, %v2832
        %v2838 = vadd.s32 %v2833, %v2837
        %v2839 = vadd.s32 %v2838, 536870912
        %v2840 = vshrl.u32 %v2839, 30
        %v2841 = vshll.u32 %v2840, 30
        %v2842 = vsub.s32 %v2838, %v2841
        %vm2843 = vcmp.lt.s32.totalorder %v2842, 0
        %v2844 = vsub.s32 0, %v2842
        %v2845 = vsel %vm2843, %v2844, %v2842
        %v2846 = vclz %v2845
        %v2847 = vsub.s32 %v2846, 2
        %vm2848 = vcmp.gt.s32.totalorder 0, %v2847
        %v2849 = vsel %vm2848, 0, %v2847
        %v2850 = vsub.s32 32, %v2849
        %v2851 = vshll.u32 %v2842, %v2849
        %v2852 = vshrl.u32 %v2834, %v2850
        %v2853 = vor.u32 %v2851, %v2852
        %v2854 = vsub.s32 4294967266, %v2849
        %v2855 = vadd.s32 %v2854, 127
        %v2856 = vshll.u32 %v2855, 23
        %v2857 = vor.u32 4788187, %v2856
        %v2858 = vand.u32 2147483647, %v2857
        %v2860 = vcvt.s32.f32 %v2853
        %v2861 = vmul.f32 %v2860, %v2858
        %v2862 = vxor.u32 %v2861, 2147483648
        %v2863 = vsel %vm2780, %v2862, %v2861
        %v2864 = vsub.s32 4, %v2840
        %v2865 = vsel %vm2780, %v2864, %v2840
        %v2866 = vsel %vm2779, %v2777, %v2863
        %v2867 = vsel %vm2779, 0, %v2865
        %v2868 = vcosq.f32.pop %v2866
        %v2869 = vsinq.f32.pop %v2866
        %vm2870 = vweird.f32 %v2777
        %v2871 = vadd.s32 %v2867, 3
        %v2872 = vand.u32 %v2871, 3
        %vm2873 = vcmp.lt.s32.totalorder %v2872, 2
        %vm2874 = vcmp.eq.s32.totalorder %v2872, 0
        %v2875 = vxor.u32 %v2869, 2147483648
        %v2876 = vsel %vm2874, %v2868, %v2875
        %vm2877 = vcmp.eq.s32.totalorder %v2872, 2
        %v2878 = vxor.u32 %v2868, 2147483648
        %v2879 = vsel %vm2877, %v2878, %v2869
        %v2880 = vsel %vm2873, %v2876, %v2879
        %v2881 = vsel %vm2870, nan, %v2880
        %v2882 = vand.u32 2147483647, %v2777
        %vm2883 = vcmp.le.f32.partialorder %v2882, 0.7853982
        %vm2884 = vcmp.lt.s32.totalorder %v2777, 0
        %v2885 = vand.u32 %v2777, 2139095040
        %v2886 = vshrl.u32 %v2885, 23
        %v2887 = vsub.s32 %v2886, 127
        %v2888 = vand.u32 2147483647, %v2777
        %v2889 = vand.u32 %v2888, 8388607
        %v2890 = vor.u32 %v2889, 8388608
        %v2891 = vsub.s32 0, %v2890
        %v2892 = vadd.s32 %v2887, 1
        %vm2893 = vcmp.gt.s32.totalorder %v2892, 0
        %v2894 = vsel %vm2893, %v2892, 0
        %v2895 = vshrl.u32 %v2894, 5
        %v2896 = vand.u32 %v2894, 31
        %v2897 = vsub.s32 32, %v2896
        %v2898 = vshrl.u32 683565275, %v2897
        %v2899 = vshll.u32 683565275, %v2896
        %v2900 = vshrl.u32 2475754826, %v2897
        %v2901 = vor.u32 %v2899, %v2900
        %v2902 = vshll.u32 2475754826, %v2896
        %v2903 = vshrl.u32 2131351028, %v2897
        %v2904 = vor.u32 %v2902, %v2903
        %v2905 = vshll.u32 2131351028, %v2896
        %v2906 = vshrl.u32 2102212464, %v2897
        %v2907 = vor.u32 %v2905, %v2906
        %v2908 = vshll.u32 2102212464, %v2896
        %v2909 = vshrl.u32 920167782, %v2897
        %v2910 = vor.u32 %v2908, %v2909
        %v2911 = vshll.u32 920167782, %v2896
        %v2912 = vshrl.u32 1326507024, %v2897
        %v2913 = vor.u32 %v2911, %v2912
        %vm2914 = vcmp.lt.s32.totalorder %v2895, 1
        %vm2915 = vcmp.lt.s32.totalorder %v2895, 2
        %vm2916 = vcmp.lt.s32.totalorder %v2895, 3
        %vm2917 = vcmp.lt.s32.totalorder %v2895, 4
        %v2918 = vsel %vm2914, %v2898, %v2901
        %v2919 = vsel %vm2917, %v2907, 2102212464
        %v2920 = vsel %vm2916, %v2904, %v2919
        %v2921 = vsel %vm2915, %v2918, %v2920
        %v2922 = vsel %vm2914, %v2901, %v2904
        %v2923 = vsel %vm2917, %v2910, 920167782
        %v2924 = vsel %vm2916, %v2907, %v2923
        %v2925 = vsel %vm2915, %v2922, %v2924
        %v2926 = vsel %vm2914, %v2904, %v2907
        %v2927 = vsel %vm2917, %v2913, 1326507024
        %v2928 = vsel %vm2916, %v2910, %v2927
        %v2929 = vsel %vm2915, %v2926, %v2928
        %v2930 = vshll.u32 %v2890, 8
        %v2931 = vmul.u32.u64.compose %v2930, %v2929
        %v2932 = vextract.low.u32 %v2931
        %v2933 = vextract.high.u32 %v2931
        %v2934 = vmul.u32.u64.compose %v2930, %v2925
        %v2935 = vextract.low.u32 %v2934
        %v2936 = vextract.high.u32 %v2934
        %v2937 = vmul.u32 %v2930, %v2921
        %v2938 = vadd.s32 %v2933, %v2935
        %vm2939 = vc.u32 %v2933, %v2935
        %v2940 = vadd.s32 %v2936, 1
        %v2941 = vsel %vm2939, %v2940, %v2936
        %v2942 = vadd.s32 %v2937, %v2941
        %v2943 = vadd.s32 %v2942, 536870912
        %v2944 = vshrl.u32 %v2943, 30
        %v2945 = vshll.u32 %v2944, 30
        %v2946 = vsub.s32 %v2942, %v2945
        %vm2947 = vcmp.lt.s32.totalorder %v2946, 0
        %v2948 = vsub.s32 0, %v2946
        %v2949 = vsel %vm2947, %v2948, %v2946
        %v2950 = vclz %v2949
        %v2951 = vsub.s32 %v2950, 2
        %vm2952 = vcmp.gt.s32.totalorder 0, %v2951
        %v2953 = vsel %vm2952, 0, %v2951
        %v2954 = vsub.s32 32, %v2953
        %v2955 = vshll.u32 %v2946, %v2953
        %v2956 = vshrl.u32 %v2938, %v2954
        %v2957 = vor.u32 %v2955, %v2956
        %v2958 = vsub.s32 4294967266, %v2953
        %v2959 = vadd.s32 %v2958, 127
        %v2960 = vshll.u32 %v2959, 23
        %v2961 = vor.u32 4788187, %v2960
        %v2962 = vand.u32 2147483647, %v2961
        %v2964 = vcvt.s32.f32 %v2957
        %v2965 = vmul.f32 %v2964, %v2962
        %v2966 = vxor.u32 %v2965, 2147483648
        %v2967 = vsel %vm2884, %v2966, %v2965
        %v2968 = vsub.s32 4, %v2944
        %v2969 = vsel %vm2884, %v2968, %v2944
        %v2970 = vsel %vm2883, %v2777, %v2967
        %v2971 = vsel %vm2883, 0, %v2969
        %v2972 = vcosq.f32.pop %v2970
        %v2973 = vsinq.f32.pop %v2970
        %vm2974 = vweird.f32 %v2777
        %v2975 = vand.u32 %v2971, 3
        %vm2976 = vcmp.lt.s32.totalorder %v2975, 2
        %vm2977 = vcmp.eq.s32.totalorder %v2975, 0
        %v2978 = vxor.u32 %v2973, 2147483648
        %v2979 = vsel %vm2977, %v2972, %v2978
        %vm2980 = vcmp.eq.s32.totalorder %v2975, 2
        %v2981 = vxor.u32 %v2972, 2147483648
        %v2982 = vsel %vm2980, %v2981, %v2973
        %v2983 = vsel %vm2976, %v2979, %v2982
        %v2984 = vsel %vm2974, nan, %v2983
        %v2987 = vunpack.c.l.s4 1966171168
        %v2988 = vunpack.c.0.s8 %v2987
        %v2989 = vlaneseq
        %v2990 = vshrl.u32 %v2989, 7
        %v2991 = vsub.s32 %v2988, %v2990
        %v2992 = vrot.slane %v2881, %v2991
        %v2993 = vcombine.high %v2992, %v2992
        %v2995 = vunpack.c.l.s4 1966171168
        %v2996 = vunpack.c.0.s8 %v2995
        %v2997 = vlaneseq
        %v2998 = vshrl.u32 %v2997, 7
        %v2999 = vsub.s32 %v2996, %v2998
        %v3000 = vrot.slane %v2992, %v2999
        %v3002 = vunpack.c.l.s4 1966171168
        %v3003 = vunpack.c.0.s8 %v3002
        %v3004 = vlaneseq
        %v3005 = vshrl.u32 %v3004, 7
        %v3006 = vsub.s32 %v3003, %v3005
        %v3007 = vrot.slane %v2993, %v3006
        %v3008 = vcombine.high %v3000, %v3000
        %v3011 = vunpack.c.l.s4 1966171168
        %v3012 = vunpack.c.0.s8 %v3011
        %v3013 = vlaneseq
        %v3014 = vshrl.u32 %v3013, 7
        %v3015 = vsub.s32 %v3012, %v3014
        %v3016 = vrot.slane %v2984, %v3015
        %v3017 = vcombine.high %v3016, %v3016
        %v3019 = vunpack.c.l.s4 1966171168
        %v3020 = vunpack.c.0.s8 %v3019
        %v3021 = vlaneseq
        %v3022 = vshrl.u32 %v3021, 7
        %v3023 = vsub.s32 %v3020, %v3022
        %v3024 = vrot.slane %v3016, %v3023
        %v3026 = vunpack.c.l.s4 1966171168
        %v3027 = vunpack.c.0.s8 %v3026
        %v3028 = vlaneseq
        %v3029 = vshrl.u32 %v3028, 7
        %v3030 = vsub.s32 %v3027, %v3029
        %v3031 = vrot.slane %v3017, %v3030
        %v3032 = vcombine.high %v3024, %v3024
        %v3033 = vlaneseq
        %v3034 = vshrl.u32 %v3033, 7
        %v3035 = vsub.s32 0, %v3034
        %v3036 = vrot.slane %v3000, %v3035
        %v3037 = vlaneseq
        %v3038 = vshrl.u32 %v3037, 7
        %v3039 = vsub.s32 1, %v3038
        %v3040 = vrot.slane %v3000, %v3039
        %v3041 = vlaneseq
        %v3042 = vshrl.u32 %v3041, 7
        %v3043 = vsub.s32 0, %v3042
        %v3044 = vrot.slane %v3007, %v3043
        %v3045 = vlaneseq
        %v3046 = vshrl.u32 %v3045, 7
        %v3047 = vsub.s32 1, %v3046
        %v3048 = vrot.slane %v3007, %v3047
        %v3049 = vlaneseq
        %v3050 = vshrl.u32 %v3049, 7
        %v3051 = vsub.s32 0, %v3050
        %v3052 = vrot.slane %v3008, %v3051
        %v3053 = vlaneseq
        %v3054 = vshrl.u32 %v3053, 7
        %v3055 = vsub.s32 1, %v3054
        %v3056 = vrot.slane %v3008, %v3055
        %v3063 = vlaneseq
        %v3064 = vshrl.u32 %v3063, 7
        %v3065 = vsub.s32 0, %v3064
        %v3066 = vrot.slane %v3024, %v3065
        %v3067 = vlaneseq
        %v3068 = vshrl.u32 %v3067, 7
        %v3069 = vsub.s32 1, %v3068
        %v3070 = vrot.slane %v3024, %v3069
        %v3071 = vlaneseq
        %v3072 = vshrl.u32 %v3071, 7
        %v3073 = vsub.s32 0, %v3072
        %v3074 = vrot.slane %v3031, %v3073
        %v3075 = vlaneseq
        %v3076 = vshrl.u32 %v3075, 7
        %v3077 = vsub.s32 1, %v3076
        %v3078 = vrot.slane %v3031, %v3077
        %v3079 = vlaneseq
        %v3080 = vshrl.u32 %v3079, 7
        %v3081 = vsub.s32 0, %v3080
        %v3082 = vrot.slane %v3032, %v3081
        %v3083 = vlaneseq
        %v3084 = vshrl.u32 %v3083, 7
        %v3085 = vsub.s32 1, %v3084
        %v3086 = vrot.slane %v3032, %v3085
        %v3093 = vsel %vm457, %v3036, %v3066
        %v3094 = vsel %vm457, %v3040, %v3070
        %v3095 = vsel %vm457, %v3044, %v3074
        %v3096 = vsel %vm457, %v3048, %v3078
        %v3097 = vsel %vm457, %v3052, %v3082
        %v3098 = vsel %vm457, %v3056, %v3086
        %v3105 = vcombine.low %v3093, %v3094
        %v3107 = vunpack.c.l.s4 1983009808
        %v3108 = vunpack.c.0.s8 %v3107
        %v3109 = vlaneseq
        %v3110 = vshrl.u32 %v3109, 7
        %v3111 = vsub.s32 %v3108, %v3110
        %v3112 = vrot.slane %v3105, %v3111
        %v3113 = vcombine.low %v3095, %v3096
        %v3115 = vunpack.c.l.s4 1983009808
        %v3116 = vunpack.c.0.s8 %v3115
        %v3117 = vlaneseq
        %v3118 = vshrl.u32 %v3117, 7
        %v3119 = vsub.s32 %v3116, %v3118
        %v3120 = vrot.slane %v3113, %v3119
        %v3121 = vcombine.low %v3097, %v3098
        %v3123 = vunpack.c.l.s4 1983009808
        %v3124 = vunpack.c.0.s8 %v3123
        %v3125 = vlaneseq
        %v3126 = vshrl.u32 %v3125, 7
        %v3127 = vsub.s32 %v3124, %v3126
        %v3128 = vrot.slane %v3121, %v3127
        %v3129 = vcombine.low %v3112, %v3120
        %v3131 = vunpack.c.l.s4 1983009808
        %v3132 = vunpack.c.0.s8 %v3131
        %v3133 = vlaneseq
        %v3134 = vshrl.u32 %v3133, 7
        %v3135 = vsub.s32 %v3132, %v3134
        %v3136 = vrot.slane %v3129, %v3135
        %v3138 = vunpack.c.l.s4 1983009808
        %v3139 = vunpack.c.0.s8 %v3138
        %v3140 = vlaneseq
        %v3141 = vshrl.u32 %v3140, 7
        %v3142 = vsub.s32 %v3139, %v3141
        %v3143 = vrot.slane %v3128, %v3142
        %v3144 = vcombine.low %v3136, %v3143
        %v3145 = vcombine.high %v3136, %v3143
        %v3146 = vrot.slane %v3144, 3
        %v3147 = vrot.slane %v3145, 3
        %3150 = vst [vmem:[%s132 + $0x50] sm:$0xe0] %v3146
        %3151 = vst [vmem:[%s132 + $0x58] sm:$0xe0] %v3147
        %3152 = vst [vmem:[%s132 + $0x60] sm:$0x7] %v3146
        %3153 = vst [vmem:[%s132 + $0x68] sm:$0x7] %v3147
        %v3154 = vmul.f32 %v135, 804.24774
        %v3155 = vand.u32 2147483647, %v3154
        %vm3156 = vcmp.le.f32.partialorder %v3155, 0.7853982
        %vm3157 = vcmp.lt.s32.totalorder %v3154, 0
        %v3158 = vand.u32 %v3154, 2139095040
        %v3159 = vshrl.u32 %v3158, 23
        %v3160 = vsub.s32 %v3159, 127
        %v3161 = vand.u32 2147483647, %v3154
        %v3162 = vand.u32 %v3161, 8388607
        %v3163 = vor.u32 %v3162, 8388608
        %v3164 = vsub.s32 0, %v3163
        %v3165 = vadd.s32 %v3160, 1
        %vm3166 = vcmp.gt.s32.totalorder %v3165, 0
        %v3167 = vsel %vm3166, %v3165, 0
        %v3168 = vshrl.u32 %v3167, 5
        %v3169 = vand.u32 %v3167, 31
        %v3170 = vsub.s32 32, %v3169
        %v3171 = vshrl.u32 683565275, %v3170
        %v3172 = vshll.u32 683565275, %v3169
        %v3173 = vshrl.u32 2475754826, %v3170
        %v3174 = vor.u32 %v3172, %v3173
        %v3175 = vshll.u32 2475754826, %v3169
        %v3176 = vshrl.u32 2131351028, %v3170
        %v3177 = vor.u32 %v3175, %v3176
        %v3178 = vshll.u32 2131351028, %v3169
        %v3179 = vshrl.u32 2102212464, %v3170
        %v3180 = vor.u32 %v3178, %v3179
        %v3181 = vshll.u32 2102212464, %v3169
        %v3182 = vshrl.u32 920167782, %v3170
        %v3183 = vor.u32 %v3181, %v3182
        %v3184 = vshll.u32 920167782, %v3169
        %v3185 = vshrl.u32 1326507024, %v3170
        %v3186 = vor.u32 %v3184, %v3185
        %vm3187 = vcmp.lt.s32.totalorder %v3168, 1
        %vm3188 = vcmp.lt.s32.totalorder %v3168, 2
        %vm3189 = vcmp.lt.s32.totalorder %v3168, 3
        %vm3190 = vcmp.lt.s32.totalorder %v3168, 4
        %v3191 = vsel %vm3187, %v3171, %v3174
        %v3192 = vsel %vm3190, %v3180, 2102212464
        %v3193 = vsel %vm3189, %v3177, %v3192
        %v3194 = vsel %vm3188, %v3191, %v3193
        %v3195 = vsel %vm3187, %v3174, %v3177
        %v3196 = vsel %vm3190, %v3183, 920167782
        %v3197 = vsel %vm3189, %v3180, %v3196
        %v3198 = vsel %vm3188, %v3195, %v3197
        %v3199 = vsel %vm3187, %v3177, %v3180
        %v3200 = vsel %vm3190, %v3186, 1326507024
        %v3201 = vsel %vm3189, %v3183, %v3200
        %v3202 = vsel %vm3188, %v3199, %v3201
        %v3203 = vshll.u32 %v3163, 8
        %v3204 = vmul.u32.u64.compose %v3203, %v3202
        %v3205 = vextract.low.u32 %v3204
        %v3206 = vextract.high.u32 %v3204
        %v3207 = vmul.u32.u64.compose %v3203, %v3198
        %v3208 = vextract.low.u32 %v3207
        %v3209 = vextract.high.u32 %v3207
        %v3210 = vmul.u32 %v3203, %v3194
        %v3211 = vadd.s32 %v3206, %v3208
        %vm3212 = vc.u32 %v3206, %v3208
        %v3213 = vadd.s32 %v3209, 1
        %v3214 = vsel %vm3212, %v3213, %v3209
        %v3215 = vadd.s32 %v3210, %v3214
        %v3216 = vadd.s32 %v3215, 536870912
        %v3217 = vshrl.u32 %v3216, 30
        %v3218 = vshll.u32 %v3217, 30
        %v3219 = vsub.s32 %v3215, %v3218
        %vm3220 = vcmp.lt.s32.totalorder %v3219, 0
        %v3221 = vsub.s32 0, %v3219
        %v3222 = vsel %vm3220, %v3221, %v3219
        %v3223 = vclz %v3222
        %v3224 = vsub.s32 %v3223, 2
        %vm3225 = vcmp.gt.s32.totalorder 0, %v3224
        %v3226 = vsel %vm3225, 0, %v3224
        %v3227 = vsub.s32 32, %v3226
        %v3228 = vshll.u32 %v3219, %v3226
        %v3229 = vshrl.u32 %v3211, %v3227
        %v3230 = vor.u32 %v3228, %v3229
        %v3231 = vsub.s32 4294967266, %v3226
        %v3232 = vadd.s32 %v3231, 127
        %v3233 = vshll.u32 %v3232, 23
        %v3234 = vor.u32 4788187, %v3233
        %v3235 = vand.u32 2147483647, %v3234
        %v3237 = vcvt.s32.f32 %v3230
        %v3238 = vmul.f32 %v3237, %v3235
        %v3239 = vxor.u32 %v3238, 2147483648
        %v3240 = vsel %vm3157, %v3239, %v3238
        %v3241 = vsub.s32 4, %v3217
        %v3242 = vsel %vm3157, %v3241, %v3217
        %v3243 = vsel %vm3156, %v3154, %v3240
        %v3244 = vsel %vm3156, 0, %v3242
        %v3245 = vcosq.f32.pop %v3243
        %v3246 = vsinq.f32.pop %v3243
        %vm3247 = vweird.f32 %v3154
        %v3248 = vadd.s32 %v3244, 3
        %v3249 = vand.u32 %v3248, 3
        %vm3250 = vcmp.lt.s32.totalorder %v3249, 2
        %vm3251 = vcmp.eq.s32.totalorder %v3249, 0
        %v3252 = vxor.u32 %v3246, 2147483648
        %v3253 = vsel %vm3251, %v3245, %v3252
        %vm3254 = vcmp.eq.s32.totalorder %v3249, 2
        %v3255 = vxor.u32 %v3245, 2147483648
        %v3256 = vsel %vm3254, %v3255, %v3246
        %v3257 = vsel %vm3250, %v3253, %v3256
        %v3258 = vsel %vm3247, nan, %v3257
        %v3259 = vand.u32 2147483647, %v3154
        %vm3260 = vcmp.le.f32.partialorder %v3259, 0.7853982
        %vm3261 = vcmp.lt.s32.totalorder %v3154, 0
        %v3262 = vand.u32 %v3154, 2139095040
        %v3263 = vshrl.u32 %v3262, 23
        %v3264 = vsub.s32 %v3263, 127
        %v3265 = vand.u32 2147483647, %v3154
        %v3266 = vand.u32 %v3265, 8388607
        %v3267 = vor.u32 %v3266, 8388608
        %v3268 = vsub.s32 0, %v3267
        %v3269 = vadd.s32 %v3264, 1
        %vm3270 = vcmp.gt.s32.totalorder %v3269, 0
        %v3271 = vsel %vm3270, %v3269, 0
        %v3272 = vshrl.u32 %v3271, 5
        %v3273 = vand.u32 %v3271, 31
        %v3274 = vsub.s32 32, %v3273
        %v3275 = vshrl.u32 683565275, %v3274
        %v3276 = vshll.u32 683565275, %v3273
        %v3277 = vshrl.u32 2475754826, %v3274
        %v3278 = vor.u32 %v3276, %v3277
        %v3279 = vshll.u32 2475754826, %v3273
        %v3280 = vshrl.u32 2131351028, %v3274
        %v3281 = vor.u32 %v3279, %v3280
        %v3282 = vshll.u32 2131351028, %v3273
        %v3283 = vshrl.u32 2102212464, %v3274
        %v3284 = vor.u32 %v3282, %v3283
        %v3285 = vshll.u32 2102212464, %v3273
        %v3286 = vshrl.u32 920167782, %v3274
        %v3287 = vor.u32 %v3285, %v3286
        %v3288 = vshll.u32 920167782, %v3273
        %v3289 = vshrl.u32 1326507024, %v3274
        %v3290 = vor.u32 %v3288, %v3289
        %vm3291 = vcmp.lt.s32.totalorder %v3272, 1
        %vm3292 = vcmp.lt.s32.totalorder %v3272, 2
        %vm3293 = vcmp.lt.s32.totalorder %v3272, 3
        %vm3294 = vcmp.lt.s32.totalorder %v3272, 4
        %v3295 = vsel %vm3291, %v3275, %v3278
        %v3296 = vsel %vm3294, %v3284, 2102212464
        %v3297 = vsel %vm3293, %v3281, %v3296
        %v3298 = vsel %vm3292, %v3295, %v3297
        %v3299 = vsel %vm3291, %v3278, %v3281
        %v3300 = vsel %vm3294, %v3287, 920167782
        %v3301 = vsel %vm3293, %v3284, %v3300
        %v3302 = vsel %vm3292, %v3299, %v3301
        %v3303 = vsel %vm3291, %v3281, %v3284
        %v3304 = vsel %vm3294, %v3290, 1326507024
        %v3305 = vsel %vm3293, %v3287, %v3304
        %v3306 = vsel %vm3292, %v3303, %v3305
        %v3307 = vshll.u32 %v3267, 8
        %v3308 = vmul.u32.u64.compose %v3307, %v3306
        %v3309 = vextract.low.u32 %v3308
        %v3310 = vextract.high.u32 %v3308
        %v3311 = vmul.u32.u64.compose %v3307, %v3302
        %v3312 = vextract.low.u32 %v3311
        %v3313 = vextract.high.u32 %v3311
        %v3314 = vmul.u32 %v3307, %v3298
        %v3315 = vadd.s32 %v3310, %v3312
        %vm3316 = vc.u32 %v3310, %v3312
        %v3317 = vadd.s32 %v3313, 1
        %v3318 = vsel %vm3316, %v3317, %v3313
        %v3319 = vadd.s32 %v3314, %v3318
        %v3320 = vadd.s32 %v3319, 536870912
        %v3321 = vshrl.u32 %v3320, 30
        %v3322 = vshll.u32 %v3321, 30
        %v3323 = vsub.s32 %v3319, %v3322
        %vm3324 = vcmp.lt.s32.totalorder %v3323, 0
        %v3325 = vsub.s32 0, %v3323
        %v3326 = vsel %vm3324, %v3325, %v3323
        %v3327 = vclz %v3326
        %v3328 = vsub.s32 %v3327, 2
        %vm3329 = vcmp.gt.s32.totalorder 0, %v3328
        %v3330 = vsel %vm3329, 0, %v3328
        %v3331 = vsub.s32 32, %v3330
        %v3332 = vshll.u32 %v3323, %v3330
        %v3333 = vshrl.u32 %v3315, %v3331
        %v3334 = vor.u32 %v3332, %v3333
        %v3335 = vsub.s32 4294967266, %v3330
        %v3336 = vadd.s32 %v3335, 127
        %v3337 = vshll.u32 %v3336, 23
        %v3338 = vor.u32 4788187, %v3337
        %v3339 = vand.u32 2147483647, %v3338
        %v3341 = vcvt.s32.f32 %v3334
        %v3342 = vmul.f32 %v3341, %v3339
        %v3343 = vxor.u32 %v3342, 2147483648
        %v3344 = vsel %vm3261, %v3343, %v3342
        %v3345 = vsub.s32 4, %v3321
        %v3346 = vsel %vm3261, %v3345, %v3321
        %v3347 = vsel %vm3260, %v3154, %v3344
        %v3348 = vsel %vm3260, 0, %v3346
        %v3349 = vcosq.f32.pop %v3347
        %v3350 = vsinq.f32.pop %v3347
        %vm3351 = vweird.f32 %v3154
        %v3352 = vand.u32 %v3348, 3
        %vm3353 = vcmp.lt.s32.totalorder %v3352, 2
        %vm3354 = vcmp.eq.s32.totalorder %v3352, 0
        %v3355 = vxor.u32 %v3350, 2147483648
        %v3356 = vsel %vm3354, %v3349, %v3355
        %vm3357 = vcmp.eq.s32.totalorder %v3352, 2
        %v3358 = vxor.u32 %v3349, 2147483648
        %v3359 = vsel %vm3357, %v3358, %v3350
        %v3360 = vsel %vm3353, %v3356, %v3359
        %v3361 = vsel %vm3351, nan, %v3360
        %v3364 = vunpack.c.l.s4 1966171168
        %v3365 = vunpack.c.0.s8 %v3364
        %v3366 = vlaneseq
        %v3367 = vshrl.u32 %v3366, 7
        %v3368 = vsub.s32 %v3365, %v3367
        %v3369 = vrot.slane %v3258, %v3368
        %v3370 = vcombine.high %v3369, %v3369
        %v3372 = vunpack.c.l.s4 1966171168
        %v3373 = vunpack.c.0.s8 %v3372
        %v3374 = vlaneseq
        %v3375 = vshrl.u32 %v3374, 7
        %v3376 = vsub.s32 %v3373, %v3375
        %v3377 = vrot.slane %v3369, %v3376
        %v3379 = vunpack.c.l.s4 1966171168
        %v3380 = vunpack.c.0.s8 %v3379
        %v3381 = vlaneseq
        %v3382 = vshrl.u32 %v3381, 7
        %v3383 = vsub.s32 %v3380, %v3382
        %v3384 = vrot.slane %v3370, %v3383
        %v3385 = vcombine.high %v3377, %v3377
        %v3388 = vunpack.c.l.s4 1966171168
        %v3389 = vunpack.c.0.s8 %v3388
        %v3390 = vlaneseq
        %v3391 = vshrl.u32 %v3390, 7
        %v3392 = vsub.s32 %v3389, %v3391
        %v3393 = vrot.slane %v3361, %v3392
        %v3394 = vcombine.high %v3393, %v3393
        %v3396 = vunpack.c.l.s4 1966171168
        %v3397 = vunpack.c.0.s8 %v3396
        %v3398 = vlaneseq
        %v3399 = vshrl.u32 %v3398, 7
        %v3400 = vsub.s32 %v3397, %v3399
        %v3401 = vrot.slane %v3393, %v3400
        %v3403 = vunpack.c.l.s4 1966171168
        %v3404 = vunpack.c.0.s8 %v3403
        %v3405 = vlaneseq
        %v3406 = vshrl.u32 %v3405, 7
        %v3407 = vsub.s32 %v3404, %v3406
        %v3408 = vrot.slane %v3394, %v3407
        %v3409 = vcombine.high %v3401, %v3401
        %v3410 = vlaneseq
        %v3411 = vshrl.u32 %v3410, 7
        %v3412 = vsub.s32 0, %v3411
        %v3413 = vrot.slane %v3377, %v3412
        %v3414 = vlaneseq
        %v3415 = vshrl.u32 %v3414, 7
        %v3416 = vsub.s32 1, %v3415
        %v3417 = vrot.slane %v3377, %v3416
        %v3418 = vlaneseq
        %v3419 = vshrl.u32 %v3418, 7
        %v3420 = vsub.s32 0, %v3419
        %v3421 = vrot.slane %v3384, %v3420
        %v3422 = vlaneseq
        %v3423 = vshrl.u32 %v3422, 7
        %v3424 = vsub.s32 1, %v3423
        %v3425 = vrot.slane %v3384, %v3424
        %v3426 = vlaneseq
        %v3427 = vshrl.u32 %v3426, 7
        %v3428 = vsub.s32 0, %v3427
        %v3429 = vrot.slane %v3385, %v3428
        %v3430 = vlaneseq
        %v3431 = vshrl.u32 %v3430, 7
        %v3432 = vsub.s32 1, %v3431
        %v3433 = vrot.slane %v3385, %v3432
        %v3440 = vlaneseq
        %v3441 = vshrl.u32 %v3440, 7
        %v3442 = vsub.s32 0, %v3441
        %v3443 = vrot.slane %v3401, %v3442
        %v3444 = vlaneseq
        %v3445 = vshrl.u32 %v3444, 7
        %v3446 = vsub.s32 1, %v3445
        %v3447 = vrot.slane %v3401, %v3446
        %v3448 = vlaneseq
        %v3449 = vshrl.u32 %v3448, 7
        %v3450 = vsub.s32 0, %v3449
        %v3451 = vrot.slane %v3408, %v3450
        %v3452 = vlaneseq
        %v3453 = vshrl.u32 %v3452, 7
        %v3454 = vsub.s32 1, %v3453
        %v3455 = vrot.slane %v3408, %v3454
        %v3456 = vlaneseq
        %v3457 = vshrl.u32 %v3456, 7
        %v3458 = vsub.s32 0, %v3457
        %v3459 = vrot.slane %v3409, %v3458
        %v3460 = vlaneseq
        %v3461 = vshrl.u32 %v3460, 7
        %v3462 = vsub.s32 1, %v3461
        %v3463 = vrot.slane %v3409, %v3462
        %v3470 = vsel %vm457, %v3413, %v3443
        %v3471 = vsel %vm457, %v3417, %v3447
        %v3472 = vsel %vm457, %v3421, %v3451
        %v3473 = vsel %vm457, %v3425, %v3455
        %v3474 = vsel %vm457, %v3429, %v3459
        %v3475 = vsel %vm457, %v3433, %v3463
        %v3482 = vcombine.low %v3470, %v3471
        %v3484 = vunpack.c.l.s4 1983009808
        %v3485 = vunpack.c.0.s8 %v3484
        %v3486 = vlaneseq
        %v3487 = vshrl.u32 %v3486, 7
        %v3488 = vsub.s32 %v3485, %v3487
        %v3489 = vrot.slane %v3482, %v3488
        %v3490 = vcombine.low %v3472, %v3473
        %v3492 = vunpack.c.l.s4 1983009808
        %v3493 = vunpack.c.0.s8 %v3492
        %v3494 = vlaneseq
        %v3495 = vshrl.u32 %v3494, 7
        %v3496 = vsub.s32 %v3493, %v3495
        %v3497 = vrot.slane %v3490, %v3496
        %v3498 = vcombine.low %v3474, %v3475
        %v3500 = vunpack.c.l.s4 1983009808
        %v3501 = vunpack.c.0.s8 %v3500
        %v3502 = vlaneseq
        %v3503 = vshrl.u32 %v3502, 7
        %v3504 = vsub.s32 %v3501, %v3503
        %v3505 = vrot.slane %v3498, %v3504
        %v3506 = vcombine.low %v3489, %v3497
        %v3508 = vunpack.c.l.s4 1983009808
        %v3509 = vunpack.c.0.s8 %v3508
        %v3510 = vlaneseq
        %v3511 = vshrl.u32 %v3510, 7
        %v3512 = vsub.s32 %v3509, %v3511
        %v3513 = vrot.slane %v3506, %v3512
        %v3515 = vunpack.c.l.s4 1983009808
        %v3516 = vunpack.c.0.s8 %v3515
        %v3517 = vlaneseq
        %v3518 = vshrl.u32 %v3517, 7
        %v3519 = vsub.s32 %v3516, %v3518
        %v3520 = vrot.slane %v3505, %v3519
        %v3521 = vcombine.low %v3513, %v3520
        %v3522 = vcombine.high %v3513, %v3520
        %v3523 = vrot.slane %v3521, 5
        %v3524 = vrot.slane %v3522, 5
        %3527 = vst [vmem:[%s132 + $0x60] sm:$0xf8] %v3523
        %3528 = vst [vmem:[%s132 + $0x68] sm:$0xf8] %v3524
        %3529 = vst [vmem:[%s132 + $0x70] sm:$0x1] %v3523
        %3530 = vst [vmem:[%s132 + $0x78] sm:$0x1] %v3524
        %v3531 = vmul.f32 %v135, 1608.4955
        %v3532 = vand.u32 2147483647, %v3531
        %vm3533 = vcmp.le.f32.partialorder %v3532, 0.7853982
        %vm3534 = vcmp.lt.s32.totalorder %v3531, 0
        %v3535 = vand.u32 %v3531, 2139095040
        %v3536 = vshrl.u32 %v3535, 23
        %v3537 = vsub.s32 %v3536, 127
        %v3538 = vand.u32 2147483647, %v3531
        %v3539 = vand.u32 %v3538, 8388607
        %v3540 = vor.u32 %v3539, 8388608
        %v3541 = vsub.s32 0, %v3540
        %v3542 = vadd.s32 %v3537, 1
        %vm3543 = vcmp.gt.s32.totalorder %v3542, 0
        %v3544 = vsel %vm3543, %v3542, 0
        %v3545 = vshrl.u32 %v3544, 5
        %v3546 = vand.u32 %v3544, 31
        %v3547 = vsub.s32 32, %v3546
        %v3548 = vshrl.u32 683565275, %v3547
        %v3549 = vshll.u32 683565275, %v3546
        %v3550 = vshrl.u32 2475754826, %v3547
        %v3551 = vor.u32 %v3549, %v3550
        %v3552 = vshll.u32 2475754826, %v3546
        %v3553 = vshrl.u32 2131351028, %v3547
        %v3554 = vor.u32 %v3552, %v3553
        %v3555 = vshll.u32 2131351028, %v3546
        %v3556 = vshrl.u32 2102212464, %v3547
        %v3557 = vor.u32 %v3555, %v3556
        %v3558 = vshll.u32 2102212464, %v3546
        %v3559 = vshrl.u32 920167782, %v3547
        %v3560 = vor.u32 %v3558, %v3559
        %v3561 = vshll.u32 920167782, %v3546
        %v3562 = vshrl.u32 1326507024, %v3547
        %v3563 = vor.u32 %v3561, %v3562
        %vm3564 = vcmp.lt.s32.totalorder %v3545, 1
        %vm3565 = vcmp.lt.s32.totalorder %v3545, 2
        %vm3566 = vcmp.lt.s32.totalorder %v3545, 3
        %vm3567 = vcmp.lt.s32.totalorder %v3545, 4
        %v3568 = vsel %vm3564, %v3548, %v3551
        %v3569 = vsel %vm3567, %v3557, 2102212464
        %v3570 = vsel %vm3566, %v3554, %v3569
        %v3571 = vsel %vm3565, %v3568, %v3570
        %v3572 = vsel %vm3564, %v3551, %v3554
        %v3573 = vsel %vm3567, %v3560, 920167782
        %v3574 = vsel %vm3566, %v3557, %v3573
        %v3575 = vsel %vm3565, %v3572, %v3574
        %v3576 = vsel %vm3564, %v3554, %v3557
        %v3577 = vsel %vm3567, %v3563, 1326507024
        %v3578 = vsel %vm3566, %v3560, %v3577
        %v3579 = vsel %vm3565, %v3576, %v3578
        %v3580 = vshll.u32 %v3540, 8
        %v3581 = vmul.u32.u64.compose %v3580, %v3579
        %v3582 = vextract.low.u32 %v3581
        %v3583 = vextract.high.u32 %v3581
        %v3584 = vmul.u32.u64.compose %v3580, %v3575
        %v3585 = vextract.low.u32 %v3584
        %v3586 = vextract.high.u32 %v3584
        %v3587 = vmul.u32 %v3580, %v3571
        %v3588 = vadd.s32 %v3583, %v3585
        %vm3589 = vc.u32 %v3583, %v3585
        %v3590 = vadd.s32 %v3586, 1
        %v3591 = vsel %vm3589, %v3590, %v3586
        %v3592 = vadd.s32 %v3587, %v3591
        %v3593 = vadd.s32 %v3592, 536870912
        %v3594 = vshrl.u32 %v3593, 30
        %v3595 = vshll.u32 %v3594, 30
        %v3596 = vsub.s32 %v3592, %v3595
        %vm3597 = vcmp.lt.s32.totalorder %v3596, 0
        %v3598 = vsub.s32 0, %v3596
        %v3599 = vsel %vm3597, %v3598, %v3596
        %v3600 = vclz %v3599
        %v3601 = vsub.s32 %v3600, 2
        %vm3602 = vcmp.gt.s32.totalorder 0, %v3601
        %v3603 = vsel %vm3602, 0, %v3601
        %v3604 = vsub.s32 32, %v3603
        %v3605 = vshll.u32 %v3596, %v3603
        %v3606 = vshrl.u32 %v3588, %v3604
        %v3607 = vor.u32 %v3605, %v3606
        %v3608 = vsub.s32 4294967266, %v3603
        %v3609 = vadd.s32 %v3608, 127
        %v3610 = vshll.u32 %v3609, 23
        %v3611 = vor.u32 4788187, %v3610
        %v3612 = vand.u32 2147483647, %v3611
        %v3614 = vcvt.s32.f32 %v3607
        %v3615 = vmul.f32 %v3614, %v3612
        %v3616 = vxor.u32 %v3615, 2147483648
        %v3617 = vsel %vm3534, %v3616, %v3615
        %v3618 = vsub.s32 4, %v3594
        %v3619 = vsel %vm3534, %v3618, %v3594
        %v3620 = vsel %vm3533, %v3531, %v3617
        %v3621 = vsel %vm3533, 0, %v3619
        %v3622 = vcosq.f32.pop %v3620
        %v3623 = vsinq.f32.pop %v3620
        %vm3624 = vweird.f32 %v3531
        %v3625 = vadd.s32 %v3621, 3
        %v3626 = vand.u32 %v3625, 3
        %vm3627 = vcmp.lt.s32.totalorder %v3626, 2
        %vm3628 = vcmp.eq.s32.totalorder %v3626, 0
        %v3629 = vxor.u32 %v3623, 2147483648
        %v3630 = vsel %vm3628, %v3622, %v3629
        %vm3631 = vcmp.eq.s32.totalorder %v3626, 2
        %v3632 = vxor.u32 %v3622, 2147483648
        %v3633 = vsel %vm3631, %v3632, %v3623
        %v3634 = vsel %vm3627, %v3630, %v3633
        %v3635 = vsel %vm3624, nan, %v3634
        %v3636 = vand.u32 2147483647, %v3531
        %vm3637 = vcmp.le.f32.partialorder %v3636, 0.7853982
        %vm3638 = vcmp.lt.s32.totalorder %v3531, 0
        %v3639 = vand.u32 %v3531, 2139095040
        %v3640 = vshrl.u32 %v3639, 23
        %v3641 = vsub.s32 %v3640, 127
        %v3642 = vand.u32 2147483647, %v3531
        %v3643 = vand.u32 %v3642, 8388607
        %v3644 = vor.u32 %v3643, 8388608
        %v3645 = vsub.s32 0, %v3644
        %v3646 = vadd.s32 %v3641, 1
        %vm3647 = vcmp.gt.s32.totalorder %v3646, 0
        %v3648 = vsel %vm3647, %v3646, 0
        %v3649 = vshrl.u32 %v3648, 5
        %v3650 = vand.u32 %v3648, 31
        %v3651 = vsub.s32 32, %v3650
        %v3652 = vshrl.u32 683565275, %v3651
        %v3653 = vshll.u32 683565275, %v3650
        %v3654 = vshrl.u32 2475754826, %v3651
        %v3655 = vor.u32 %v3653, %v3654
        %v3656 = vshll.u32 2475754826, %v3650
        %v3657 = vshrl.u32 2131351028, %v3651
        %v3658 = vor.u32 %v3656, %v3657
        %v3659 = vshll.u32 2131351028, %v3650
        %v3660 = vshrl.u32 2102212464, %v3651
        %v3661 = vor.u32 %v3659, %v3660
        %v3662 = vshll.u32 2102212464, %v3650
        %v3663 = vshrl.u32 920167782, %v3651
        %v3664 = vor.u32 %v3662, %v3663
        %v3665 = vshll.u32 920167782, %v3650
        %v3666 = vshrl.u32 1326507024, %v3651
        %v3667 = vor.u32 %v3665, %v3666
        %vm3668 = vcmp.lt.s32.totalorder %v3649, 1
        %vm3669 = vcmp.lt.s32.totalorder %v3649, 2
        %vm3670 = vcmp.lt.s32.totalorder %v3649, 3
        %vm3671 = vcmp.lt.s32.totalorder %v3649, 4
        %v3672 = vsel %vm3668, %v3652, %v3655
        %v3673 = vsel %vm3671, %v3661, 2102212464
        %v3674 = vsel %vm3670, %v3658, %v3673
        %v3675 = vsel %vm3669, %v3672, %v3674
        %v3676 = vsel %vm3668, %v3655, %v3658
        %v3677 = vsel %vm3671, %v3664, 920167782
        %v3678 = vsel %vm3670, %v3661, %v3677
        %v3679 = vsel %vm3669, %v3676, %v3678
        %v3680 = vsel %vm3668, %v3658, %v3661
        %v3681 = vsel %vm3671, %v3667, 1326507024
        %v3682 = vsel %vm3670, %v3664, %v3681
        %v3683 = vsel %vm3669, %v3680, %v3682
        %v3684 = vshll.u32 %v3644, 8
        %v3685 = vmul.u32.u64.compose %v3684, %v3683
        %v3686 = vextract.low.u32 %v3685
        %v3687 = vextract.high.u32 %v3685
        %v3688 = vmul.u32.u64.compose %v3684, %v3679
        %v3689 = vextract.low.u32 %v3688
        %v3690 = vextract.high.u32 %v3688
        %v3691 = vmul.u32 %v3684, %v3675
        %v3692 = vadd.s32 %v3687, %v3689
        %vm3693 = vc.u32 %v3687, %v3689
        %v3694 = vadd.s32 %v3690, 1
        %v3695 = vsel %vm3693, %v3694, %v3690
        %v3696 = vadd.s32 %v3691, %v3695
        %v3697 = vadd.s32 %v3696, 536870912
        %v3698 = vshrl.u32 %v3697, 30
        %v3699 = vshll.u32 %v3698, 30
        %v3700 = vsub.s32 %v3696, %v3699
        %vm3701 = vcmp.lt.s32.totalorder %v3700, 0
        %v3702 = vsub.s32 0, %v3700
        %v3703 = vsel %vm3701, %v3702, %v3700
        %v3704 = vclz %v3703
        %v3705 = vsub.s32 %v3704, 2
        %vm3706 = vcmp.gt.s32.totalorder 0, %v3705
        %v3707 = vsel %vm3706, 0, %v3705
        %v3708 = vsub.s32 32, %v3707
        %v3709 = vshll.u32 %v3700, %v3707
        %v3710 = vshrl.u32 %v3692, %v3708
        %v3711 = vor.u32 %v3709, %v3710
        %v3712 = vsub.s32 4294967266, %v3707
        %v3713 = vadd.s32 %v3712, 127
        %v3714 = vshll.u32 %v3713, 23
        %v3715 = vor.u32 4788187, %v3714
        %v3716 = vand.u32 2147483647, %v3715
        %v3718 = vcvt.s32.f32 %v3711
        %v3719 = vmul.f32 %v3718, %v3716
        %v3720 = vxor.u32 %v3719, 2147483648
        %v3721 = vsel %vm3638, %v3720, %v3719
        %v3722 = vsub.s32 4, %v3698
        %v3723 = vsel %vm3638, %v3722, %v3698
        %v3724 = vsel %vm3637, %v3531, %v3721
        %v3725 = vsel %vm3637, 0, %v3723
        %v3726 = vcosq.f32.pop %v3724
        %v3727 = vsinq.f32.pop %v3724
        %vm3728 = vweird.f32 %v3531
        %v3729 = vand.u32 %v3725, 3
        %vm3730 = vcmp.lt.s32.totalorder %v3729, 2
        %vm3731 = vcmp.eq.s32.totalorder %v3729, 0
        %v3732 = vxor.u32 %v3727, 2147483648
        %v3733 = vsel %vm3731, %v3726, %v3732
        %vm3734 = vcmp.eq.s32.totalorder %v3729, 2
        %v3735 = vxor.u32 %v3726, 2147483648
        %v3736 = vsel %vm3734, %v3735, %v3727
        %v3737 = vsel %vm3730, %v3733, %v3736
        %v3738 = vsel %vm3728, nan, %v3737
        %v3741 = vunpack.c.l.s4 1966171168
        %v3742 = vunpack.c.0.s8 %v3741
        %v3743 = vlaneseq
        %v3744 = vshrl.u32 %v3743, 7
        %v3745 = vsub.s32 %v3742, %v3744
        %v3746 = vrot.slane %v3635, %v3745
        %v3747 = vcombine.high %v3746, %v3746
        %v3749 = vunpack.c.l.s4 1966171168
        %v3750 = vunpack.c.0.s8 %v3749
        %v3751 = vlaneseq
        %v3752 = vshrl.u32 %v3751, 7
        %v3753 = vsub.s32 %v3750, %v3752
        %v3754 = vrot.slane %v3746, %v3753
        %v3756 = vunpack.c.l.s4 1966171168
        %v3757 = vunpack.c.0.s8 %v3756
        %v3758 = vlaneseq
        %v3759 = vshrl.u32 %v3758, 7
        %v3760 = vsub.s32 %v3757, %v3759
        %v3761 = vrot.slane %v3747, %v3760
        %v3762 = vcombine.high %v3754, %v3754
        %v3765 = vunpack.c.l.s4 1966171168
        %v3766 = vunpack.c.0.s8 %v3765
        %v3767 = vlaneseq
        %v3768 = vshrl.u32 %v3767, 7
        %v3769 = vsub.s32 %v3766, %v3768
        %v3770 = vrot.slane %v3738, %v3769
        %v3771 = vcombine.high %v3770, %v3770
        %v3773 = vunpack.c.l.s4 1966171168
        %v3774 = vunpack.c.0.s8 %v3773
        %v3775 = vlaneseq
        %v3776 = vshrl.u32 %v3775, 7
        %v3777 = vsub.s32 %v3774, %v3776
        %v3778 = vrot.slane %v3770, %v3777
        %v3780 = vunpack.c.l.s4 1966171168
        %v3781 = vunpack.c.0.s8 %v3780
        %v3782 = vlaneseq
        %v3783 = vshrl.u32 %v3782, 7
        %v3784 = vsub.s32 %v3781, %v3783
        %v3785 = vrot.slane %v3771, %v3784
        %v3786 = vcombine.high %v3778, %v3778
        %v3787 = vlaneseq
        %v3788 = vshrl.u32 %v3787, 7
        %v3789 = vsub.s32 0, %v3788
        %v3790 = vrot.slane %v3754, %v3789
        %v3791 = vlaneseq
        %v3792 = vshrl.u32 %v3791, 7
        %v3793 = vsub.s32 1, %v3792
        %v3794 = vrot.slane %v3754, %v3793
        %v3795 = vlaneseq
        %v3796 = vshrl.u32 %v3795, 7
        %v3797 = vsub.s32 0, %v3796
        %v3798 = vrot.slane %v3761, %v3797
        %v3799 = vlaneseq
        %v3800 = vshrl.u32 %v3799, 7
        %v3801 = vsub.s32 1, %v3800
        %v3802 = vrot.slane %v3761, %v3801
        %v3803 = vlaneseq
        %v3804 = vshrl.u32 %v3803, 7
        %v3805 = vsub.s32 0, %v3804
        %v3806 = vrot.slane %v3762, %v3805
        %v3807 = vlaneseq
        %v3808 = vshrl.u32 %v3807, 7
        %v3809 = vsub.s32 1, %v3808
        %v3810 = vrot.slane %v3762, %v3809
        %v3817 = vlaneseq
        %v3818 = vshrl.u32 %v3817, 7
        %v3819 = vsub.s32 0, %v3818
        %v3820 = vrot.slane %v3778, %v3819
        %v3821 = vlaneseq
        %v3822 = vshrl.u32 %v3821, 7
        %v3823 = vsub.s32 1, %v3822
        %v3824 = vrot.slane %v3778, %v3823
        %v3825 = vlaneseq
        %v3826 = vshrl.u32 %v3825, 7
        %v3827 = vsub.s32 0, %v3826
        %v3828 = vrot.slane %v3785, %v3827
        %v3829 = vlaneseq
        %v3830 = vshrl.u32 %v3829, 7
        %v3831 = vsub.s32 1, %v3830
        %v3832 = vrot.slane %v3785, %v3831
        %v3833 = vlaneseq
        %v3834 = vshrl.u32 %v3833, 7
        %v3835 = vsub.s32 0, %v3834
        %v3836 = vrot.slane %v3786, %v3835
        %v3837 = vlaneseq
        %v3838 = vshrl.u32 %v3837, 7
        %v3839 = vsub.s32 1, %v3838
        %v3840 = vrot.slane %v3786, %v3839
        %v3847 = vsel %vm457, %v3790, %v3820
        %v3848 = vsel %vm457, %v3794, %v3824
        %v3849 = vsel %vm457, %v3798, %v3828
        %v3850 = vsel %vm457, %v3802, %v3832
        %v3851 = vsel %vm457, %v3806, %v3836
        %v3852 = vsel %vm457, %v3810, %v3840
        %v3859 = vcombine.low %v3847, %v3848
        %v3861 = vunpack.c.l.s4 1983009808
        %v3862 = vunpack.c.0.s8 %v3861
        %v3863 = vlaneseq
        %v3864 = vshrl.u32 %v3863, 7
        %v3865 = vsub.s32 %v3862, %v3864
        %v3866 = vrot.slane %v3859, %v3865
        %v3867 = vcombine.low %v3849, %v3850
        %v3869 = vunpack.c.l.s4 1983009808
        %v3870 = vunpack.c.0.s8 %v3869
        %v3871 = vlaneseq
        %v3872 = vshrl.u32 %v3871, 7
        %v3873 = vsub.s32 %v3870, %v3872
        %v3874 = vrot.slane %v3867, %v3873
        %v3875 = vcombine.low %v3851, %v3852
        %v3877 = vunpack.c.l.s4 1983009808
        %v3878 = vunpack.c.0.s8 %v3877
        %v3879 = vlaneseq
        %v3880 = vshrl.u32 %v3879, 7
        %v3881 = vsub.s32 %v3878, %v3880
        %v3882 = vrot.slane %v3875, %v3881
        %v3883 = vcombine.low %v3866, %v3874
        %v3885 = vunpack.c.l.s4 1983009808
        %v3886 = vunpack.c.0.s8 %v3885
        %v3887 = vlaneseq
        %v3888 = vshrl.u32 %v3887, 7
        %v3889 = vsub.s32 %v3886, %v3888
        %v3890 = vrot.slane %v3883, %v3889
        %v3892 = vunpack.c.l.s4 1983009808
        %v3893 = vunpack.c.0.s8 %v3892
        %v3894 = vlaneseq
        %v3895 = vshrl.u32 %v3894, 7
        %v3896 = vsub.s32 %v3893, %v3895
        %v3897 = vrot.slane %v3882, %v3896
        %v3898 = vcombine.low %v3890, %v3897
        %v3899 = vcombine.high %v3890, %v3897
        %v3900 = vrot.slane %v3898, 7
        %v3901 = vrot.slane %v3899, 7
        %3904 = vst [vmem:[%s132 + $0x70] sm:$0x7e] %v3900
        %3905 = vst [vmem:[%s132 + $0x78] sm:$0x7e] %v3901
        %s3906 = sand.u32 %s52, 1
        %s3907 = scalar_lea.sflag [#allocation4], %s3906
        %s3908 = sand.u32 %s52, 1
        %s3909 = smul.addr %s3908, 128
        %s3910 = scalar_lea.vmem [#allocation5], %s3909
        // Predicated region
        $region29: #{tpu_custom_call.1} parent=23 // pred_check
          %p3911 = pneg %p62
        $region30: #{tpu_custom_call.1} parent=23 // pred_check_branch
          %3913 = sbr.rel (%p3911) target = $region32
        $region31: #{tpu_custom_call.1} parent=23 // pred_region
          %s3914 = smul.u32 2, %s18
          %s3916 = ssub.s32 2048, 2048
          %3917 = vsyncadd %s3907, %s3916
          %s3918 = smul.addr %s3914, 128
          %s3919 = scalar_lea.hbm %s1, %s3918
          %s3920 = sshll.u32 %s3910, 4
          %s3921 = int_to_ptr.vmem [resolvable:$true] %s3920
          %3926 = dma.vmem_to_hbm [thread:$0]  %s3921, 2048, %s3919, %s3907, 256, 512, 16
        $region32: #{tpu_custom_call.1} parent=23 // pred_fallthru
          _
      $region24: #{tpu_custom_call.1} parent=5 // pred_fallthru
        _
      %p3927 = scmp.le.s32.totalorder 2, %s13
      // Predicated region
      $region33: #{tpu_custom_call.1} parent=5 // pred_check
        %p3928 = pneg %p3927
      $region34: #{tpu_custom_call.1} parent=5 // pred_check_branch
        %3930 = sbr.rel (%p3928) target = $region36
      $region35: #{tpu_custom_call.1} parent=5 // pred_region
        %s3931 = ssub.s32 %s13, 2
        // Predicated region
        $region37: #{tpu_custom_call.1} parent=35 // pred_check
          %p3932 = pneg %p68
        $region38: #{tpu_custom_call.1} parent=35 // pred_check_branch
          %3934 = sbr.rel (%p3932) target = $region40
        $region39: #{tpu_custom_call.1} parent=35 // pred_region
          %s3935 = sand.u32 %s53, 1
          %s3936 = scalar_lea.sflag [#allocation4], %s3935
          %s3937 = sand.u32 %s53, 1
          %s3938 = smul.addr %s3937, 128
          %s3939 = scalar_lea.vmem [#allocation5], %s3938
          %3940 = dma.done %s3936, 2048
        $region40: #{tpu_custom_call.1} parent=35 // pred_fallthru
          _
      $region36: #{tpu_custom_call.1} parent=5 // pred_fallthru
        _
    $region6: #{tpu_custom_call.1} parent=1 // loop_footer
      %s17 = sadd.s32 1, %s13
    $region7: #{tpu_custom_call.1} parent=1 // loop_footer_branch
      %12 = sbr.rel target = $region3
    $region8: #{tpu_custom_call.1} parent=1 // loop_exit
      _
    %3941 = vsyncpa [#allocation3], 1
    %s3942 = scalar_lea.sflag [#allocation3], 1
    %3943 = vsyncpa %s3942, 1
    %3944 = vsyncpa [#allocation4], 1
    %s3945 = scalar_lea.sflag [#allocation4], 1
    %3946 = vsyncpa %s3945, 1

</llo_original>
